<compile_context>
chip_gen: v7x
topology: tpu7x:2x2x1
jax: 0.10.0
libtpu: 0.0.40
codegen_flags: <defaults>
</compile_context>

<pallas_src>
import functools
import math

import jax
import jax.numpy as jnp
from jax import lax
from jax.experimental import pallas as pl
from jax.experimental.pallas import tpu as pltpu

_NEG_BIG = -1e9  # finite "masked" sentinel (avoids NaN on fully masked rows)


def _encoder_stack_kernel(lens_ref, x_ref,
                          wqkv_ref, bqkv_ref, wo_ref, bo_ref,
                          ln1w_ref, ln1b_ref, w1_ref, b1_ref,
                          w2_ref, b2_ref, ln2w_ref, ln2b_ref,
                          out_ref, act_ref,
                          *, nhead, masked, eps):
    """One post-norm nn.TransformerEncoderLayer on one batch block.

    grid = (batch_blocks, layers); the layer axis is innermost and the activation
    is carried across it in the VMEM scratch `act_ref`.
    """
    bb = pl.program_id(0)
    layer = pl.program_id(1)
    n_layers = pl.num_programs(1)

    Bblk, S, D = act_ref.shape
    M = Bblk * S
    dh = D // nhead

    # ---- carry: load input embeddings only at the first layer ----
    @pl.when(layer == 0)
    def _():
        act_ref[...] = x_ref[...]

    x3 = act_ref[...]                                   # (Bblk, S, D) f32
    x2 = x3.reshape(M, D)

    # ---- this layer's weights (leading layer dim squeezed with [0]) ----
    wqkv = wqkv_ref[0]                                  # (D, 3D) bf16, q-scale folded
    bqkv = bqkv_ref[0]                                  # (1, 3D) f32
    wo = wo_ref[0]                                      # (D, D)  bf16
    bo = bo_ref[0]                                      # (1, D)  f32
    w1 = w1_ref[0]                                      # (D, FF) bf16
    b1 = b1_ref[0]                                      # (1, FF) f32
    w2 = w2_ref[0]                                      # (FF, D) bf16
    b2 = b2_ref[0]                                      # (1, D)  f32

    # ---- fused QKV projection: batch folded into the matmul M dimension ----
    qkv = jnp.dot(x2.astype(jnp.bfloat16), wqkv,
                  preferred_element_type=jnp.float32) + bqkv      # (M, 3D) f32
    q3 = qkv[:, :D].reshape(Bblk, S, D)
    k3 = qkv[:, D:2 * D].reshape(Bblk, S, D)
    v3 = qkv[:, 2 * D:].reshape(Bblk, S, D)

    # ---- additive attention bias built in-kernel (no (B,S,S) HBM traffic) ----
    key_idx = lax.broadcasted_iota(jnp.int32, (Bblk, S, S), 2)
    row_idx = lax.broadcasted_iota(jnp.int32, (Bblk, S, S), 1)
    b_idx = lax.broadcasted_iota(jnp.int32, (Bblk, S, S), 0)
    lens_b = jnp.zeros((Bblk, S, S), jnp.int32)
    for j in range(Bblk):                               # static, small
        lens_b = jnp.where(b_idx == j, lens_ref[bb * Bblk + j], lens_b)
    valid = key_idx < lens_b                            # key-padding (prefix lengths)
    if masked:
        valid = jnp.logical_and(valid, key_idx <= row_idx)        # causal
    bias = jnp.where(valid, 0.0, _NEG_BIG).astype(jnp.float32)    # (Bblk, S, S)

    # ---- multi-head attention: heads unrolled, contractions batched over Bblk,
    #      no explicit k.T, no head concat (out-proj accumulated per head) ----
    attn2 = jnp.zeros((M, D), jnp.float32)
    for h in range(nhead):
        sl = slice(h * dh, (h + 1) * dh)
        qh = q3[:, :, sl].astype(jnp.bfloat16)          # (Bblk, S, dh)
        kh = k3[:, :, sl].astype(jnp.bfloat16)
        vh = v3[:, :, sl].astype(jnp.bfloat16)
        s = jnp.einsum('bqd,bkd->bqk', qh, kh,
                       preferred_element_type=jnp.float32) + bias  # (Bblk, S, S)
        s = s - jnp.max(s, axis=-1, keepdims=True)
        p = jnp.exp(s)
        denom = jnp.sum(p, axis=-1, keepdims=True)
        acc = jnp.einsum('bqk,bkd->bqd', p.astype(jnp.bfloat16), vh,
                         preferred_element_type=jnp.float32)       # (Bblk, S, dh)
        oh = acc * pl.reciprocal(denom, approx=True)    # normalize after PV matmul
        attn2 = attn2 + jnp.dot(oh.reshape(M, dh).astype(jnp.bfloat16),
                                wo[sl, :], preferred_element_type=jnp.float32)
    attn2 = attn2 + bo

    # ---- residual + LayerNorm 1 (f32) ----
    h1 = x2 + attn2
    mu1 = jnp.mean(h1, axis=-1, keepdims=True)
    var1 = jnp.mean((h1 - mu1) ** 2, axis=-1, keepdims=True)
    h1 = (h1 - mu1) * lax.rsqrt(var1 + eps) * ln1w_ref[0] + ln1b_ref[0]

    # ---- feed-forward (Linear -> ReLU -> Linear) ----
    f = jnp.dot(h1.astype(jnp.bfloat16), w1, preferred_element_type=jnp.float32) + b1
    f = jnp.maximum(f, 0.0)
    f = jnp.dot(f.astype(jnp.bfloat16), w2, preferred_element_type=jnp.float32) + b2

    # ---- residual + LayerNorm 2 (f32) ----
    h2 = h1 + f
    mu2 = jnp.mean(h2, axis=-1, keepdims=True)
    var2 = jnp.mean((h2 - mu2) ** 2, axis=-1, keepdims=True)
    h2 = (h2 - mu2) * lax.rsqrt(var2 + eps) * ln2w_ref[0] + ln2b_ref[0]
    h2_3d = h2.reshape(Bblk, S, D)

    act_ref[...] = h2_3d                                # carry to next layer

    @pl.when(layer == n_layers - 1)
    def _():
        out_ref[...] = h2_3d


def _encoder_stack(x, lengths, sp, *, nhead, masked, block_b=None, eps=1e-5):
    """x: (B, S, D) f32; lengths: (B,) int32; sp: stacked per-layer params."""
    B, S, D = x.shape
    L = sp["wqkv"].shape[0]
    FF = sp["w1"].shape[-1]
    if block_b is None:
        block_b = B
    assert B % block_b == 0
    nb = B // block_b

    def wspec(shape):
        return pl.BlockSpec((1,) + shape, lambda bb, l, lens: (l, 0, 0))

    kernel = functools.partial(_encoder_stack_kernel,
                               nhead=nhead, masked=masked, eps=eps)
    return pl.pallas_call(
        kernel,
        out_shape=jax.ShapeDtypeStruct((B, S, D), jnp.float32),
        grid_spec=pltpu.PrefetchScalarGridSpec(
            num_scalar_prefetch=1,                      # per-sequence lengths -> SMEM
            grid=(nb, L),                               # layer (carry) axis innermost
            in_specs=[
                pl.BlockSpec((block_b, S, D), lambda bb, l, lens: (bb, 0, 0)),  # x
                wspec((D, 3 * D)), wspec((1, 3 * D)),   # in-proj
                wspec((D, D)), wspec((1, D)),           # out-proj
                wspec((1, D)), wspec((1, D)),           # LN1
                wspec((D, FF)), wspec((1, FF)),         # FFN linear1
                wspec((FF, D)), wspec((1, D)),          # FFN linear2
                wspec((1, D)), wspec((1, D)),           # LN2
            ],
            out_specs=pl.BlockSpec((block_b, S, D), lambda bb, l, lens: (bb, 0, 0)),
            scratch_shapes=[pltpu.VMEM((block_b, S, D), jnp.float32)],
        ),
        compiler_params=pltpu.CompilerParams(
            dimension_semantics=("parallel", "arbitrary"),
            vmem_limit_bytes=64 * 1024 * 1024,
        ),
    )(lengths, x,
      sp["wqkv"], sp["bqkv"], sp["wo"], sp["bo"],
      sp["ln1w"], sp["ln1b"], sp["w1"], sp["b1"],
      sp["w2"], sp["b2"], sp["ln2w"], sp["ln2b"])


def init_params(key, num_activities, hidden_size, max_timestamps, nhead, nlayers,
                dim_feedforward=2048):
    D = 2 * hidden_size                       # d_model of the encoder layers
    FF = dim_feedforward                      # nn.TransformerEncoderLayer default
    dh = D // nhead
    scale = 1.0 / math.sqrt(dh)
    keys = jax.random.split(key, 6)

    def w(k, shape):
        return 0.02 * jax.random.normal(k, shape, jnp.float32)

    wqkv = w(keys[2], (nlayers, D, 3 * D))
    # fold 1/sqrt(dh) attention scale into the Q third of the in-projection
    # (q bias is zero here; a nonzero q bias would need the same scaling)
    wqkv = wqkv.at[:, :, :D].multiply(scale)

    return {
        # time2vec_k is None -> token embedding dim is hidden_size - 0
        "token_emb": 0.02 * jax.random.normal(keys[0], (num_activities, hidden_size), jnp.float32),
        "pos_emb": 0.02 * jax.random.normal(keys[1], (max_timestamps, hidden_size), jnp.float32),
        # matmul weights stored bf16 (MXU); biases / LayerNorm params f32 (VPU)
        "stack": {
            "wqkv": wqkv.astype(jnp.bfloat16),
            "bqkv": jnp.zeros((nlayers, 1, 3 * D), jnp.float32),
            "wo": w(keys[3], (nlayers, D, D)).astype(jnp.bfloat16),
            "bo": jnp.zeros((nlayers, 1, D), jnp.float32),
            "ln1w": jnp.ones((nlayers, 1, D), jnp.float32),
            "ln1b": jnp.zeros((nlayers, 1, D), jnp.float32),
            "w1": w(keys[4], (nlayers, D, FF)).astype(jnp.bfloat16),
            "b1": jnp.zeros((nlayers, 1, FF), jnp.float32),
            "w2": w(keys[5], (nlayers, FF, D)).astype(jnp.bfloat16),
            "b2": jnp.zeros((nlayers, 1, D), jnp.float32),
            "ln2w": jnp.ones((nlayers, 1, D), jnp.float32),
            "ln2b": jnp.zeros((nlayers, 1, D), jnp.float32),
        },
    }


def transformer_embedder_forward(params, activity_ids, padding_mask, *,
                                 nhead, masked=True, block_b=None):
    """activity_ids, padding_mask: (S, B) seq-first (PyTorch convention).
    padding_mask: True = valid token (prefix-valid -> per-sequence lengths).
    Returns embeddings of shape (S, B, 2*hidden_size)."""
    S, B = activity_ids.shape

    # --- embedding glue (data-dependent gathers stay in plain JAX) ---
    tok = params["token_emb"][activity_ids]                         # (S, B, H)
    pos = params["pos_emb"][:S]                                     # (S, H): positions = arange(S)
    pos = jnp.broadcast_to(pos[:, None, :], tok.shape)              # (S, B, H)
    embs = jnp.concatenate([tok, pos], axis=-1).astype(jnp.float32)  # (S, B, 2H)

    x = jnp.transpose(embs, (1, 0, 2))                              # (B, S, D) batch-major
    lengths = jnp.sum(padding_mask.astype(jnp.int32), axis=0)       # (B,) valid tokens per seq

    y = _encoder_stack(x, lengths, params["stack"],
                       nhead=nhead, masked=masked, block_b=block_b)
    return jnp.transpose(y, (1, 0, 2))                              # (S, B, D)


if __name__ == "__main__":
    num_activities, hidden_size, max_timestamps = 10, 32, 16
    nhead, nlayers, dropout = 4, 2, 0
    S, B = 8, 2                                                     # seq-first: (S, B)

    root = jax.random.PRNGKey(0)
    pkey, idkey = jax.random.split(root)
    params = init_params(pkey, num_activities, hidden_size, max_timestamps, nhead, nlayers)

    activity_ids = jax.random.randint(idkey, (S, B), 0, num_activities)
    lengths = jnp.array([8, 5])                                     # second sequence is padded
    padding_mask = jnp.arange(S)[:, None] < lengths[None, :]        # (S, B), True = valid token

    out = transformer_embedder_forward(params, activity_ids, padding_mask,
                                       nhead=nhead, masked=True)
    jax.block_until_ready(out)
    assert out.shape == (S, B, 2 * hidden_size), out.shape
    assert bool(jnp.all(jnp.isfinite(out)))
    print("KERNEL_OK")
</pallas_src>

<mosaic_0001>
module attributes {stable_mosaic.version = 11 : i64} {
  func.func @_encoder_stack_kernel(%arg0: i32, %arg1: i32, %arg2: memref<2xi32, #tpu.memory_space<smem>>, %arg3: memref<2x8x64xf32, #tpu.memory_space<vmem>>, %arg4: memref<1x64x192xbf16, #tpu.memory_space<vmem>>, %arg5: memref<1x1x192xf32, #tpu.memory_space<vmem>>, %arg6: memref<1x64x64xbf16, #tpu.memory_space<vmem>>, %arg7: memref<1x1x64xf32, #tpu.memory_space<vmem>>, %arg8: memref<1x1x64xf32, #tpu.memory_space<vmem>>, %arg9: memref<1x1x64xf32, #tpu.memory_space<vmem>>, %arg10: memref<1x64x2048xbf16, #tpu.memory_space<vmem>>, %arg11: memref<1x1x2048xf32, #tpu.memory_space<vmem>>, %arg12: memref<1x2048x64xbf16, #tpu.memory_space<vmem>>, %arg13: memref<1x1x64xf32, #tpu.memory_space<vmem>>, %arg14: memref<1x1x64xf32, #tpu.memory_space<vmem>>, %arg15: memref<1x1x64xf32, #tpu.memory_space<vmem>>, %arg16: memref<2x8x64xf32, #tpu.memory_space<vmem>>, %arg17: memref<2x8x64xf32, #tpu.memory_space<vmem>>) attributes {dimension_semantics = [#tpu.dimension_semantics<parallel>, #tpu.dimension_semantics<arbitrary>], iteration_bounds = array<i64: 1, 2>, scalar_prefetch = 1 : i64, scratch_operands = 1 : i64, tpu.core_type = #tpu.core_type<tc>, window_params = [{transform_indices = @transform_0, window_bounds = array<i64: 2, 8, 64>}, {transform_indices = @transform_1, window_bounds = array<i64: 1, 64, 192>}, {transform_indices = @transform_2, window_bounds = array<i64: 1, 1, 192>}, {transform_indices = @transform_3, window_bounds = array<i64: 1, 64, 64>}, {transform_indices = @transform_4, window_bounds = array<i64: 1, 1, 64>}, {transform_indices = @transform_5, window_bounds = array<i64: 1, 1, 64>}, {transform_indices = @transform_6, window_bounds = array<i64: 1, 1, 64>}, {transform_indices = @transform_7, window_bounds = array<i64: 1, 64, 2048>}, {transform_indices = @transform_8, window_bounds = array<i64: 1, 1, 2048>}, {transform_indices = @transform_9, window_bounds = array<i64: 1, 2048, 64>}, {transform_indices = @transform_10, window_bounds = array<i64: 1, 1, 64>}, {transform_indices = @transform_11, window_bounds = array<i64: 1, 1, 64>}, {transform_indices = @transform_12, window_bounds = array<i64: 1, 1, 64>}, {transform_indices = @transform_13, window_bounds = array<i64: 2, 8, 64>}]} {
    %c0_i32 = arith.constant 0 : i32
    %0 = arith.cmpi eq, %arg1, %c0_i32 : i32
    %1 = arith.extui %0 : i1 to i32
    %c0_i32_0 = arith.constant 0 : i32
    %2 = arith.cmpi ne, %1, %c0_i32_0 : i32
    scf.if %2 {
      %c0_85 = arith.constant 0 : index
      %c0_86 = arith.constant 0 : index
      %c0_87 = arith.constant 0 : index
      %229 = vector.load %arg3[%c0_85, %c0_86, %c0_87] : memref<2x8x64xf32, #tpu.memory_space<vmem>>, vector<2x8x64xf32>
      %c0_88 = arith.constant 0 : index
      %c0_89 = arith.constant 0 : index
      %c0_90 = arith.constant 0 : index
      %230 = vector.load %arg17[%c0_88, %c0_89, %c0_90] : memref<2x8x64xf32, #tpu.memory_space<vmem>>, vector<2x8x64xf32>
      tpu.vector_store %arg17[%c0_88, %c0_89, %c0_90], %229 {strides = array<i32>} : memref<2x8x64xf32, #tpu.memory_space<vmem>>, vector<2x8x64xf32>,
    } else {
    }
    %c0 = arith.constant 0 : index
    %c0_1 = arith.constant 0 : index
    %c0_2 = arith.constant 0 : index
    %3 = vector.load %arg17[%c0, %c0_1, %c0_2] : memref<2x8x64xf32, #tpu.memory_space<vmem>>, vector<2x8x64xf32>
    %4 = vector.shape_cast %3 : vector<2x8x64xf32> to vector<16x64xf32>
    %c0_3 = arith.constant 0 : index
    %c0_4 = arith.constant 0 : index
    %c0_5 = arith.constant 0 : index
    %5 = vector.load %arg4[%c0_3, %c0_4, %c0_5] : memref<1x64x192xbf16, #tpu.memory_space<vmem>>, vector<1x64x192xbf16>
    %6 = vector.shape_cast %5 : vector<1x64x192xbf16> to vector<64x192xbf16>
    %c0_6 = arith.constant 0 : index
    %c0_7 = arith.constant 0 : index
    %c0_8 = arith.constant 0 : index
    %7 = vector.load %arg5[%c0_6, %c0_7, %c0_8] : memref<1x1x192xf32, #tpu.memory_space<vmem>>, vector<1x1x192xf32>
    %8 = vector.shape_cast %7 : vector<1x1x192xf32> to vector<1x192xf32>
    %c0_9 = arith.constant 0 : index
    %c0_10 = arith.constant 0 : index
    %c0_11 = arith.constant 0 : index
    %9 = vector.load %arg6[%c0_9, %c0_10, %c0_11] : memref<1x64x64xbf16, #tpu.memory_space<vmem>>, vector<1x64x64xbf16>
    %10 = vector.shape_cast %9 : vector<1x64x64xbf16> to vector<64x64xbf16>
    %c0_12 = arith.constant 0 : index
    %c0_13 = arith.constant 0 : index
    %c0_14 = arith.constant 0 : index
    %11 = vector.load %arg7[%c0_12, %c0_13, %c0_14] : memref<1x1x64xf32, #tpu.memory_space<vmem>>, vector<1x1x64xf32>
    %12 = vector.shape_cast %11 : vector<1x1x64xf32> to vector<1x64xf32>
    %c0_15 = arith.constant 0 : index
    %c0_16 = arith.constant 0 : index
    %c0_17 = arith.constant 0 : index
    %13 = vector.load %arg10[%c0_15, %c0_16, %c0_17] : memref<1x64x2048xbf16, #tpu.memory_space<vmem>>, vector<1x64x2048xbf16>
    %14 = vector.shape_cast %13 : vector<1x64x2048xbf16> to vector<64x2048xbf16>
    %c0_18 = arith.constant 0 : index
    %c0_19 = arith.constant 0 : index
    %c0_20 = arith.constant 0 : index
    %15 = vector.load %arg11[%c0_18, %c0_19, %c0_20] : memref<1x1x2048xf32, #tpu.memory_space<vmem>>, vector<1x1x2048xf32>
    %16 = vector.shape_cast %15 : vector<1x1x2048xf32> to vector<1x2048xf32>
    %c0_21 = arith.constant 0 : index
    %c0_22 = arith.constant 0 : index
    %c0_23 = arith.constant 0 : index
    %17 = vector.load %arg12[%c0_21, %c0_22, %c0_23] : memref<1x2048x64xbf16, #tpu.memory_space<vmem>>, vector<1x2048x64xbf16>
    %18 = vector.shape_cast %17 : vector<1x2048x64xbf16> to vector<2048x64xbf16>
    %c0_24 = arith.constant 0 : index
    %c0_25 = arith.constant 0 : index
    %c0_26 = arith.constant 0 : index
    %19 = vector.load %arg13[%c0_24, %c0_25, %c0_26] : memref<1x1x64xf32, #tpu.memory_space<vmem>>, vector<1x1x64xf32>
    %20 = vector.shape_cast %19 : vector<1x1x64xf32> to vector<1x64xf32>
    %21 = arith.truncf %4 : vector<16x64xf32> to vector<16x64xbf16>
    %cst = arith.constant dense<0.000000e+00> : vector<16x192xf32>
    %22 = tpu.matmul %21, %6, %cst {dimension_numbers = #tpu.dot_dimension_numbers<[1], [0], [0], [1], [0, 0, 1, 1], [], []>} : vector<16x64xbf16>, vector<64x192xbf16>, vector<16x192xf32> -> vector<16x192xf32>
    %23 = vector.broadcast %8 : vector<1x192xf32> to vector<16x192xf32>
    %24 = arith.addf %22, %23 : vector<16x192xf32>
    %25 = vector.extract_strided_slice %24 {offsets = [0, 0], sizes = [16, 64], strides = [1, 1]} : vector<16x192xf32> to vector<16x64xf32>
    %26 = vector.shape_cast %25 : vector<16x64xf32> to vector<2x8x64xf32>
    %27 = vector.extract_strided_slice %24 {offsets = [0, 64], sizes = [16, 64], strides = [1, 1]} : vector<16x192xf32> to vector<16x64xf32>
    %28 = vector.shape_cast %27 : vector<16x64xf32> to vector<2x8x64xf32>
    %29 = vector.extract_strided_slice %24 {offsets = [0, 128], sizes = [16, 64], strides = [1, 1]} : vector<16x192xf32> to vector<16x64xf32>
    %30 = vector.shape_cast %29 : vector<16x64xf32> to vector<2x8x64xf32>
    %31 = tpu.iota {dimensions = array<i32: 2>} : vector<2x8x8xi32>
    %32 = tpu.iota {dimensions = array<i32: 1>} : vector<2x8x8xi32>
    %33 = tpu.iota {dimensions = array<i32: 0>} : vector<2x8x8xi32>
    %c0_i32_27 = arith.constant 0 : i32
    %34 = vector.broadcast %c0_i32_27 : i32 to vector<2x8x8xi32>
    %c0_i32_28 = arith.constant 0 : i32
    %35 = vector.broadcast %c0_i32_28 : i32 to vector<2x8x8xi32>
    %36 = arith.cmpi eq, %33, %35 : vector<2x8x8xi32>
    %c2_i32 = arith.constant 2 : i32
    %37 = arith.muli %arg0, %c2_i32 : i32
    %c0_i32_29 = arith.constant 0 : i32
    %38 = arith.addi %37, %c0_i32_29 : i32
    %39 = arith.index_cast %38 : i32 to index
    %40 = memref.load %arg2[%39] : memref<2xi32, #tpu.memory_space<smem>>
    %41 = vector.broadcast %40 : i32 to vector<2x8x8xi32>
    %42 = arith.select %36, %41, %34 : vector<2x8x8xi1>, vector<2x8x8xi32>
    %c1_i32 = arith.constant 1 : i32
    %43 = vector.broadcast %c1_i32 : i32 to vector<2x8x8xi32>
    %44 = arith.cmpi eq, %33, %43 : vector<2x8x8xi32>
    %c2_i32_30 = arith.constant 2 : i32
    %45 = arith.muli %arg0, %c2_i32_30 : i32
    %c1_i32_31 = arith.constant 1 : i32
    %46 = arith.addi %45, %c1_i32_31 : i32
    %47 = arith.index_cast %46 : i32 to index
    %48 = memref.load %arg2[%47] : memref<2xi32, #tpu.memory_space<smem>>
    %49 = vector.broadcast %48 : i32 to vector<2x8x8xi32>
    %50 = arith.select %44, %49, %42 : vector<2x8x8xi1>, vector<2x8x8xi32>
    %51 = arith.cmpi slt, %31, %50 : vector<2x8x8xi32>
    %52 = arith.cmpi sle, %31, %32 : vector<2x8x8xi32>
    %53 = arith.andi %51, %52 : vector<2x8x8xi1>
    %cst_32 = arith.constant 0.000000e+00 : f32
    %cst_33 = arith.constant -1.000000e+09 : f32
    %54 = vector.broadcast %cst_32 : f32 to vector<2x8x8xf32>
    %55 = vector.broadcast %cst_33 : f32 to vector<2x8x8xf32>
    %56 = arith.select %53, %54, %55 : vector<2x8x8xi1>, vector<2x8x8xf32>
    %cst_34 = arith.constant 0.000000e+00 : f32
    %57 = vector.broadcast %cst_34 : f32 to vector<16x64xf32>
    %58 = vector.extract_strided_slice %26 {offsets = [0, 0, 0], sizes = [2, 8, 16], strides = [1, 1, 1]} : vector<2x8x64xf32> to vector<2x8x16xf32>
    %59 = arith.truncf %58 : vector<2x8x16xf32> to vector<2x8x16xbf16>
    %60 = vector.extract_strided_slice %28 {offsets = [0, 0, 0], sizes = [2, 8, 16], strides = [1, 1, 1]} : vector<2x8x64xf32> to vector<2x8x16xf32>
    %61 = arith.truncf %60 : vector<2x8x16xf32> to vector<2x8x16xbf16>
    %62 = vector.extract_strided_slice %30 {offsets = [0, 0, 0], sizes = [2, 8, 16], strides = [1, 1, 1]} : vector<2x8x64xf32> to vector<2x8x16xf32>
    %63 = arith.truncf %62 : vector<2x8x16xf32> to vector<2x8x16xbf16>
    "tpu.trace_start"() <{level = 10 : i32, message = "bqd,bkd->bqk"}> : () -> ()
    %cst_35 = arith.constant dense<0.000000e+00> : vector<2x8x8xf32>
    %64 = tpu.matmul %59, %61, %cst_35 {dimension_numbers = #tpu.dot_dimension_numbers<[2], [2], [1], [1], [0, 0, 0, 1, 1, 1], [0], [0]>} : vector<2x8x16xbf16>, vector<2x8x16xbf16>, vector<2x8x8xf32> -> vector<2x8x8xf32>
    "tpu.trace_stop"() : () -> ()
    %65 = arith.addf %64, %56 : vector<2x8x8xf32>
    %cst_36 = arith.constant dense<0xFF800000> : vector<2x8xf32>
    %66 = vector.multi_reduction <maximumf>, %65, %cst_36 [2] : vector<2x8x8xf32> to vector<2x8xf32>
    %67 = vector.shape_cast %66 : vector<2x8xf32> to vector<2x8x1xf32>
    %68 = vector.broadcast %67 : vector<2x8x1xf32> to vector<2x8x8xf32>
    %69 = arith.subf %65, %68 : vector<2x8x8xf32>
    %70 = math.exp %69 : vector<2x8x8xf32>
    %cst_37 = arith.constant dense<0.000000e+00> : vector<2x8xf32>
    %71 = vector.multi_reduction <add>, %70, %cst_37 [2] : vector<2x8x8xf32> to vector<2x8xf32>
    %72 = vector.shape_cast %71 : vector<2x8xf32> to vector<2x8x1xf32>
    %73 = arith.truncf %70 : vector<2x8x8xf32> to vector<2x8x8xbf16>
    "tpu.trace_start"() <{level = 10 : i32, message = "bqk,bkd->bqd"}> : () -> ()
    %cst_38 = arith.constant dense<0.000000e+00> : vector<2x8x16xf32>
    %74 = tpu.matmul %73, %63, %cst_38 {dimension_numbers = #tpu.dot_dimension_numbers<[2], [1], [1], [2], [0, 0, 0, 1, 1, 2], [0], [0]>} : vector<2x8x8xbf16>, vector<2x8x16xbf16>, vector<2x8x16xf32> -> vector<2x8x16xf32>
    "tpu.trace_stop"() : () -> ()
    %75 = tpu.reciprocal %72 {approx = true} : vector<2x8x1xf32> -> vector<2x8x1xf32>
    %76 = vector.broadcast %75 : vector<2x8x1xf32> to vector<2x8x16xf32>
    %77 = arith.mulf %74, %76 : vector<2x8x16xf32>
    %78 = vector.shape_cast %77 : vector<2x8x16xf32> to vector<16x16xf32>
    %79 = arith.truncf %78 : vector<16x16xf32> to vector<16x16xbf16>
    %80 = vector.extract_strided_slice %10 {offsets = [0, 0], sizes = [16, 64], strides = [1, 1]} : vector<64x64xbf16> to vector<16x64xbf16>
    %cst_39 = arith.constant dense<0.000000e+00> : vector<16x64xf32>
    %81 = tpu.matmul %79, %80, %cst_39 {dimension_numbers = #tpu.dot_dimension_numbers<[1], [0], [0], [1], [0, 0, 1, 1], [], []>} : vector<16x16xbf16>, vector<16x64xbf16>, vector<16x64xf32> -> vector<16x64xf32>
    %82 = arith.addf %57, %81 : vector<16x64xf32>
    %83 = vector.extract_strided_slice %26 {offsets = [0, 0, 16], sizes = [2, 8, 16], strides = [1, 1, 1]} : vector<2x8x64xf32> to vector<2x8x16xf32>
    %84 = arith.truncf %83 : vector<2x8x16xf32> to vector<2x8x16xbf16>
    %85 = vector.extract_strided_slice %28 {offsets = [0, 0, 16], sizes = [2, 8, 16], strides = [1, 1, 1]} : vector<2x8x64xf32> to vector<2x8x16xf32>
    %86 = arith.truncf %85 : vector<2x8x16xf32> to vector<2x8x16xbf16>
    %87 = vector.extract_strided_slice %30 {offsets = [0, 0, 16], sizes = [2, 8, 16], strides = [1, 1, 1]} : vector<2x8x64xf32> to vector<2x8x16xf32>
    %88 = arith.truncf %87 : vector<2x8x16xf32> to vector<2x8x16xbf16>
    "tpu.trace_start"() <{level = 10 : i32, message = "bqd,bkd->bqk"}> : () -> ()
    %cst_40 = arith.constant dense<0.000000e+00> : vector<2x8x8xf32>
    %89 = tpu.matmul %84, %86, %cst_40 {dimension_numbers = #tpu.dot_dimension_numbers<[2], [2], [1], [1], [0, 0, 0, 1, 1, 1], [0], [0]>} : vector<2x8x16xbf16>, vector<2x8x16xbf16>, vector<2x8x8xf32> -> vector<2x8x8xf32>
    "tpu.trace_stop"() : () -> ()
    %90 = arith.addf %89, %56 : vector<2x8x8xf32>
    %cst_41 = arith.constant dense<0xFF800000> : vector<2x8xf32>
    %91 = vector.multi_reduction <maximumf>, %90, %cst_41 [2] : vector<2x8x8xf32> to vector<2x8xf32>
    %92 = vector.shape_cast %91 : vector<2x8xf32> to vector<2x8x1xf32>
    %93 = vector.broadcast %92 : vector<2x8x1xf32> to vector<2x8x8xf32>
    %94 = arith.subf %90, %93 : vector<2x8x8xf32>
    %95 = math.exp %94 : vector<2x8x8xf32>
    %cst_42 = arith.constant dense<0.000000e+00> : vector<2x8xf32>
    %96 = vector.multi_reduction <add>, %95, %cst_42 [2] : vector<2x8x8xf32> to vector<2x8xf32>
    %97 = vector.shape_cast %96 : vector<2x8xf32> to vector<2x8x1xf32>
    %98 = arith.truncf %95 : vector<2x8x8xf32> to vector<2x8x8xbf16>
    "tpu.trace_start"() <{level = 10 : i32, message = "bqk,bkd->bqd"}> : () -> ()
    %cst_43 = arith.constant dense<0.000000e+00> : vector<2x8x16xf32>
    %99 = tpu.matmul %98, %88, %cst_43 {dimension_numbers = #tpu.dot_dimension_numbers<[2], [1], [1], [2], [0, 0, 0, 1, 1, 2], [0], [0]>} : vector<2x8x8xbf16>, vector<2x8x16xbf16>, vector<2x8x16xf32> -> vector<2x8x16xf32>
    "tpu.trace_stop"() : () -> ()
    %100 = tpu.reciprocal %97 {approx = true} : vector<2x8x1xf32> -> vector<2x8x1xf32>
    %101 = vector.broadcast %100 : vector<2x8x1xf32> to vector<2x8x16xf32>
    %102 = arith.mulf %99, %101 : vector<2x8x16xf32>
    %103 = vector.shape_cast %102 : vector<2x8x16xf32> to vector<16x16xf32>
    %104 = arith.truncf %103 : vector<16x16xf32> to vector<16x16xbf16>
    %105 = vector.extract_strided_slice %10 {offsets = [16, 0], sizes = [16, 64], strides = [1, 1]} : vector<64x64xbf16> to vector<16x64xbf16>
    %cst_44 = arith.constant dense<0.000000e+00> : vector<16x64xf32>
    %106 = tpu.matmul %104, %105, %cst_44 {dimension_numbers = #tpu.dot_dimension_numbers<[1], [0], [0], [1], [0, 0, 1, 1], [], []>} : vector<16x16xbf16>, vector<16x64xbf16>, vector<16x64xf32> -> vector<16x64xf32>
    %107 = arith.addf %82, %106 : vector<16x64xf32>
    %108 = vector.extract_strided_slice %26 {offsets = [0, 0, 32], sizes = [2, 8, 16], strides = [1, 1, 1]} : vector<2x8x64xf32> to vector<2x8x16xf32>
    %109 = arith.truncf %108 : vector<2x8x16xf32> to vector<2x8x16xbf16>
    %110 = vector.extract_strided_slice %28 {offsets = [0, 0, 32], sizes = [2, 8, 16], strides = [1, 1, 1]} : vector<2x8x64xf32> to vector<2x8x16xf32>
    %111 = arith.truncf %110 : vector<2x8x16xf32> to vector<2x8x16xbf16>
    %112 = vector.extract_strided_slice %30 {offsets = [0, 0, 32], sizes = [2, 8, 16], strides = [1, 1, 1]} : vector<2x8x64xf32> to vector<2x8x16xf32>
    %113 = arith.truncf %112 : vector<2x8x16xf32> to vector<2x8x16xbf16>
    "tpu.trace_start"() <{level = 10 : i32, message = "bqd,bkd->bqk"}> : () -> ()
    %cst_45 = arith.constant dense<0.000000e+00> : vector<2x8x8xf32>
    %114 = tpu.matmul %109, %111, %cst_45 {dimension_numbers = #tpu.dot_dimension_numbers<[2], [2], [1], [1], [0, 0, 0, 1, 1, 1], [0], [0]>} : vector<2x8x16xbf16>, vector<2x8x16xbf16>, vector<2x8x8xf32> -> vector<2x8x8xf32>
    "tpu.trace_stop"() : () -> ()
    %115 = arith.addf %114, %56 : vector<2x8x8xf32>
    %cst_46 = arith.constant dense<0xFF800000> : vector<2x8xf32>
    %116 = vector.multi_reduction <maximumf>, %115, %cst_46 [2] : vector<2x8x8xf32> to vector<2x8xf32>
    %117 = vector.shape_cast %116 : vector<2x8xf32> to vector<2x8x1xf32>
    %118 = vector.broadcast %117 : vector<2x8x1xf32> to vector<2x8x8xf32>
    %119 = arith.subf %115, %118 : vector<2x8x8xf32>
    %120 = math.exp %119 : vector<2x8x8xf32>
    %cst_47 = arith.constant dense<0.000000e+00> : vector<2x8xf32>
    %121 = vector.multi_reduction <add>, %120, %cst_47 [2] : vector<2x8x8xf32> to vector<2x8xf32>
    %122 = vector.shape_cast %121 : vector<2x8xf32> to vector<2x8x1xf32>
    %123 = arith.truncf %120 : vector<2x8x8xf32> to vector<2x8x8xbf16>
    "tpu.trace_start"() <{level = 10 : i32, message = "bqk,bkd->bqd"}> : () -> ()
    %cst_48 = arith.constant dense<0.000000e+00> : vector<2x8x16xf32>
    %124 = tpu.matmul %123, %113, %cst_48 {dimension_numbers = #tpu.dot_dimension_numbers<[2], [1], [1], [2], [0, 0, 0, 1, 1, 2], [0], [0]>} : vector<2x8x8xbf16>, vector<2x8x16xbf16>, vector<2x8x16xf32> -> vector<2x8x16xf32>
    "tpu.trace_stop"() : () -> ()
    %125 = tpu.reciprocal %122 {approx = true} : vector<2x8x1xf32> -> vector<2x8x1xf32>
    %126 = vector.broadcast %125 : vector<2x8x1xf32> to vector<2x8x16xf32>
    %127 = arith.mulf %124, %126 : vector<2x8x16xf32>
    %128 = vector.shape_cast %127 : vector<2x8x16xf32> to vector<16x16xf32>
    %129 = arith.truncf %128 : vector<16x16xf32> to vector<16x16xbf16>
    %130 = vector.extract_strided_slice %10 {offsets = [32, 0], sizes = [16, 64], strides = [1, 1]} : vector<64x64xbf16> to vector<16x64xbf16>
    %cst_49 = arith.constant dense<0.000000e+00> : vector<16x64xf32>
    %131 = tpu.matmul %129, %130, %cst_49 {dimension_numbers = #tpu.dot_dimension_numbers<[1], [0], [0], [1], [0, 0, 1, 1], [], []>} : vector<16x16xbf16>, vector<16x64xbf16>, vector<16x64xf32> -> vector<16x64xf32>
    %132 = arith.addf %107, %131 : vector<16x64xf32>
    %133 = vector.extract_strided_slice %26 {offsets = [0, 0, 48], sizes = [2, 8, 16], strides = [1, 1, 1]} : vector<2x8x64xf32> to vector<2x8x16xf32>
    %134 = arith.truncf %133 : vector<2x8x16xf32> to vector<2x8x16xbf16>
    %135 = vector.extract_strided_slice %28 {offsets = [0, 0, 48], sizes = [2, 8, 16], strides = [1, 1, 1]} : vector<2x8x64xf32> to vector<2x8x16xf32>
    %136 = arith.truncf %135 : vector<2x8x16xf32> to vector<2x8x16xbf16>
    %137 = vector.extract_strided_slice %30 {offsets = [0, 0, 48], sizes = [2, 8, 16], strides = [1, 1, 1]} : vector<2x8x64xf32> to vector<2x8x16xf32>
    %138 = arith.truncf %137 : vector<2x8x16xf32> to vector<2x8x16xbf16>
    "tpu.trace_start"() <{level = 10 : i32, message = "bqd,bkd->bqk"}> : () -> ()
    %cst_50 = arith.constant dense<0.000000e+00> : vector<2x8x8xf32>
    %139 = tpu.matmul %134, %136, %cst_50 {dimension_numbers = #tpu.dot_dimension_numbers<[2], [2], [1], [1], [0, 0, 0, 1, 1, 1], [0], [0]>} : vector<2x8x16xbf16>, vector<2x8x16xbf16>, vector<2x8x8xf32> -> vector<2x8x8xf32>
    "tpu.trace_stop"() : () -> ()
    %140 = arith.addf %139, %56 : vector<2x8x8xf32>
    %cst_51 = arith.constant dense<0xFF800000> : vector<2x8xf32>
    %141 = vector.multi_reduction <maximumf>, %140, %cst_51 [2] : vector<2x8x8xf32> to vector<2x8xf32>
    %142 = vector.shape_cast %141 : vector<2x8xf32> to vector<2x8x1xf32>
    %143 = vector.broadcast %142 : vector<2x8x1xf32> to vector<2x8x8xf32>
    %144 = arith.subf %140, %143 : vector<2x8x8xf32>
    %145 = math.exp %144 : vector<2x8x8xf32>
    %cst_52 = arith.constant dense<0.000000e+00> : vector<2x8xf32>
    %146 = vector.multi_reduction <add>, %145, %cst_52 [2] : vector<2x8x8xf32> to vector<2x8xf32>
    %147 = vector.shape_cast %146 : vector<2x8xf32> to vector<2x8x1xf32>
    %148 = arith.truncf %145 : vector<2x8x8xf32> to vector<2x8x8xbf16>
    "tpu.trace_start"() <{level = 10 : i32, message = "bqk,bkd->bqd"}> : () -> ()
    %cst_53 = arith.constant dense<0.000000e+00> : vector<2x8x16xf32>
    %149 = tpu.matmul %148, %138, %cst_53 {dimension_numbers = #tpu.dot_dimension_numbers<[2], [1], [1], [2], [0, 0, 0, 1, 1, 2], [0], [0]>} : vector<2x8x8xbf16>, vector<2x8x16xbf16>, vector<2x8x16xf32> -> vector<2x8x16xf32>
    "tpu.trace_stop"() : () -> ()
    %150 = tpu.reciprocal %147 {approx = true} : vector<2x8x1xf32> -> vector<2x8x1xf32>
    %151 = vector.broadcast %150 : vector<2x8x1xf32> to vector<2x8x16xf32>
    %152 = arith.mulf %149, %151 : vector<2x8x16xf32>
    %153 = vector.shape_cast %152 : vector<2x8x16xf32> to vector<16x16xf32>
    %154 = arith.truncf %153 : vector<16x16xf32> to vector<16x16xbf16>
    %155 = vector.extract_strided_slice %10 {offsets = [48, 0], sizes = [16, 64], strides = [1, 1]} : vector<64x64xbf16> to vector<16x64xbf16>
    %cst_54 = arith.constant dense<0.000000e+00> : vector<16x64xf32>
    %156 = tpu.matmul %154, %155, %cst_54 {dimension_numbers = #tpu.dot_dimension_numbers<[1], [0], [0], [1], [0, 0, 1, 1], [], []>} : vector<16x16xbf16>, vector<16x64xbf16>, vector<16x64xf32> -> vector<16x64xf32>
    %157 = arith.addf %132, %156 : vector<16x64xf32>
    %158 = vector.broadcast %12 : vector<1x64xf32> to vector<16x64xf32>
    %159 = arith.addf %157, %158 : vector<16x64xf32>
    %160 = arith.addf %4, %159 : vector<16x64xf32>
    %cst_55 = arith.constant dense<0.000000e+00> : vector<16xf32>
    %161 = vector.multi_reduction <add>, %160, %cst_55 [1] : vector<16x64xf32> to vector<16xf32>
    %162 = vector.shape_cast %161 : vector<16xf32> to vector<16x1xf32>
    %cst_56 = arith.constant 6.400000e+01 : f32
    %163 = vector.broadcast %cst_56 : f32 to vector<16x1xf32>
    %164 = arith.divf %162, %163 : vector<16x1xf32>
    %165 = vector.broadcast %164 : vector<16x1xf32> to vector<16x64xf32>
    %166 = arith.subf %160, %165 : vector<16x64xf32>
    %167 = arith.mulf %166, %166 : vector<16x64xf32>
    %cst_57 = arith.constant dense<0.000000e+00> : vector<16xf32>
    %168 = vector.multi_reduction <add>, %167, %cst_57 [1] : vector<16x64xf32> to vector<16xf32>
    %169 = vector.shape_cast %168 : vector<16xf32> to vector<16x1xf32>
    %cst_58 = arith.constant 6.400000e+01 : f32
    %170 = vector.broadcast %cst_58 : f32 to vector<16x1xf32>
    %171 = arith.divf %169, %170 : vector<16x1xf32>
    %172 = vector.broadcast %164 : vector<16x1xf32> to vector<16x64xf32>
    %173 = arith.subf %160, %172 : vector<16x64xf32>
    %cst_59 = arith.constant 9.99999974E-6 : f32
    %174 = vector.broadcast %cst_59 : f32 to vector<16x1xf32>
    %175 = arith.addf %171, %174 : vector<16x1xf32>
    %176 = math.rsqrt %175 : vector<16x1xf32>
    %177 = vector.broadcast %176 : vector<16x1xf32> to vector<16x64xf32>
    %178 = arith.mulf %173, %177 : vector<16x64xf32>
    %c0_60 = arith.constant 0 : index
    %c0_61 = arith.constant 0 : index
    %c0_62 = arith.constant 0 : index
    %179 = vector.load %arg8[%c0_60, %c0_61, %c0_62] : memref<1x1x64xf32, #tpu.memory_space<vmem>>, vector<1x1x64xf32>
    %180 = vector.shape_cast %179 : vector<1x1x64xf32> to vector<1x64xf32>
    %181 = vector.broadcast %180 : vector<1x64xf32> to vector<16x64xf32>
    %182 = arith.mulf %178, %181 : vector<16x64xf32>
    %c0_63 = arith.constant 0 : index
    %c0_64 = arith.constant 0 : index
    %c0_65 = arith.constant 0 : index
    %183 = vector.load %arg9[%c0_63, %c0_64, %c0_65] : memref<1x1x64xf32, #tpu.memory_space<vmem>>, vector<1x1x64xf32>
    %184 = vector.shape_cast %183 : vector<1x1x64xf32> to vector<1x64xf32>
    %185 = vector.broadcast %184 : vector<1x64xf32> to vector<16x64xf32>
    %186 = arith.addf %182, %185 : vector<16x64xf32>
    %187 = arith.truncf %186 : vector<16x64xf32> to vector<16x64xbf16>
    %cst_66 = arith.constant dense<0.000000e+00> : vector<16x2048xf32>
    %188 = tpu.matmul %187, %14, %cst_66 {dimension_numbers = #tpu.dot_dimension_numbers<[1], [0], [0], [1], [0, 0, 1, 1], [], []>} : vector<16x64xbf16>, vector<64x2048xbf16>, vector<16x2048xf32> -> vector<16x2048xf32>
    %189 = vector.broadcast %16 : vector<1x2048xf32> to vector<16x2048xf32>
    %190 = arith.addf %188, %189 : vector<16x2048xf32>
    %cst_67 = arith.constant 0.000000e+00 : f32
    %191 = vector.broadcast %cst_67 : f32 to vector<16x2048xf32>
    %192 = arith.maximumf %190, %191 : vector<16x2048xf32>
    %193 = arith.truncf %192 : vector<16x2048xf32> to vector<16x2048xbf16>
    %cst_68 = arith.constant dense<0.000000e+00> : vector<16x64xf32>
    %194 = tpu.matmul %193, %18, %cst_68 {dimension_numbers = #tpu.dot_dimension_numbers<[1], [0], [0], [1], [0, 0, 1, 1], [], []>} : vector<16x2048xbf16>, vector<2048x64xbf16>, vector<16x64xf32> -> vector<16x64xf32>
    %195 = vector.broadcast %20 : vector<1x64xf32> to vector<16x64xf32>
    %196 = arith.addf %194, %195 : vector<16x64xf32>
    %197 = arith.addf %186, %196 : vector<16x64xf32>
    %cst_69 = arith.constant dense<0.000000e+00> : vector<16xf32>
    %198 = vector.multi_reduction <add>, %197, %cst_69 [1] : vector<16x64xf32> to vector<16xf32>
    %199 = vector.shape_cast %198 : vector<16xf32> to vector<16x1xf32>
    %cst_70 = arith.constant 6.400000e+01 : f32
    %200 = vector.broadcast %cst_70 : f32 to vector<16x1xf32>
    %201 = arith.divf %199, %200 : vector<16x1xf32>
    %202 = vector.broadcast %201 : vector<16x1xf32> to vector<16x64xf32>
    %203 = arith.subf %197, %202 : vector<16x64xf32>
    %204 = arith.mulf %203, %203 : vector<16x64xf32>
    %cst_71 = arith.constant dense<0.000000e+00> : vector<16xf32>
    %205 = vector.multi_reduction <add>, %204, %cst_71 [1] : vector<16x64xf32> to vector<16xf32>
    %206 = vector.shape_cast %205 : vector<16xf32> to vector<16x1xf32>
    %cst_72 = arith.constant 6.400000e+01 : f32
    %207 = vector.broadcast %cst_72 : f32 to vector<16x1xf32>
    %208 = arith.divf %206, %207 : vector<16x1xf32>
    %209 = vector.broadcast %201 : vector<16x1xf32> to vector<16x64xf32>
    %210 = arith.subf %197, %209 : vector<16x64xf32>
    %cst_73 = arith.constant 9.99999974E-6 : f32
    %211 = vector.broadcast %cst_73 : f32 to vector<16x1xf32>
    %212 = arith.addf %208, %211 : vector<16x1xf32>
    %213 = math.rsqrt %212 : vector<16x1xf32>
    %214 = vector.broadcast %213 : vector<16x1xf32> to vector<16x64xf32>
    %215 = arith.mulf %210, %214 : vector<16x64xf32>
    %c0_74 = arith.constant 0 : index
    %c0_75 = arith.constant 0 : index
    %c0_76 = arith.constant 0 : index
    %216 = vector.load %arg14[%c0_74, %c0_75, %c0_76] : memref<1x1x64xf32, #tpu.memory_space<vmem>>, vector<1x1x64xf32>
    %217 = vector.shape_cast %216 : vector<1x1x64xf32> to vector<1x64xf32>
    %218 = vector.broadcast %217 : vector<1x64xf32> to vector<16x64xf32>
    %219 = arith.mulf %215, %218 : vector<16x64xf32>
    %c0_77 = arith.constant 0 : index
    %c0_78 = arith.constant 0 : index
    %c0_79 = arith.constant 0 : index
    %220 = vector.load %arg15[%c0_77, %c0_78, %c0_79] : memref<1x1x64xf32, #tpu.memory_space<vmem>>, vector<1x1x64xf32>
    %221 = vector.shape_cast %220 : vector<1x1x64xf32> to vector<1x64xf32>
    %222 = vector.broadcast %221 : vector<1x64xf32> to vector<16x64xf32>
    %223 = arith.addf %219, %222 : vector<16x64xf32>
    %224 = vector.shape_cast %223 : vector<16x64xf32> to vector<2x8x64xf32>
    %c0_80 = arith.constant 0 : index
    %c0_81 = arith.constant 0 : index
    %c0_82 = arith.constant 0 : index
    %225 = vector.load %arg17[%c0_80, %c0_81, %c0_82] : memref<2x8x64xf32, #tpu.memory_space<vmem>>, vector<2x8x64xf32>
    tpu.vector_store %arg17[%c0_80, %c0_81, %c0_82], %224 {strides = array<i32>} : memref<2x8x64xf32, #tpu.memory_space<vmem>>, vector<2x8x64xf32>,
    %c1_i32_83 = arith.constant 1 : i32
    %226 = arith.cmpi eq, %arg1, %c1_i32_83 : i32
    %227 = arith.extui %226 : i1 to i32
    %c0_i32_84 = arith.constant 0 : i32
    %228 = arith.cmpi ne, %227, %c0_i32_84 : i32
    scf.if %228 {
      %c0_85 = arith.constant 0 : index
      %c0_86 = arith.constant 0 : index
      %c0_87 = arith.constant 0 : index
      %229 = vector.load %arg16[%c0_85, %c0_86, %c0_87] : memref<2x8x64xf32, #tpu.memory_space<vmem>>, vector<2x8x64xf32>
      tpu.vector_store %arg16[%c0_85, %c0_86, %c0_87], %224 {strides = array<i32>} : memref<2x8x64xf32, #tpu.memory_space<vmem>>, vector<2x8x64xf32>,
    } else {
    }
    return
  }
  func.func @transform_0(%arg0: i32, %arg1: i32, %arg2: memref<2xi32, #tpu.memory_space<smem>>) -> (i32, i32, i32) {
    %c0_i32 = arith.constant 0 : i32
    %c0_i32_0 = arith.constant 0 : i32
    %c0_i32_1 = arith.constant 0 : i32
    return %arg0, %c0_i32, %c0_i32_0 : i32, i32, i32
  }
  func.func @transform_1(%arg0: i32, %arg1: i32, %arg2: memref<2xi32, #tpu.memory_space<smem>>) -> (i32, i32, i32) {
    %c0_i32 = arith.constant 0 : i32
    %c0_i32_0 = arith.constant 0 : i32
    %c0_i32_1 = arith.constant 0 : i32
    return %arg1, %c0_i32, %c0_i32_0 : i32, i32, i32
  }
  func.func @transform_2(%arg0: i32, %arg1: i32, %arg2: memref<2xi32, #tpu.memory_space<smem>>) -> (i32, i32, i32) {
    %c0_i32 = arith.constant 0 : i32
    %c0_i32_0 = arith.constant 0 : i32
    %c0_i32_1 = arith.constant 0 : i32
    return %arg1, %c0_i32, %c0_i32_0 : i32, i32, i32
  }
  func.func @transform_3(%arg0: i32, %arg1: i32, %arg2: memref<2xi32, #tpu.memory_space<smem>>) -> (i32, i32, i32) {
    %c0_i32 = arith.constant 0 : i32
    %c0_i32_0 = arith.constant 0 : i32
    %c0_i32_1 = arith.constant 0 : i32
    return %arg1, %c0_i32, %c0_i32_0 : i32, i32, i32
  }
  func.func @transform_4(%arg0: i32, %arg1: i32, %arg2: memref<2xi32, #tpu.memory_space<smem>>) -> (i32, i32, i32) {
    %c0_i32 = arith.constant 0 : i32
    %c0_i32_0 = arith.constant 0 : i32
    %c0_i32_1 = arith.constant 0 : i32
    return %arg1, %c0_i32, %c0_i32_0 : i32, i32, i32
  }
  func.func @transform_5(%arg0: i32, %arg1: i32, %arg2: memref<2xi32, #tpu.memory_space<smem>>) -> (i32, i32, i32) {
    %c0_i32 = arith.constant 0 : i32
    %c0_i32_0 = arith.constant 0 : i32
    %c0_i32_1 = arith.constant 0 : i32
    return %arg1, %c0_i32, %c0_i32_0 : i32, i32, i32
  }
  func.func @transform_6(%arg0: i32, %arg1: i32, %arg2: memref<2xi32, #tpu.memory_space<smem>>) -> (i32, i32, i32) {
    %c0_i32 = arith.constant 0 : i32
    %c0_i32_0 = arith.constant 0 : i32
    %c0_i32_1 = arith.constant 0 : i32
    return %arg1, %c0_i32, %c0_i32_0 : i32, i32, i32
  }
  func.func @transform_7(%arg0: i32, %arg1: i32, %arg2: memref<2xi32, #tpu.memory_space<smem>>) -> (i32, i32, i32) {
    %c0_i32 = arith.constant 0 : i32
    %c0_i32_0 = arith.constant 0 : i32
    %c0_i32_1 = arith.constant 0 : i32
    return %arg1, %c0_i32, %c0_i32_0 : i32, i32, i32
  }
  func.func @transform_8(%arg0: i32, %arg1: i32, %arg2: memref<2xi32, #tpu.memory_space<smem>>) -> (i32, i32, i32) {
    %c0_i32 = arith.constant 0 : i32
    %c0_i32_0 = arith.constant 0 : i32
    %c0_i32_1 = arith.constant 0 : i32
    return %arg1, %c0_i32, %c0_i32_0 : i32, i32, i32
  }
  func.func @transform_9(%arg0: i32, %arg1: i32, %arg2: memref<2xi32, #tpu.memory_space<smem>>) -> (i32, i32, i32) {
    %c0_i32 = arith.constant 0 : i32
    %c0_i32_0 = arith.constant 0 : i32
    %c0_i32_1 = arith.constant 0 : i32
    return %arg1, %c0_i32, %c0_i32_0 : i32, i32, i32
  }
  func.func @transform_10(%arg0: i32, %arg1: i32, %arg2: memref<2xi32, #tpu.memory_space<smem>>) -> (i32, i32, i32) {
    %c0_i32 = arith.constant 0 : i32
    %c0_i32_0 = arith.constant 0 : i32
    %c0_i32_1 = arith.constant 0 : i32
    return %arg1, %c0_i32, %c0_i32_0 : i32, i32, i32
  }
  func.func @transform_11(%arg0: i32, %arg1: i32, %arg2: memref<2xi32, #tpu.memory_space<smem>>) -> (i32, i32, i32) {
    %c0_i32 = arith.constant 0 : i32
    %c0_i32_0 = arith.constant 0 : i32
    %c0_i32_1 = arith.constant 0 : i32
    return %arg1, %c0_i32, %c0_i32_0 : i32, i32, i32
  }
  func.func @transform_12(%arg0: i32, %arg1: i32, %arg2: memref<2xi32, #tpu.memory_space<smem>>) -> (i32, i32, i32) {
    %c0_i32 = arith.constant 0 : i32
    %c0_i32_0 = arith.constant 0 : i32
    %c0_i32_1 = arith.constant 0 : i32
    return %arg1, %c0_i32, %c0_i32_0 : i32, i32, i32
  }
  func.func @transform_13(%arg0: i32, %arg1: i32, %arg2: memref<2xi32, #tpu.memory_space<smem>>) -> (i32, i32, i32) {
    %c0_i32 = arith.constant 0 : i32
    %c0_i32_0 = arith.constant 0 : i32
    %c0_i32_1 = arith.constant 0 : i32
    return %arg0, %c0_i32, %c0_i32_0 : i32, i32, i32
  }
}

</mosaic_0001>

<llo_original>
// kernel: tpu_custom_call.1
$region0: #{tpu_custom_call.1}
  #allocation0 [shape = 'u32[]', space=smem, size = 0x4, offset = 0x4, fixed_abs, tag = 'smem constant byte address 0x4 - core index']
  #allocation1 [shape = 'u32[144,128]{1,0:T(1,128)}', space=vmem, size = 0x12000, scoped, tag = 'internal scratch']
  #allocation2 [shape = 'f32[2,8,64]{2,1,0:T(8,128)}', space=vmem, size = 0x2000, scoped, tag = 'scratch operand']
  #allocation3 [shape = 's32[1]{0}', space=sflag, size = 0x4, scoped, tag = 'scoped memory for tpu_custom_call.1']
  #allocation4 [shape = 'u8[512]{0}', space=smem, size = 0x200, scoped, tag = 'prefetched SMEM operand 0']
  %s0 = inlined_call_operand.hbm [shape: s32[2], index: 0, kind: input, shape index: {}]
  %s1 = inlined_call_operand.hbm [shape: f32[2,8,64], index: 1, kind: input, shape index: {}]
  %s2 = inlined_call_operand.hbm [shape: bf16[2,64,192], index: 2, kind: input, shape index: {}]
  %s3 = inlined_call_operand.hbm [shape: f32[2,1,192], index: 3, kind: input, shape index: {}]
  %s4 = inlined_call_operand.hbm [shape: bf16[2,64,64], index: 4, kind: input, shape index: {}]
  %s5 = inlined_call_operand.hbm [shape: f32[2,1,64], index: 5, kind: input, shape index: {}]
  %s6 = inlined_call_operand.hbm [shape: f32[2,1,64], index: 6, kind: input, shape index: {}]
  %s7 = inlined_call_operand.hbm [shape: f32[2,1,64], index: 7, kind: input, shape index: {}]
  %s8 = inlined_call_operand.hbm [shape: bf16[2,64,2048], index: 8, kind: input, shape index: {}]
  %s9 = inlined_call_operand.hbm [shape: f32[2,1,2048], index: 9, kind: input, shape index: {}]
  %s10 = inlined_call_operand.hbm [shape: bf16[2,2048,64], index: 10, kind: input, shape index: {}]
  %s11 = inlined_call_operand.hbm [shape: f32[2,1,64], index: 11, kind: input, shape index: {}]
  %s12 = inlined_call_operand.hbm [shape: f32[2,1,64], index: 12, kind: input, shape index: {}]
  %s13 = inlined_call_operand.hbm [shape: f32[2,1,64], index: 13, kind: input, shape index: {}]
  %s14 = inlined_call_operand.hbm [shape: f32[2,8,64], index: 14, kind: output, shape index: {}]
  %s15 = sld [smem:[#allocation0]]
  $region145: #{tpu_custom_call.1} parent=0
    _
  %s17 = ssub.s32 1, %s15
  %s18 = scalar_select 0, %s17, %s15
  %20 = dma.hbm_to_smem %s0, 16, [#allocation4], [#allocation3]
  %21 = dma.done [#allocation3], 16
  %22 = sfence
  $region1: #{tpu_custom_call.1} parent=0
    #allocation5 [shape = 'u8[8192]{0}', space=vmem, size = 0x2000, scoped, tag = 'input window, operand 1, single buffered']
    #allocation6 [shape = 's32[2]{0}', space=sflag, size = 0x8, scoped, tag = 'scoped memory for tpu_custom_call.1']
    #allocation7 [shape = 's32[2]{0}', space=sflag, size = 0x8, scoped, tag = 'scoped memory for tpu_custom_call.1']
    #allocation8 [shape = 'u8[65536]{0}', space=vmem, size = 0x10000, scoped, tag = 'input window, operand 2']
    #allocation9 [shape = 's32[2]{0}', space=sflag, size = 0x8, scoped, tag = 'scoped memory for tpu_custom_call.1']
    #allocation10 [shape = 'u8[2048]{0}', space=vmem, size = 0x800, scoped, tag = 'input window, operand 3']
    #allocation11 [shape = 'u8[32768]{0}', space=vmem, size = 0x8000, scoped, tag = 'input window, operand 4']
    #allocation12 [shape = 's32[2]{0}', space=sflag, size = 0x8, scoped, tag = 'scoped memory for tpu_custom_call.1']
    #allocation13 [shape = 'u8[1024]{0}', space=vmem, size = 0x400, scoped, tag = 'input window, operand 5']
    #allocation14 [shape = 'u8[1024]{0}', space=vmem, size = 0x400, scoped, tag = 'input window, operand 6']
    #allocation15 [shape = 's32[2]{0}', space=sflag, size = 0x8, scoped, tag = 'scoped memory for tpu_custom_call.1']
    #allocation16 [shape = 'u8[1024]{0}', space=vmem, size = 0x400, scoped, tag = 'input window, operand 7']
    #allocation17 [shape = 'u8[524288]{0}', space=vmem, size = 0x80000, scoped, tag = 'input window, operand 8']
    #allocation18 [shape = 's32[2]{0}', space=sflag, size = 0x8, scoped, tag = 'scoped memory for tpu_custom_call.1']
    #allocation19 [shape = 'u8[16384]{0}', space=vmem, size = 0x4000, scoped, tag = 'input window, operand 9']
    #allocation20 [shape = 'u8[1048576]{0}', space=vmem, size = 0x100000, scoped, tag = 'input window, operand 10']
    #allocation21 [shape = 's32[2]{0}', space=sflag, size = 0x8, scoped, tag = 'scoped memory for tpu_custom_call.1']
    #allocation22 [shape = 'u8[1024]{0}', space=vmem, size = 0x400, scoped, tag = 'input window, operand 11']
    #allocation23 [shape = 'u8[1024]{0}', space=vmem, size = 0x400, scoped, tag = 'input window, operand 12']
    #allocation24 [shape = 's32[2]{0}', space=sflag, size = 0x8, scoped, tag = 'scoped memory for tpu_custom_call.1']
    #allocation25 [shape = 'u8[1024]{0}', space=vmem, size = 0x400, scoped, tag = 'input window, operand 13']
    #allocation26 [shape = 'u8[8192]{0}', space=vmem, size = 0x2000, scoped, tag = 'output window, operand 0, single buffered']
    %23 = vsyncpa [#allocation6], 0
    %24 = vsyncpa [#allocation9], 0
    %s25 = scalar_lea.sflag [#allocation9], 1
    %26 = vsyncpa %s25, 0
    %27 = vsyncpa [#allocation12], 0
    %s28 = scalar_lea.sflag [#allocation12], 1
    %29 = vsyncpa %s28, 0
    %30 = vsyncpa [#allocation15], 0
    %s31 = scalar_lea.sflag [#allocation15], 1
    %32 = vsyncpa %s31, 0
    %33 = vsyncpa [#allocation18], 0
    %s34 = scalar_lea.sflag [#allocation18], 1
    %35 = vsyncpa %s34, 0
    %36 = vsyncpa [#allocation21], 0
    %s37 = scalar_lea.sflag [#allocation21], 1
    %38 = vsyncpa %s37, 0
    %39 = vsyncpa [#allocation24], 0
    %s40 = scalar_lea.sflag [#allocation24], 1
    %41 = vsyncpa %s40, 0
    %42 = vsyncpa [#allocation7], 0
    loop: start=0, step=1, limit=4
    $region2: #{tpu_custom_call.1} parent=1 // loop_pre_header
      _
    $region3: #{tpu_custom_call.1} parent=1 // loop_header
      %s44 = sphi 0, %s48
      %p45 = scmp.ge.s32.totalorder %s44, 4
      %s51 = sphi 0, %s63
      %s52 = sphi 0, %s59
      %s53 = sphi 0, %s51
      %s54 = sphi 0, %s52
      %s55 = sphi 0, %s53
      %s56 = sphi 0, %s54
      %s66 = sphi 0, %s68
      %s69 = sphi 0, %s66
      %s70 = sphi 0, %s69
      %s86 = sphi 0, %s70
      %s92 = sphi 0, %s94
      %s95 = sphi 0, %s92
      %s96 = sphi 0, %s95
      %s112 = sphi 0, %s96
      %s118 = sphi 0, %s120
      %s121 = sphi 0, %s118
      %s122 = sphi 0, %s121
      %s138 = sphi 0, %s122
      %s144 = sphi 0, %s146
      %s147 = sphi 0, %s144
      %s148 = sphi 0, %s147
      %s164 = sphi 0, %s148
      %s170 = sphi 0, %s172
      %s173 = sphi 0, %s170
      %s174 = sphi 0, %s173
      %s190 = sphi 0, %s174
      %s196 = sphi 0, %s198
      %s199 = sphi 0, %s196
      %s200 = sphi 0, %s199
      %s216 = sphi 0, %s200
      %s222 = sphi 0, %s224
      %s225 = sphi 0, %s222
      %s226 = sphi 0, %s225
      %s242 = sphi 0, %s226
      %s248 = sphi 0, %s250
      %s251 = sphi 0, %s248
      %s252 = sphi 0, %s251
      %s268 = sphi 0, %s252
      %s274 = sphi 0, %s276
      %s277 = sphi 0, %s274
      %s278 = sphi 0, %s277
      %s294 = sphi 0, %s278
      %s300 = sphi 0, %s302
      %s303 = sphi 0, %s300
      %s304 = sphi 0, %s303
      %s320 = sphi 0, %s304
      %s326 = sphi 0, %s328
      %s329 = sphi 0, %s326
      %s330 = sphi 0, %s329
      %s346 = sphi 0, %s330
      %s352 = sphi 0, %s354
      %s355 = sphi 0, %s352
      %s356 = sphi 0, %s355
      %s372 = sphi 0, %s356
      %s378 = sphi 0, %s380
      %s381 = sphi 0, %s378
      %s382 = sphi 0, %s381
      %s398 = sphi 0, %s382
      %s404 = sphi 0, %s406
      %s407 = sphi 0, %s404
      %s408 = sphi 0, %s407
      %s424 = sphi 0, %s408
    $region4: #{tpu_custom_call.1} parent=1 // loop_header_branch
      %47 = sbr.rel (%p45) target = $region8
    $region5: #{tpu_custom_call.1} parent=1 // loop_body
      %s49 = ssub.s32 %s44, 1
      %s50 = ssub.s32 %s44, 2
      %s57 = sadd.s32 1, %s52
      %p58 = scmp.ge.s32.totalorder %s57, 2
      %s59 = scalar_select %p58, 0, %s57
      %s60 = sadd.s32 1, %s51
      %s61 = scalar_select %p58, %s60, %s51
      %p62 = scmp.ge.s32.totalorder %s61, 1
      %s63 = scalar_select %p62, 0, %s61
      %s64 = ssub.s32 %s51, %s63
      %p65 = scmp.eq.s32.totalorder %s64, 0
      %s67 = sadd.s32 %s66, 1
      %s68 = scalar_select %p65, %s66, %s67
      %p71 = pneg %p65
      %p72 = scmp.eq.s32.totalorder %s44, 1
      %p73 = por %p71, %p72
      %p74 = scmp.ne.s32.totalorder %s66, %s69
      %p75 = scmp.eq.s32.totalorder %s44, 0
      %p76 = por %p74, %p75
      %p77 = scmp.ne.s32.totalorder %s66, %s69
      %p78 = scmp.eq.s32.totalorder %s49, 1
      %p79 = por %p77, %p78
      %p80 = scmp.ne.s32.totalorder %s69, %s70
      %p81 = scmp.eq.s32.totalorder %s49, 0
      %p82 = por %p80, %p81
      %p83 = scmp.ne.s32.totalorder %s69, %s70
      %p84 = scmp.eq.s32.totalorder %s50, 1
      %p85 = por %p83, %p84
      %p87 = scmp.ne.s32.totalorder %s70, %s86
      %p88 = scmp.eq.s32.totalorder %s50, 0
      %p89 = por %p87, %p88
      %s90 = ssub.s32 %s52, %s59
      %p91 = scmp.eq.s32.totalorder %s90, 0
      %s93 = sadd.s32 %s92, 1
      %s94 = scalar_select %p91, %s92, %s93
      %p97 = pneg %p91
      %p98 = scmp.eq.s32.totalorder %s44, 1
      %p99 = por %p97, %p98
      %p100 = scmp.ne.s32.totalorder %s92, %s95
      %p101 = scmp.eq.s32.totalorder %s44, 0
      %p102 = por %p100, %p101
      %p103 = scmp.ne.s32.totalorder %s92, %s95
      %p104 = scmp.eq.s32.totalorder %s49, 1
      %p105 = por %p103, %p104
      %p106 = scmp.ne.s32.totalorder %s95, %s96
      %p107 = scmp.eq.s32.totalorder %s49, 0
      %p108 = por %p106, %p107
      %p109 = scmp.ne.s32.totalorder %s95, %s96
      %p110 = scmp.eq.s32.totalorder %s50, 1
      %p111 = por %p109, %p110
      %p113 = scmp.ne.s32.totalorder %s96, %s112
      %p114 = scmp.eq.s32.totalorder %s50, 0
      %p115 = por %p113, %p114
      %s116 = ssub.s32 %s52, %s59
      %p117 = scmp.eq.s32.totalorder %s116, 0
      %s119 = sadd.s32 %s118, 1
      %s120 = scalar_select %p117, %s118, %s119
      %p123 = pneg %p117
      %p124 = scmp.eq.s32.totalorder %s44, 1
      %p125 = por %p123, %p124
      %p126 = scmp.ne.s32.totalorder %s118, %s121
      %p127 = scmp.eq.s32.totalorder %s44, 0
      %p128 = por %p126, %p127
      %p129 = scmp.ne.s32.totalorder %s118, %s121
      %p130 = scmp.eq.s32.totalorder %s49, 1
      %p131 = por %p129, %p130
      %p132 = scmp.ne.s32.totalorder %s121, %s122
      %p133 = scmp.eq.s32.totalorder %s49, 0
      %p134 = por %p132, %p133
      %p135 = scmp.ne.s32.totalorder %s121, %s122
      %p136 = scmp.eq.s32.totalorder %s50, 1
      %p137 = por %p135, %p136
      %p139 = scmp.ne.s32.totalorder %s122, %s138
      %p140 = scmp.eq.s32.totalorder %s50, 0
      %p141 = por %p139, %p140
      %s142 = ssub.s32 %s52, %s59
      %p143 = scmp.eq.s32.totalorder %s142, 0
      %s145 = sadd.s32 %s144, 1
      %s146 = scalar_select %p143, %s144, %s145
      %p149 = pneg %p143
      %p150 = scmp.eq.s32.totalorder %s44, 1
      %p151 = por %p149, %p150
      %p152 = scmp.ne.s32.totalorder %s144, %s147
      %p153 = scmp.eq.s32.totalorder %s44, 0
      %p154 = por %p152, %p153
      %p155 = scmp.ne.s32.totalorder %s144, %s147
      %p156 = scmp.eq.s32.totalorder %s49, 1
      %p157 = por %p155, %p156
      %p158 = scmp.ne.s32.totalorder %s147, %s148
      %p159 = scmp.eq.s32.totalorder %s49, 0
      %p160 = por %p158, %p159
      %p161 = scmp.ne.s32.totalorder %s147, %s148
      %p162 = scmp.eq.s32.totalorder %s50, 1
      %p163 = por %p161, %p162
      %p165 = scmp.ne.s32.totalorder %s148, %s164
      %p166 = scmp.eq.s32.totalorder %s50, 0
      %p167 = por %p165, %p166
      %s168 = ssub.s32 %s52, %s59
      %p169 = scmp.eq.s32.totalorder %s168, 0
      %s171 = sadd.s32 %s170, 1
      %s172 = scalar_select %p169, %s170, %s171
      %p175 = pneg %p169
      %p176 = scmp.eq.s32.totalorder %s44, 1
      %p177 = por %p175, %p176
      %p178 = scmp.ne.s32.totalorder %s170, %s173
      %p179 = scmp.eq.s32.totalorder %s44, 0
      %p180 = por %p178, %p179
      %p181 = scmp.ne.s32.totalorder %s170, %s173
      %p182 = scmp.eq.s32.totalorder %s49, 1
      %p183 = por %p181, %p182
      %p184 = scmp.ne.s32.totalorder %s173, %s174
      %p185 = scmp.eq.s32.totalorder %s49, 0
      %p186 = por %p184, %p185
      %p187 = scmp.ne.s32.totalorder %s173, %s174
      %p188 = scmp.eq.s32.totalorder %s50, 1
      %p189 = por %p187, %p188
      %p191 = scmp.ne.s32.totalorder %s174, %s190
      %p192 = scmp.eq.s32.totalorder %s50, 0
      %p193 = por %p191, %p192
      %s194 = ssub.s32 %s52, %s59
      %p195 = scmp.eq.s32.totalorder %s194, 0
      %s197 = sadd.s32 %s196, 1
      %s198 = scalar_select %p195, %s196, %s197
      %p201 = pneg %p195
      %p202 = scmp.eq.s32.totalorder %s44, 1
      %p203 = por %p201, %p202
      %p204 = scmp.ne.s32.totalorder %s196, %s199
      %p205 = scmp.eq.s32.totalorder %s44, 0
      %p206 = por %p204, %p205
      %p207 = scmp.ne.s32.totalorder %s196, %s199
      %p208 = scmp.eq.s32.totalorder %s49, 1
      %p209 = por %p207, %p208
      %p210 = scmp.ne.s32.totalorder %s199, %s200
      %p211 = scmp.eq.s32.totalorder %s49, 0
      %p212 = por %p210, %p211
      %p213 = scmp.ne.s32.totalorder %s199, %s200
      %p214 = scmp.eq.s32.totalorder %s50, 1
      %p215 = por %p213, %p214
      %p217 = scmp.ne.s32.totalorder %s200, %s216
      %p218 = scmp.eq.s32.totalorder %s50, 0
      %p219 = por %p217, %p218
      %s220 = ssub.s32 %s52, %s59
      %p221 = scmp.eq.s32.totalorder %s220, 0
      %s223 = sadd.s32 %s222, 1
      %s224 = scalar_select %p221, %s222, %s223
      %p227 = pneg %p221
      %p228 = scmp.eq.s32.totalorder %s44, 1
      %p229 = por %p227, %p228
      %p230 = scmp.ne.s32.totalorder %s222, %s225
      %p231 = scmp.eq.s32.totalorder %s44, 0
      %p232 = por %p230, %p231
      %p233 = scmp.ne.s32.totalorder %s222, %s225
      %p234 = scmp.eq.s32.totalorder %s49, 1
      %p235 = por %p233, %p234
      %p236 = scmp.ne.s32.totalorder %s225, %s226
      %p237 = scmp.eq.s32.totalorder %s49, 0
      %p238 = por %p236, %p237
      %p239 = scmp.ne.s32.totalorder %s225, %s226
      %p240 = scmp.eq.s32.totalorder %s50, 1
      %p241 = por %p239, %p240
      %p243 = scmp.ne.s32.totalorder %s226, %s242
      %p244 = scmp.eq.s32.totalorder %s50, 0
      %p245 = por %p243, %p244
      %s246 = ssub.s32 %s52, %s59
      %p247 = scmp.eq.s32.totalorder %s246, 0
      %s249 = sadd.s32 %s248, 1
      %s250 = scalar_select %p247, %s248, %s249
      %p253 = pneg %p247
      %p254 = scmp.eq.s32.totalorder %s44, 1
      %p255 = por %p253, %p254
      %p256 = scmp.ne.s32.totalorder %s248, %s251
      %p257 = scmp.eq.s32.totalorder %s44, 0
      %p258 = por %p256, %p257
      %p259 = scmp.ne.s32.totalorder %s248, %s251
      %p260 = scmp.eq.s32.totalorder %s49, 1
      %p261 = por %p259, %p260
      %p262 = scmp.ne.s32.totalorder %s251, %s252
      %p263 = scmp.eq.s32.totalorder %s49, 0
      %p264 = por %p262, %p263
      %p265 = scmp.ne.s32.totalorder %s251, %s252
      %p266 = scmp.eq.s32.totalorder %s50, 1
      %p267 = por %p265, %p266
      %p269 = scmp.ne.s32.totalorder %s252, %s268
      %p270 = scmp.eq.s32.totalorder %s50, 0
      %p271 = por %p269, %p270
      %s272 = ssub.s32 %s52, %s59
      %p273 = scmp.eq.s32.totalorder %s272, 0
      %s275 = sadd.s32 %s274, 1
      %s276 = scalar_select %p273, %s274, %s275
      %p279 = pneg %p273
      %p280 = scmp.eq.s32.totalorder %s44, 1
      %p281 = por %p279, %p280
      %p282 = scmp.ne.s32.totalorder %s274, %s277
      %p283 = scmp.eq.s32.totalorder %s44, 0
      %p284 = por %p282, %p283
      %p285 = scmp.ne.s32.totalorder %s274, %s277
      %p286 = scmp.eq.s32.totalorder %s49, 1
      %p287 = por %p285, %p286
      %p288 = scmp.ne.s32.totalorder %s277, %s278
      %p289 = scmp.eq.s32.totalorder %s49, 0
      %p290 = por %p288, %p289
      %p291 = scmp.ne.s32.totalorder %s277, %s278
      %p292 = scmp.eq.s32.totalorder %s50, 1
      %p293 = por %p291, %p292
      %p295 = scmp.ne.s32.totalorder %s278, %s294
      %p296 = scmp.eq.s32.totalorder %s50, 0
      %p297 = por %p295, %p296
      %s298 = ssub.s32 %s52, %s59
      %p299 = scmp.eq.s32.totalorder %s298, 0
      %s301 = sadd.s32 %s300, 1
      %s302 = scalar_select %p299, %s300, %s301
      %p305 = pneg %p299
      %p306 = scmp.eq.s32.totalorder %s44, 1
      %p307 = por %p305, %p306
      %p308 = scmp.ne.s32.totalorder %s300, %s303
      %p309 = scmp.eq.s32.totalorder %s44, 0
      %p310 = por %p308, %p309
      %p311 = scmp.ne.s32.totalorder %s300, %s303
      %p312 = scmp.eq.s32.totalorder %s49, 1
      %p313 = por %p311, %p312
      %p314 = scmp.ne.s32.totalorder %s303, %s304
      %p315 = scmp.eq.s32.totalorder %s49, 0
      %p316 = por %p314, %p315
      %p317 = scmp.ne.s32.totalorder %s303, %s304
      %p318 = scmp.eq.s32.totalorder %s50, 1
      %p319 = por %p317, %p318
      %p321 = scmp.ne.s32.totalorder %s304, %s320
      %p322 = scmp.eq.s32.totalorder %s50, 0
      %p323 = por %p321, %p322
      %s324 = ssub.s32 %s52, %s59
      %p325 = scmp.eq.s32.totalorder %s324, 0
      %s327 = sadd.s32 %s326, 1
      %s328 = scalar_select %p325, %s326, %s327
      %p331 = pneg %p325
      %p332 = scmp.eq.s32.totalorder %s44, 1
      %p333 = por %p331, %p332
      %p334 = scmp.ne.s32.totalorder %s326, %s329
      %p335 = scmp.eq.s32.totalorder %s44, 0
      %p336 = por %p334, %p335
      %p337 = scmp.ne.s32.totalorder %s326, %s329
      %p338 = scmp.eq.s32.totalorder %s49, 1
      %p339 = por %p337, %p338
      %p340 = scmp.ne.s32.totalorder %s329, %s330
      %p341 = scmp.eq.s32.totalorder %s49, 0
      %p342 = por %p340, %p341
      %p343 = scmp.ne.s32.totalorder %s329, %s330
      %p344 = scmp.eq.s32.totalorder %s50, 1
      %p345 = por %p343, %p344
      %p347 = scmp.ne.s32.totalorder %s330, %s346
      %p348 = scmp.eq.s32.totalorder %s50, 0
      %p349 = por %p347, %p348
      %s350 = ssub.s32 %s52, %s59
      %p351 = scmp.eq.s32.totalorder %s350, 0
      %s353 = sadd.s32 %s352, 1
      %s354 = scalar_select %p351, %s352, %s353
      %p357 = pneg %p351
      %p358 = scmp.eq.s32.totalorder %s44, 1
      %p359 = por %p357, %p358
      %p360 = scmp.ne.s32.totalorder %s352, %s355
      %p361 = scmp.eq.s32.totalorder %s44, 0
      %p362 = por %p360, %p361
      %p363 = scmp.ne.s32.totalorder %s352, %s355
      %p364 = scmp.eq.s32.totalorder %s49, 1
      %p365 = por %p363, %p364
      %p366 = scmp.ne.s32.totalorder %s355, %s356
      %p367 = scmp.eq.s32.totalorder %s49, 0
      %p368 = por %p366, %p367
      %p369 = scmp.ne.s32.totalorder %s355, %s356
      %p370 = scmp.eq.s32.totalorder %s50, 1
      %p371 = por %p369, %p370
      %p373 = scmp.ne.s32.totalorder %s356, %s372
      %p374 = scmp.eq.s32.totalorder %s50, 0
      %p375 = por %p373, %p374
      %s376 = ssub.s32 %s52, %s59
      %p377 = scmp.eq.s32.totalorder %s376, 0
      %s379 = sadd.s32 %s378, 1
      %s380 = scalar_select %p377, %s378, %s379
      %p383 = pneg %p377
      %p384 = scmp.eq.s32.totalorder %s44, 1
      %p385 = por %p383, %p384
      %p386 = scmp.ne.s32.totalorder %s378, %s381
      %p387 = scmp.eq.s32.totalorder %s44, 0
      %p388 = por %p386, %p387
      %p389 = scmp.ne.s32.totalorder %s378, %s381
      %p390 = scmp.eq.s32.totalorder %s49, 1
      %p391 = por %p389, %p390
      %p392 = scmp.ne.s32.totalorder %s381, %s382
      %p393 = scmp.eq.s32.totalorder %s49, 0
      %p394 = por %p392, %p393
      %p395 = scmp.ne.s32.totalorder %s381, %s382
      %p396 = scmp.eq.s32.totalorder %s50, 1
      %p397 = por %p395, %p396
      %p399 = scmp.ne.s32.totalorder %s382, %s398
      %p400 = scmp.eq.s32.totalorder %s50, 0
      %p401 = por %p399, %p400
      %s402 = ssub.s32 %s51, %s63
      %p403 = scmp.eq.s32.totalorder %s402, 0
      %s405 = sadd.s32 %s404, 1
      %s406 = scalar_select %p403, %s404, %s405
      %p409 = pneg %p403
      %p410 = scmp.eq.s32.totalorder %s44, 1
      %p411 = por %p409, %p410
      %p412 = scmp.ne.s32.totalorder %s404, %s407
      %p413 = scmp.eq.s32.totalorder %s44, 0
      %p414 = por %p412, %p413
      %p415 = scmp.ne.s32.totalorder %s404, %s407
      %p416 = scmp.eq.s32.totalorder %s49, 1
      %p417 = por %p415, %p416
      %p418 = scmp.ne.s32.totalorder %s407, %s408
      %p419 = scmp.eq.s32.totalorder %s49, 0
      %p420 = por %p418, %p419
      %p421 = scmp.ne.s32.totalorder %s407, %s408
      %p422 = scmp.eq.s32.totalorder %s50, 1
      %p423 = por %p421, %p422
      %p425 = scmp.ne.s32.totalorder %s408, %s424
      %p426 = scmp.eq.s32.totalorder %s50, 0
      %p427 = por %p425, %p426
      %p428 = scmp.le.s32.totalorder 1, %s44
      %p429 = scmp.lt.s32.totalorder %s44, 3
      %p430 = pnand %p428, %p429
      %p431 = pneg %p430
      // Predicated region
      $region9: #{tpu_custom_call.1} parent=5 // pred_check
        _
      $region10: #{tpu_custom_call.1} parent=5 // pred_check_branch
        %433 = sbr.rel (%p430) target = $region12
      $region11: #{tpu_custom_call.1} parent=5 // pred_region
        %s434 = ssub.s32 %s44, 1
        // Predicated region
        $region13: #{tpu_custom_call.1} parent=11 // pred_check
          %p435 = pneg %p82
        $region14: #{tpu_custom_call.1} parent=11 // pred_check_branch
          %437 = sbr.rel (%p435) target = $region16
        $region15: #{tpu_custom_call.1} parent=11 // pred_region
          %s438 = smul.u32 2, %s53
          %s440 = ssub.s32 256, 256
          %441 = vsyncadd [#allocation6], %s440
          %s442 = smul.addr %s438, 128
          %s443 = scalar_lea.hbm %s1, %s442
          %s444 = sshll.u32 [#allocation5], 4
          %s445 = int_to_ptr.vmem [resolvable:$true] %s444
          %450 = dma.hbm_to_vmem [thread:$0]  %s443, 256, %s445, [#allocation6], 128, 128, 8
        $region16: #{tpu_custom_call.1} parent=11 // pred_fallthru
          _
      $region12: #{tpu_custom_call.1} parent=5 // pred_fallthru
        _
      %p451 = scmp.lt.s32.totalorder %s44, 2
      // Predicated region
      $region17: #{tpu_custom_call.1} parent=5 // pred_check
        %p452 = pneg %p451
      $region18: #{tpu_custom_call.1} parent=5 // pred_check_branch
        %454 = sbr.rel (%p452) target = $region20
      $region19: #{tpu_custom_call.1} parent=5 // pred_region
        // Predicated region
        $region21: #{tpu_custom_call.1} parent=19 // pred_check
          %p455 = pneg %p102
        $region22: #{tpu_custom_call.1} parent=19 // pred_check_branch
          %457 = sbr.rel (%p455) target = $region24
        $region23: #{tpu_custom_call.1} parent=19 // pred_region
          %s458 = sand.u32 %s44, 1
          %s459 = scalar_lea.sflag [#allocation9], %s458
          %s460 = sand.u32 %s92, 1
          %s461 = smul.addr %s460, 64
          %s462 = scalar_lea.vmem [#allocation8], %s461
          %s464 = ssub.s32 1024, 1024
          %465 = vsyncadd %s459, %s464
          %s466 = smul.addr %s52, 16
          %s467 = smul.addr %s466, 64
          %s468 = scalar_lea.hbm %s2, %s467
          %s469 = sshll.u32 %s462, 4
          %s470 = int_to_ptr.vmem [resolvable:$true] %s469
          %475 = dma.hbm_to_vmem [thread:$0]  %s468, 1024, %s470, %s459, 128, 128, 8
        $region24: #{tpu_custom_call.1} parent=19 // pred_fallthru
          _
        // Predicated region
        $region25: #{tpu_custom_call.1} parent=19 // pred_check
          %p476 = pneg %p128
        $region26: #{tpu_custom_call.1} parent=19 // pred_check_branch
          %478 = sbr.rel (%p476) target = $region28
        $region27: #{tpu_custom_call.1} parent=19 // pred_region
          %s479 = sand.u32 %s44, 1
          %s480 = scalar_lea.sflag [#allocation9], %s479
          %s481 = sand.u32 %s118, 1
          %s482 = smul.addr %s481, 2
          %s483 = scalar_lea.vmem [#allocation10], %s482
          %s485 = ssub.s32 32, 32
          %486 = vsyncadd %s480, %s485
          %s487 = smul.addr %s52, 2
          %s488 = smul.addr %s487, 16
          %s489 = scalar_lea.hbm %s3, %s488
          %s491 = sshll.u32 %s483, 4
          %s492 = int_to_ptr.vmem [resolvable:$true] %s491
          %494 = dma.hbm_to_vmem [thread:$0]  %s489, 32, %s492, %s480
        $region28: #{tpu_custom_call.1} parent=19 // pred_fallthru
          _
        // Predicated region
        $region29: #{tpu_custom_call.1} parent=19 // pred_check
          %p495 = pneg %p154
        $region30: #{tpu_custom_call.1} parent=19 // pred_check_branch
          %497 = sbr.rel (%p495) target = $region32
        $region31: #{tpu_custom_call.1} parent=19 // pred_region
          %s498 = sand.u32 %s44, 1
          %s499 = scalar_lea.sflag [#allocation12], %s498
          %s500 = sand.u32 %s144, 1
          %s501 = smul.addr %s500, 32
          %s502 = scalar_lea.vmem [#allocation11], %s501
          %s504 = ssub.s32 512, 512
          %505 = vsyncadd %s499, %s504
          %s506 = smul.addr %s52, 8
          %s507 = smul.addr %s506, 64
          %s508 = scalar_lea.hbm %s4, %s507
          %s509 = sshll.u32 %s502, 4
          %s510 = int_to_ptr.vmem [resolvable:$true] %s509
          %515 = dma.hbm_to_vmem [thread:$0]  %s508, 512, %s510, %s499, 64, 64, 4
        $region32: #{tpu_custom_call.1} parent=19 // pred_fallthru
          _
        // Predicated region
        $region33: #{tpu_custom_call.1} parent=19 // pred_check
          %p516 = pneg %p180
        $region34: #{tpu_custom_call.1} parent=19 // pred_check_branch
          %518 = sbr.rel (%p516) target = $region36
        $region35: #{tpu_custom_call.1} parent=19 // pred_region
          %s519 = sand.u32 %s44, 1
          %s520 = scalar_lea.sflag [#allocation12], %s519
          %s521 = sand.u32 %s170, 1
          %s522 = scalar_lea.vmem [#allocation13], %s521
          %s524 = ssub.s32 16, 16
          %525 = vsyncadd %s520, %s524
          %s526 = smul.addr %s52, 16
          %s527 = scalar_lea.hbm %s5, %s526
          %s529 = sshll.u32 %s522, 4
          %s530 = int_to_ptr.vmem [resolvable:$true] %s529
          %532 = dma.hbm_to_vmem [thread:$0]  %s527, 16, %s530, %s520
        $region36: #{tpu_custom_call.1} parent=19 // pred_fallthru
          _
        // Predicated region
        $region37: #{tpu_custom_call.1} parent=19 // pred_check
          %p533 = pneg %p206
        $region38: #{tpu_custom_call.1} parent=19 // pred_check_branch
          %535 = sbr.rel (%p533) target = $region40
        $region39: #{tpu_custom_call.1} parent=19 // pred_region
          %s536 = sand.u32 %s44, 1
          %s537 = scalar_lea.sflag [#allocation15], %s536
          %s538 = sand.u32 %s196, 1
          %s539 = scalar_lea.vmem [#allocation14], %s538
          %s541 = ssub.s32 16, 16
          %542 = vsyncadd %s537, %s541
          %s543 = smul.addr %s52, 16
          %s544 = scalar_lea.hbm %s6, %s543
          %s546 = sshll.u32 %s539, 4
          %s547 = int_to_ptr.vmem [resolvable:$true] %s546
          %549 = dma.hbm_to_vmem [thread:$0]  %s544, 16, %s547, %s537
        $region40: #{tpu_custom_call.1} parent=19 // pred_fallthru
          _
        // Predicated region
        $region41: #{tpu_custom_call.1} parent=19 // pred_check
          %p550 = pneg %p232
        $region42: #{tpu_custom_call.1} parent=19 // pred_check_branch
          %552 = sbr.rel (%p550) target = $region44
        $region43: #{tpu_custom_call.1} parent=19 // pred_region
          %s553 = sand.u32 %s44, 1
          %s554 = scalar_lea.sflag [#allocation15], %s553
          %s555 = sand.u32 %s222, 1
          %s556 = scalar_lea.vmem [#allocation16], %s555
          %s558 = ssub.s32 16, 16
          %559 = vsyncadd %s554, %s558
          %s560 = smul.addr %s52, 16
          %s561 = scalar_lea.hbm %s7, %s560
          %s563 = sshll.u32 %s556, 4
          %s564 = int_to_ptr.vmem [resolvable:$true] %s563
          %566 = dma.hbm_to_vmem [thread:$0]  %s561, 16, %s564, %s554
        $region44: #{tpu_custom_call.1} parent=19 // pred_fallthru
          _
        // Predicated region
        $region45: #{tpu_custom_call.1} parent=19 // pred_check
          %p567 = pneg %p258
        $region46: #{tpu_custom_call.1} parent=19 // pred_check_branch
          %569 = sbr.rel (%p567) target = $region48
        $region47: #{tpu_custom_call.1} parent=19 // pred_region
          %s570 = sand.u32 %s44, 1
          %s571 = scalar_lea.sflag [#allocation18], %s570
          %s572 = sand.u32 %s248, 1
          %s573 = smul.addr %s572, 512
          %s574 = scalar_lea.vmem [#allocation17], %s573
          %s576 = ssub.s32 8192, 8192
          %577 = vsyncadd %s571, %s576
          %s578 = smul.addr %s52, 128
          %s579 = smul.addr %s578, 64
          %s580 = scalar_lea.hbm %s8, %s579
          %s581 = sshll.u32 %s574, 4
          %s582 = int_to_ptr.vmem [resolvable:$true] %s581
          %587 = dma.hbm_to_vmem [thread:$0]  %s580, 8192, %s582, %s571, 1024, 1024, 64
        $region48: #{tpu_custom_call.1} parent=19 // pred_fallthru
          _
        // Predicated region
        $region49: #{tpu_custom_call.1} parent=19 // pred_check
          %p588 = pneg %p284
        $region50: #{tpu_custom_call.1} parent=19 // pred_check_branch
          %590 = sbr.rel (%p588) target = $region52
        $region51: #{tpu_custom_call.1} parent=19 // pred_region
          %s591 = sand.u32 %s44, 1
          %s592 = scalar_lea.sflag [#allocation18], %s591
          %s593 = sand.u32 %s274, 1
          %s594 = smul.addr %s593, 16
          %s595 = scalar_lea.vmem [#allocation19], %s594
          %s597 = ssub.s32 256, 256
          %598 = vsyncadd %s592, %s597
          %s599 = smul.addr %s52, 16
          %s600 = smul.addr %s599, 16
          %s601 = scalar_lea.hbm %s9, %s600
          %s603 = sshll.u32 %s595, 4
          %s604 = int_to_ptr.vmem [resolvable:$true] %s603
          %606 = dma.hbm_to_vmem [thread:$0]  %s601, 256, %s604, %s592
        $region52: #{tpu_custom_call.1} parent=19 // pred_fallthru
          _
        // Predicated region
        $region53: #{tpu_custom_call.1} parent=19 // pred_check
          %p607 = pneg %p310
        $region54: #{tpu_custom_call.1} parent=19 // pred_check_branch
          %609 = sbr.rel (%p607) target = $region56
        $region55: #{tpu_custom_call.1} parent=19 // pred_region
          %s610 = sand.u32 %s44, 1
          %s611 = scalar_lea.sflag [#allocation21], %s610
          %s612 = sand.u32 %s300, 1
          %s613 = smul.addr %s612, 1024
          %s614 = scalar_lea.vmem [#allocation20], %s613
          %s616 = ssub.s32 16384, 16384
          %617 = vsyncadd %s611, %s616
          %s618 = smul.addr %s52, 256
          %s619 = smul.addr %s618, 64
          %s620 = scalar_lea.hbm %s10, %s619
          %s621 = sshll.u32 %s614, 4
          %s622 = int_to_ptr.vmem [resolvable:$true] %s621
          %627 = dma.hbm_to_vmem [thread:$0]  %s620, 16384, %s622, %s611, 64, 64, 4
        $region56: #{tpu_custom_call.1} parent=19 // pred_fallthru
          _
        // Predicated region
        $region57: #{tpu_custom_call.1} parent=19 // pred_check
          %p628 = pneg %p336
        $region58: #{tpu_custom_call.1} parent=19 // pred_check_branch
          %630 = sbr.rel (%p628) target = $region60
        $region59: #{tpu_custom_call.1} parent=19 // pred_region
          %s631 = sand.u32 %s44, 1
          %s632 = scalar_lea.sflag [#allocation21], %s631
          %s633 = sand.u32 %s326, 1
          %s634 = scalar_lea.vmem [#allocation22], %s633
          %s636 = ssub.s32 16, 16
          %637 = vsyncadd %s632, %s636
          %s638 = smul.addr %s52, 16
          %s639 = scalar_lea.hbm %s11, %s638
          %s641 = sshll.u32 %s634, 4
          %s642 = int_to_ptr.vmem [resolvable:$true] %s641
          %644 = dma.hbm_to_vmem [thread:$0]  %s639, 16, %s642, %s632
        $region60: #{tpu_custom_call.1} parent=19 // pred_fallthru
          _
        // Predicated region
        $region61: #{tpu_custom_call.1} parent=19 // pred_check
          %p645 = pneg %p362
        $region62: #{tpu_custom_call.1} parent=19 // pred_check_branch
          %647 = sbr.rel (%p645) target = $region64
        $region63: #{tpu_custom_call.1} parent=19 // pred_region
          %s648 = sand.u32 %s44, 1
          %s649 = scalar_lea.sflag [#allocation24], %s648
          %s650 = sand.u32 %s352, 1
          %s651 = scalar_lea.vmem [#allocation23], %s650
          %s653 = ssub.s32 16, 16
          %654 = vsyncadd %s649, %s653
          %s655 = smul.addr %s52, 16
          %s656 = scalar_lea.hbm %s12, %s655
          %s658 = sshll.u32 %s651, 4
          %s659 = int_to_ptr.vmem [resolvable:$true] %s658
          %661 = dma.hbm_to_vmem [thread:$0]  %s656, 16, %s659, %s649
        $region64: #{tpu_custom_call.1} parent=19 // pred_fallthru
          _
        // Predicated region
        $region65: #{tpu_custom_call.1} parent=19 // pred_check
          %p662 = pneg %p388
        $region66: #{tpu_custom_call.1} parent=19 // pred_check_branch
          %664 = sbr.rel (%p662) target = $region68
        $region67: #{tpu_custom_call.1} parent=19 // pred_region
          %s665 = sand.u32 %s44, 1
          %s666 = scalar_lea.sflag [#allocation24], %s665
          %s667 = sand.u32 %s378, 1
          %s668 = scalar_lea.vmem [#allocation25], %s667
          %s670 = ssub.s32 16, 16
          %671 = vsyncadd %s666, %s670
          %s672 = smul.addr %s52, 16
          %s673 = scalar_lea.hbm %s13, %s672
          %s675 = sshll.u32 %s668, 4
          %s676 = int_to_ptr.vmem [resolvable:$true] %s675
          %678 = dma.hbm_to_vmem [thread:$0]  %s673, 16, %s676, %s666
        $region68: #{tpu_custom_call.1} parent=19 // pred_fallthru
          _
      $region20: #{tpu_custom_call.1} parent=5 // pred_fallthru
        _
      %p679 = scmp.le.s32.totalorder 1, %s44
      %p680 = scmp.lt.s32.totalorder %s44, 3
      %p681 = pnand %p679, %p680
      %p682 = pneg %p681
      // Predicated region
      $region69: #{tpu_custom_call.1} parent=5 // pred_check
        _
      $region70: #{tpu_custom_call.1} parent=5 // pred_check_branch
        %684 = sbr.rel (%p681) target = $region72
      $region71: #{tpu_custom_call.1} parent=5 // pred_region
        %s685 = ssub.s32 %s44, 1
        // Predicated region
        $region73: #{tpu_custom_call.1} parent=71 // pred_check
          %p686 = pneg %p82
        $region74: #{tpu_custom_call.1} parent=71 // pred_check_branch
          %688 = sbr.rel (%p686) target = $region76
        $region75: #{tpu_custom_call.1} parent=71 // pred_region
          %689 = dma.done [#allocation6], 256
        $region76: #{tpu_custom_call.1} parent=71 // pred_fallthru
          _
        %s690 = sand.u32 %s49, 1
        %s691 = scalar_lea.sflag [#allocation9], %s690
        %s692 = sand.u32 %s95, 1
        %s693 = smul.addr %s692, 64
        %s694 = scalar_lea.vmem [#allocation8], %s693
        // Predicated region
        $region77: #{tpu_custom_call.1} parent=71 // pred_check
          %p695 = pneg %p108
        $region78: #{tpu_custom_call.1} parent=71 // pred_check_branch
          %697 = sbr.rel (%p695) target = $region80
        $region79: #{tpu_custom_call.1} parent=71 // pred_region
          %698 = dma.done %s691, 1024
        $region80: #{tpu_custom_call.1} parent=71 // pred_fallthru
          _
        %s699 = sand.u32 %s49, 1
        %s700 = scalar_lea.sflag [#allocation9], %s699
        %s701 = sand.u32 %s121, 1
        %s702 = smul.addr %s701, 2
        %s703 = scalar_lea.vmem [#allocation10], %s702
        // Predicated region
        $region81: #{tpu_custom_call.1} parent=71 // pred_check
          %p704 = pneg %p134
        $region82: #{tpu_custom_call.1} parent=71 // pred_check_branch
          %706 = sbr.rel (%p704) target = $region84
        $region83: #{tpu_custom_call.1} parent=71 // pred_region
          %707 = dma.done %s700, 32
        $region84: #{tpu_custom_call.1} parent=71 // pred_fallthru
          _
        %s708 = sand.u32 %s49, 1
        %s709 = scalar_lea.sflag [#allocation12], %s708
        %s710 = sand.u32 %s147, 1
        %s711 = smul.addr %s710, 32
        %s712 = scalar_lea.vmem [#allocation11], %s711
        // Predicated region
        $region85: #{tpu_custom_call.1} parent=71 // pred_check
          %p713 = pneg %p160
        $region86: #{tpu_custom_call.1} parent=71 // pred_check_branch
          %715 = sbr.rel (%p713) target = $region88
        $region87: #{tpu_custom_call.1} parent=71 // pred_region
          %716 = dma.done %s709, 512
        $region88: #{tpu_custom_call.1} parent=71 // pred_fallthru
          _
        %s717 = sand.u32 %s49, 1
        %s718 = scalar_lea.sflag [#allocation12], %s717
        %s719 = sand.u32 %s173, 1
        %s720 = scalar_lea.vmem [#allocation13], %s719
        // Predicated region
        $region89: #{tpu_custom_call.1} parent=71 // pred_check
          %p721 = pneg %p186
        $region90: #{tpu_custom_call.1} parent=71 // pred_check_branch
          %723 = sbr.rel (%p721) target = $region92
        $region91: #{tpu_custom_call.1} parent=71 // pred_region
          %724 = dma.done %s718, 16
        $region92: #{tpu_custom_call.1} parent=71 // pred_fallthru
          _
        %s725 = sand.u32 %s49, 1
        %s726 = scalar_lea.sflag [#allocation15], %s725
        %s727 = sand.u32 %s199, 1
        %s728 = scalar_lea.vmem [#allocation14], %s727
        // Predicated region
        $region93: #{tpu_custom_call.1} parent=71 // pred_check
          %p729 = pneg %p212
        $region94: #{tpu_custom_call.1} parent=71 // pred_check_branch
          %731 = sbr.rel (%p729) target = $region96
        $region95: #{tpu_custom_call.1} parent=71 // pred_region
          %732 = dma.done %s726, 16
        $region96: #{tpu_custom_call.1} parent=71 // pred_fallthru
          _
        %s733 = sand.u32 %s49, 1
        %s734 = scalar_lea.sflag [#allocation15], %s733
        %s735 = sand.u32 %s225, 1
        %s736 = scalar_lea.vmem [#allocation16], %s735
        // Predicated region
        $region97: #{tpu_custom_call.1} parent=71 // pred_check
          %p737 = pneg %p238
        $region98: #{tpu_custom_call.1} parent=71 // pred_check_branch
          %739 = sbr.rel (%p737) target = $region100
        $region99: #{tpu_custom_call.1} parent=71 // pred_region
          %740 = dma.done %s734, 16
        $region100: #{tpu_custom_call.1} parent=71 // pred_fallthru
          _
        %s741 = sand.u32 %s49, 1
        %s742 = scalar_lea.sflag [#allocation18], %s741
        %s743 = sand.u32 %s251, 1
        %s744 = smul.addr %s743, 512
        %s745 = scalar_lea.vmem [#allocation17], %s744
        // Predicated region
        $region101: #{tpu_custom_call.1} parent=71 // pred_check
          %p746 = pneg %p264
        $region102: #{tpu_custom_call.1} parent=71 // pred_check_branch
          %748 = sbr.rel (%p746) target = $region104
        $region103: #{tpu_custom_call.1} parent=71 // pred_region
          %749 = dma.done %s742, 8192
        $region104: #{tpu_custom_call.1} parent=71 // pred_fallthru
          _
        %s750 = sand.u32 %s49, 1
        %s751 = scalar_lea.sflag [#allocation18], %s750
        %s752 = sand.u32 %s277, 1
        %s753 = smul.addr %s752, 16
        %s754 = scalar_lea.vmem [#allocation19], %s753
        // Predicated region
        $region105: #{tpu_custom_call.1} parent=71 // pred_check
          %p755 = pneg %p290
        $region106: #{tpu_custom_call.1} parent=71 // pred_check_branch
          %757 = sbr.rel (%p755) target = $region108
        $region107: #{tpu_custom_call.1} parent=71 // pred_region
          %758 = dma.done %s751, 256
        $region108: #{tpu_custom_call.1} parent=71 // pred_fallthru
          _
        %s759 = sand.u32 %s49, 1
        %s760 = scalar_lea.sflag [#allocation21], %s759
        %s761 = sand.u32 %s303, 1
        %s762 = smul.addr %s761, 1024
        %s763 = scalar_lea.vmem [#allocation20], %s762
        // Predicated region
        $region109: #{tpu_custom_call.1} parent=71 // pred_check
          %p764 = pneg %p316
        $region110: #{tpu_custom_call.1} parent=71 // pred_check_branch
          %766 = sbr.rel (%p764) target = $region112
        $region111: #{tpu_custom_call.1} parent=71 // pred_region
          %767 = dma.done %s760, 16384
        $region112: #{tpu_custom_call.1} parent=71 // pred_fallthru
          _
        %s768 = sand.u32 %s49, 1
        %s769 = scalar_lea.sflag [#allocation21], %s768
        %s770 = sand.u32 %s329, 1
        %s771 = scalar_lea.vmem [#allocation22], %s770
        // Predicated region
        $region113: #{tpu_custom_call.1} parent=71 // pred_check
          %p772 = pneg %p342
        $region114: #{tpu_custom_call.1} parent=71 // pred_check_branch
          %774 = sbr.rel (%p772) target = $region116
        $region115: #{tpu_custom_call.1} parent=71 // pred_region
          %775 = dma.done %s769, 16
        $region116: #{tpu_custom_call.1} parent=71 // pred_fallthru
          _
        %s776 = sand.u32 %s49, 1
        %s777 = scalar_lea.sflag [#allocation24], %s776
        %s778 = sand.u32 %s355, 1
        %s779 = scalar_lea.vmem [#allocation23], %s778
        // Predicated region
        $region117: #{tpu_custom_call.1} parent=71 // pred_check
          %p780 = pneg %p368
        $region118: #{tpu_custom_call.1} parent=71 // pred_check_branch
          %782 = sbr.rel (%p780) target = $region120
        $region119: #{tpu_custom_call.1} parent=71 // pred_region
          %783 = dma.done %s777, 16
        $region120: #{tpu_custom_call.1} parent=71 // pred_fallthru
          _
        %s784 = sand.u32 %s49, 1
        %s785 = scalar_lea.sflag [#allocation24], %s784
        %s786 = sand.u32 %s381, 1
        %s787 = scalar_lea.vmem [#allocation25], %s786
        // Predicated region
        $region121: #{tpu_custom_call.1} parent=71 // pred_check
          %p788 = pneg %p394
        $region122: #{tpu_custom_call.1} parent=71 // pred_check_branch
          %790 = sbr.rel (%p788) target = $region124
        $region123: #{tpu_custom_call.1} parent=71 // pred_region
          %791 = dma.done %s785, 16
        $region124: #{tpu_custom_call.1} parent=71 // pred_fallthru
          _
        %p792 = pneg %p82
        %p793 = pneg %p79
        %s794 = sand.u32 %s49, 1
        %s795 = scalar_lea.sflag [#allocation9], %s794
        %s796 = sand.u32 %s95, 1
        %s797 = smul.addr %s796, 64
        %s798 = scalar_lea.vmem [#allocation8], %s797
        %p799 = pneg %p108
        %p800 = pneg %p105
        %s801 = sand.u32 %s49, 1
        %s802 = scalar_lea.sflag [#allocation9], %s801
        %s803 = sand.u32 %s121, 1
        %s804 = smul.addr %s803, 2
        %s805 = scalar_lea.vmem [#allocation10], %s804
        %p806 = pneg %p134
        %p807 = pneg %p131
        %s808 = sand.u32 %s49, 1
        %s809 = scalar_lea.sflag [#allocation12], %s808
        %s810 = sand.u32 %s147, 1
        %s811 = smul.addr %s810, 32
        %s812 = scalar_lea.vmem [#allocation11], %s811
        %p813 = pneg %p160
        %p814 = pneg %p157
        %s815 = sand.u32 %s49, 1
        %s816 = scalar_lea.sflag [#allocation12], %s815
        %s817 = sand.u32 %s173, 1
        %s818 = scalar_lea.vmem [#allocation13], %s817
        %p819 = pneg %p186
        %p820 = pneg %p183
        %s821 = sand.u32 %s49, 1
        %s822 = scalar_lea.sflag [#allocation15], %s821
        %s823 = sand.u32 %s199, 1
        %s824 = scalar_lea.vmem [#allocation14], %s823
        %p825 = pneg %p212
        %p826 = pneg %p209
        %s827 = sand.u32 %s49, 1
        %s828 = scalar_lea.sflag [#allocation15], %s827
        %s829 = sand.u32 %s225, 1
        %s830 = scalar_lea.vmem [#allocation16], %s829
        %p831 = pneg %p238
        %p832 = pneg %p235
        %s833 = sand.u32 %s49, 1
        %s834 = scalar_lea.sflag [#allocation18], %s833
        %s835 = sand.u32 %s251, 1
        %s836 = smul.addr %s835, 512
        %s837 = scalar_lea.vmem [#allocation17], %s836
        %p838 = pneg %p264
        %p839 = pneg %p261
        %s840 = sand.u32 %s49, 1
        %s841 = scalar_lea.sflag [#allocation18], %s840
        %s842 = sand.u32 %s277, 1
        %s843 = smul.addr %s842, 16
        %s844 = scalar_lea.vmem [#allocation19], %s843
        %p845 = pneg %p290
        %p846 = pneg %p287
        %s847 = sand.u32 %s49, 1
        %s848 = scalar_lea.sflag [#allocation21], %s847
        %s849 = sand.u32 %s303, 1
        %s850 = smul.addr %s849, 1024
        %s851 = scalar_lea.vmem [#allocation20], %s850
        %p852 = pneg %p316
        %p853 = pneg %p313
        %s854 = sand.u32 %s49, 1
        %s855 = scalar_lea.sflag [#allocation21], %s854
        %s856 = sand.u32 %s329, 1
        %s857 = scalar_lea.vmem [#allocation22], %s856
        %p858 = pneg %p342
        %p859 = pneg %p339
        %s860 = sand.u32 %s49, 1
        %s861 = scalar_lea.sflag [#allocation24], %s860
        %s862 = sand.u32 %s355, 1
        %s863 = scalar_lea.vmem [#allocation23], %s862
        %p864 = pneg %p368
        %p865 = pneg %p365
        %s866 = sand.u32 %s49, 1
        %s867 = scalar_lea.sflag [#allocation24], %s866
        %s868 = sand.u32 %s381, 1
        %s869 = scalar_lea.vmem [#allocation25], %s868
        %p870 = pneg %p394
        %p871 = pneg %p391
        %p872 = pneg %p420
        %p873 = pneg %p417
        %s874 = smul.u32 2, %s53
        %s875 = smul.u32 2, %s53
        %p877 = scmp.eq.s32.totalorder %s54, 0
        // Predicated region
        $region125: #{tpu_custom_call.1} parent=71 // pred_check
          %p878 = pneg %p877
        $region126: #{tpu_custom_call.1} parent=71 // pred_check_branch
          %880 = sbr.rel (%p878) target = $region128
        $region127: #{tpu_custom_call.1} parent=71 // pred_region
          %v881 = vld [vmem:[#allocation5] sm:$0xff]
          %v882 = vld [vmem:[#allocation5 + $0x8] sm:$0xff]
          %vm883 = vcmask 523264
          %884 = vst.msk [vmem:[#allocation2] sm:$0xff] %vm883, %v881
          %885 = vst.msk [vmem:[#allocation2 + $0x8] sm:$0xff] %vm883, %v882
        $region128: #{tpu_custom_call.1} parent=71 // pred_fallthru
          _
        %v886 = vld [vmem:[#allocation2] sm:$0xff]
        %v887 = vld [vmem:[#allocation2 + $0x8] sm:$0xff]
        %v888 = vld [vmem:[%s694] sm:$0xff]
        %v889 = vld [vmem:[%s694 + $0x8] sm:$0xff]
        %v890 = vld [vmem:[%s694 + $0x10] sm:$0xff]
        %v891 = vld [vmem:[%s694 + $0x18] sm:$0xff]
        %v892 = vld [vmem:[%s694 + $0x20] sm:$0xff]
        %v893 = vld [vmem:[%s694 + $0x28] sm:$0xff]
        %v894 = vld [vmem:[%s694 + $0x30] sm:$0xff]
        %v895 = vld [vmem:[%s694 + $0x38] sm:$0xff]
        %v896 = vld [vmem:[%s703] sm:$0x3]
        %v897 = vld [vmem:[%s712] sm:$0xf]
        %v898 = vld [vmem:[%s712 + $0x4] sm:$0xf]
        %v899 = vld [vmem:[%s712 + $0x8] sm:$0xf]
        %v900 = vld [vmem:[%s712 + $0xc] sm:$0xf]
        %v901 = vld [vmem:[%s712 + $0x10] sm:$0xf]
        %v902 = vld [vmem:[%s712 + $0x14] sm:$0xf]
        %v903 = vld [vmem:[%s712 + $0x18] sm:$0xf]
        %v904 = vld [vmem:[%s712 + $0x1c] sm:$0xf]
        %v905 = vld [vmem:[%s720] sm:$0x1]
        %v906 = vld [vmem:[%s745] sm:$0xff]
        %v907 = vld [vmem:[%s745 + $0x8] sm:$0xff]
        %v908 = vld [vmem:[%s745 + $0x10] sm:$0xff]
        %v909 = vld [vmem:[%s745 + $0x18] sm:$0xff]
        %v910 = vld [vmem:[%s745 + $0x20] sm:$0xff]
        %v911 = vld [vmem:[%s745 + $0x28] sm:$0xff]
        %v912 = vld [vmem:[%s745 + $0x30] sm:$0xff]
        %v913 = vld [vmem:[%s745 + $0x38] sm:$0xff]
        %v914 = vld [vmem:[%s745 + $0x40] sm:$0xff]
        %v915 = vld [vmem:[%s745 + $0x48] sm:$0xff]
        %v916 = vld [vmem:[%s745 + $0x50] sm:$0xff]
        %v917 = vld [vmem:[%s745 + $0x58] sm:$0xff]
        %v918 = vld [vmem:[%s745 + $0x60] sm:$0xff]
        %v919 = vld [vmem:[%s745 + $0x68] sm:$0xff]
        %v920 = vld [vmem:[%s745 + $0x70] sm:$0xff]
        %v921 = vld [vmem:[%s745 + $0x78] sm:$0xff]
        %v922 = vld [vmem:[%s745 + $0x80] sm:$0xff]
        %v923 = vld [vmem:[%s745 + $0x88] sm:$0xff]
        %v924 = vld [vmem:[%s745 + $0x90] sm:$0xff]
        %v925 = vld [vmem:[%s745 + $0x98] sm:$0xff]
        %v926 = vld [vmem:[%s745 + $0xa0] sm:$0xff]
        %v927 = vld [vmem:[%s745 + $0xa8] sm:$0xff]
        %v928 = vld [vmem:[%s745 + $0xb0] sm:$0xff]
        %v929 = vld [vmem:[%s745 + $0xb8] sm:$0xff]
        %v930 = vld [vmem:[%s745 + $0xc0] sm:$0xff]
        %v931 = vld [vmem:[%s745 + $0xc8] sm:$0xff]
        %v932 = vld [vmem:[%s745 + $0xd0] sm:$0xff]
        %v933 = vld [vmem:[%s745 + $0xd8] sm:$0xff]
        %v934 = vld [vmem:[%s745 + $0xe0] sm:$0xff]
        %v935 = vld [vmem:[%s745 + $0xe8] sm:$0xff]
        %v936 = vld [vmem:[%s745 + $0xf0] sm:$0xff]
        %v937 = vld [vmem:[%s745 + $0xf8] sm:$0xff]
        %v938 = vld [vmem:[%s745 + $0x100] sm:$0xff]
        %v939 = vld [vmem:[%s745 + $0x108] sm:$0xff]
        %v940 = vld [vmem:[%s745 + $0x110] sm:$0xff]
        %v941 = vld [vmem:[%s745 + $0x118] sm:$0xff]
        %v942 = vld [vmem:[%s745 + $0x120] sm:$0xff]
        %v943 = vld [vmem:[%s745 + $0x128] sm:$0xff]
        %v944 = vld [vmem:[%s745 + $0x130] sm:$0xff]
        %v945 = vld [vmem:[%s745 + $0x138] sm:$0xff]
        %v946 = vld [vmem:[%s745 + $0x140] sm:$0xff]
        %v947 = vld [vmem:[%s745 + $0x148] sm:$0xff]
        %v948 = vld [vmem:[%s745 + $0x150] sm:$0xff]
        %v949 = vld [vmem:[%s745 + $0x158] sm:$0xff]
        %v950 = vld [vmem:[%s745 + $0x160] sm:$0xff]
        %v951 = vld [vmem:[%s745 + $0x168] sm:$0xff]
        %v952 = vld [vmem:[%s745 + $0x170] sm:$0xff]
        %v953 = vld [vmem:[%s745 + $0x178] sm:$0xff]
        %v954 = vld [vmem:[%s745 + $0x180] sm:$0xff]
        %v955 = vld [vmem:[%s745 + $0x188] sm:$0xff]
        %v956 = vld [vmem:[%s745 + $0x190] sm:$0xff]
        %v957 = vld [vmem:[%s745 + $0x198] sm:$0xff]
        %v958 = vld [vmem:[%s745 + $0x1a0] sm:$0xff]
        %v959 = vld [vmem:[%s745 + $0x1a8] sm:$0xff]
        %v960 = vld [vmem:[%s745 + $0x1b0] sm:$0xff]
        %v961 = vld [vmem:[%s745 + $0x1b8] sm:$0xff]
        %v962 = vld [vmem:[%s745 + $0x1c0] sm:$0xff]
        %v963 = vld [vmem:[%s745 + $0x1c8] sm:$0xff]
        %v964 = vld [vmem:[%s745 + $0x1d0] sm:$0xff]
        %v965 = vld [vmem:[%s745 + $0x1d8] sm:$0xff]
        %v966 = vld [vmem:[%s745 + $0x1e0] sm:$0xff]
        %v967 = vld [vmem:[%s745 + $0x1e8] sm:$0xff]
        %v968 = vld [vmem:[%s745 + $0x1f0] sm:$0xff]
        %v969 = vld [vmem:[%s745 + $0x1f8] sm:$0xff]
        %v970 = vld [vmem:[%s754] sm:$0xff]
        %v971 = vld [vmem:[%s754 + $0x8] sm:$0xff]
        %v972 = vld [vmem:[%s763] sm:$0xf]
        %v973 = vld [vmem:[%s763 + $0x4] sm:$0xf]
        %v974 = vld [vmem:[%s763 + $0x8] sm:$0xf]
        %v975 = vld [vmem:[%s763 + $0xc] sm:$0xf]
        %v976 = vld [vmem:[%s763 + $0x10] sm:$0xf]
        %v977 = vld [vmem:[%s763 + $0x14] sm:$0xf]
        %v978 = vld [vmem:[%s763 + $0x18] sm:$0xf]
        %v979 = vld [vmem:[%s763 + $0x1c] sm:$0xf]
        %v980 = vld [vmem:[%s763 + $0x20] sm:$0xf]
        %v981 = vld [vmem:[%s763 + $0x24] sm:$0xf]
        %v982 = vld [vmem:[%s763 + $0x28] sm:$0xf]
        %v983 = vld [vmem:[%s763 + $0x2c] sm:$0xf]
        %v984 = vld [vmem:[%s763 + $0x30] sm:$0xf]
        %v985 = vld [vmem:[%s763 + $0x34] sm:$0xf]
        %v986 = vld [vmem:[%s763 + $0x38] sm:$0xf]
        %v987 = vld [vmem:[%s763 + $0x3c] sm:$0xf]
        %v988 = vld [vmem:[%s763 + $0x40] sm:$0xf]
        %v989 = vld [vmem:[%s763 + $0x44] sm:$0xf]
        %v990 = vld [vmem:[%s763 + $0x48] sm:$0xf]
        %v991 = vld [vmem:[%s763 + $0x4c] sm:$0xf]
        %v992 = vld [vmem:[%s763 + $0x50] sm:$0xf]
        %v993 = vld [vmem:[%s763 + $0x54] sm:$0xf]
        %v994 = vld [vmem:[%s763 + $0x58] sm:$0xf]
        %v995 = vld [vmem:[%s763 + $0x5c] sm:$0xf]
        %v996 = vld [vmem:[%s763 + $0x60] sm:$0xf]
        %v997 = vld [vmem:[%s763 + $0x64] sm:$0xf]
        %v998 = vld [vmem:[%s763 + $0x68] sm:$0xf]
        %v999 = vld [vmem:[%s763 + $0x6c] sm:$0xf]
        %v1000 = vld [vmem:[%s763 + $0x70] sm:$0xf]
        %v1001 = vld [vmem:[%s763 + $0x74] sm:$0xf]
        %v1002 = vld [vmem:[%s763 + $0x78] sm:$0xf]
        %v1003 = vld [vmem:[%s763 + $0x7c] sm:$0xf]
        %v1004 = vld [vmem:[%s763 + $0x80] sm:$0xf]
        %v1005 = vld [vmem:[%s763 + $0x84] sm:$0xf]
        %v1006 = vld [vmem:[%s763 + $0x88] sm:$0xf]
        %v1007 = vld [vmem:[%s763 + $0x8c] sm:$0xf]
        %v1008 = vld [vmem:[%s763 + $0x90] sm:$0xf]
        %v1009 = vld [vmem:[%s763 + $0x94] sm:$0xf]
        %v1010 = vld [vmem:[%s763 + $0x98] sm:$0xf]
        %v1011 = vld [vmem:[%s763 + $0x9c] sm:$0xf]
        %v1012 = vld [vmem:[%s763 + $0xa0] sm:$0xf]
        %v1013 = vld [vmem:[%s763 + $0xa4] sm:$0xf]
        %v1014 = vld [vmem:[%s763 + $0xa8] sm:$0xf]
        %v1015 = vld [vmem:[%s763 + $0xac] sm:$0xf]
        %v1016 = vld [vmem:[%s763 + $0xb0] sm:$0xf]
        %v1017 = vld [vmem:[%s763 + $0xb4] sm:$0xf]
        %v1018 = vld [vmem:[%s763 + $0xb8] sm:$0xf]
        %v1019 = vld [vmem:[%s763 + $0xbc] sm:$0xf]
        %v1020 = vld [vmem:[%s763 + $0xc0] sm:$0xf]
        %v1021 = vld [vmem:[%s763 + $0xc4] sm:$0xf]
        %v1022 = vld [vmem:[%s763 + $0xc8] sm:$0xf]
        %v1023 = vld [vmem:[%s763 + $0xcc] sm:$0xf]
        %v1024 = vld [vmem:[%s763 + $0xd0] sm:$0xf]
        %v1025 = vld [vmem:[%s763 + $0xd4] sm:$0xf]
        %v1026 = vld [vmem:[%s763 + $0xd8] sm:$0xf]
        %v1027 = vld [vmem:[%s763 + $0xdc] sm:$0xf]
        %v1028 = vld [vmem:[%s763 + $0xe0] sm:$0xf]
        %v1029 = vld [vmem:[%s763 + $0xe4] sm:$0xf]
        %v1030 = vld [vmem:[%s763 + $0xe8] sm:$0xf]
        %v1031 = vld [vmem:[%s763 + $0xec] sm:$0xf]
        %v1032 = vld [vmem:[%s763 + $0xf0] sm:$0xf]
        %v1033 = vld [vmem:[%s763 + $0xf4] sm:$0xf]
        %v1034 = vld [vmem:[%s763 + $0xf8] sm:$0xf]
        %v1035 = vld [vmem:[%s763 + $0xfc] sm:$0xf]
        %v1036 = vld [vmem:[%s763 + $0x100] sm:$0xf]
        %v1037 = vld [vmem:[%s763 + $0x104] sm:$0xf]
        %v1038 = vld [vmem:[%s763 + $0x108] sm:$0xf]
        %v1039 = vld [vmem:[%s763 + $0x10c] sm:$0xf]
        %v1040 = vld [vmem:[%s763 + $0x110] sm:$0xf]
        %v1041 = vld [vmem:[%s763 + $0x114] sm:$0xf]
        %v1042 = vld [vmem:[%s763 + $0x118] sm:$0xf]
        %v1043 = vld [vmem:[%s763 + $0x11c] sm:$0xf]
        %v1044 = vld [vmem:[%s763 + $0x120] sm:$0xf]
        %v1045 = vld [vmem:[%s763 + $0x124] sm:$0xf]
        %v1046 = vld [vmem:[%s763 + $0x128] sm:$0xf]
        %v1047 = vld [vmem:[%s763 + $0x12c] sm:$0xf]
        %v1048 = vld [vmem:[%s763 + $0x130] sm:$0xf]
        %v1049 = vld [vmem:[%s763 + $0x134] sm:$0xf]
        %v1050 = vld [vmem:[%s763 + $0x138] sm:$0xf]
        %v1051 = vld [vmem:[%s763 + $0x13c] sm:$0xf]
        %v1052 = vld [vmem:[%s763 + $0x140] sm:$0xf]
        %v1053 = vld [vmem:[%s763 + $0x144] sm:$0xf]
        %v1054 = vld [vmem:[%s763 + $0x148] sm:$0xf]
        %v1055 = vld [vmem:[%s763 + $0x14c] sm:$0xf]
        %v1056 = vld [vmem:[%s763 + $0x150] sm:$0xf]
        %v1057 = vld [vmem:[%s763 + $0x154] sm:$0xf]
        %v1058 = vld [vmem:[%s763 + $0x158] sm:$0xf]
        %v1059 = vld [vmem:[%s763 + $0x15c] sm:$0xf]
        %v1060 = vld [vmem:[%s763 + $0x160] sm:$0xf]
        %v1061 = vld [vmem:[%s763 + $0x164] sm:$0xf]
        %v1062 = vld [vmem:[%s763 + $0x168] sm:$0xf]
        %v1063 = vld [vmem:[%s763 + $0x16c] sm:$0xf]
        %v1064 = vld [vmem:[%s763 + $0x170] sm:$0xf]
        %v1065 = vld [vmem:[%s763 + $0x174] sm:$0xf]
        %v1066 = vld [vmem:[%s763 + $0x178] sm:$0xf]
        %v1067 = vld [vmem:[%s763 + $0x17c] sm:$0xf]
        %v1068 = vld [vmem:[%s763 + $0x180] sm:$0xf]
        %v1069 = vld [vmem:[%s763 + $0x184] sm:$0xf]
        %v1070 = vld [vmem:[%s763 + $0x188] sm:$0xf]
        %v1071 = vld [vmem:[%s763 + $0x18c] sm:$0xf]
        %v1072 = vld [vmem:[%s763 + $0x190] sm:$0xf]
        %v1073 = vld [vmem:[%s763 + $0x194] sm:$0xf]
        %v1074 = vld [vmem:[%s763 + $0x198] sm:$0xf]
        %v1075 = vld [vmem:[%s763 + $0x19c] sm:$0xf]
        %v1076 = vld [vmem:[%s763 + $0x1a0] sm:$0xf]
        %v1077 = vld [vmem:[%s763 + $0x1a4] sm:$0xf]
        %v1078 = vld [vmem:[%s763 + $0x1a8] sm:$0xf]
        %v1079 = vld [vmem:[%s763 + $0x1ac] sm:$0xf]
        %v1080 = vld [vmem:[%s763 + $0x1b0] sm:$0xf]
        %v1081 = vld [vmem:[%s763 + $0x1b4] sm:$0xf]
        %v1082 = vld [vmem:[%s763 + $0x1b8] sm:$0xf]
        %v1083 = vld [vmem:[%s763 + $0x1bc] sm:$0xf]
        %v1084 = vld [vmem:[%s763 + $0x1c0] sm:$0xf]
        %v1085 = vld [vmem:[%s763 + $0x1c4] sm:$0xf]
        %v1086 = vld [vmem:[%s763 + $0x1c8] sm:$0xf]
        %v1087 = vld [vmem:[%s763 + $0x1cc] sm:$0xf]
        %v1088 = vld [vmem:[%s763 + $0x1d0] sm:$0xf]
        %v1089 = vld [vmem:[%s763 + $0x1d4] sm:$0xf]
        %v1090 = vld [vmem:[%s763 + $0x1d8] sm:$0xf]
        %v1091 = vld [vmem:[%s763 + $0x1dc] sm:$0xf]
        %v1092 = vld [vmem:[%s763 + $0x1e0] sm:$0xf]
        %v1093 = vld [vmem:[%s763 + $0x1e4] sm:$0xf]
        %v1094 = vld [vmem:[%s763 + $0x1e8] sm:$0xf]
        %v1095 = vld [vmem:[%s763 + $0x1ec] sm:$0xf]
        %v1096 = vld [vmem:[%s763 + $0x1f0] sm:$0xf]
        %v1097 = vld [vmem:[%s763 + $0x1f4] sm:$0xf]
        %v1098 = vld [vmem:[%s763 + $0x1f8] sm:$0xf]
        %v1099 = vld [vmem:[%s763 + $0x1fc] sm:$0xf]
        %v1100 = vld [vmem:[%s763 + $0x200] sm:$0xf]
        %v1101 = vld [vmem:[%s763 + $0x204] sm:$0xf]
        %v1102 = vld [vmem:[%s763 + $0x208] sm:$0xf]
        %v1103 = vld [vmem:[%s763 + $0x20c] sm:$0xf]
        %v1104 = vld [vmem:[%s763 + $0x210] sm:$0xf]
        %v1105 = vld [vmem:[%s763 + $0x214] sm:$0xf]
        %v1106 = vld [vmem:[%s763 + $0x218] sm:$0xf]
        %v1107 = vld [vmem:[%s763 + $0x21c] sm:$0xf]
        %v1108 = vld [vmem:[%s763 + $0x220] sm:$0xf]
        %v1109 = vld [vmem:[%s763 + $0x224] sm:$0xf]
        %v1110 = vld [vmem:[%s763 + $0x228] sm:$0xf]
        %v1111 = vld [vmem:[%s763 + $0x22c] sm:$0xf]
        %v1112 = vld [vmem:[%s763 + $0x230] sm:$0xf]
        %v1113 = vld [vmem:[%s763 + $0x234] sm:$0xf]
        %v1114 = vld [vmem:[%s763 + $0x238] sm:$0xf]
        %v1115 = vld [vmem:[%s763 + $0x23c] sm:$0xf]
        %v1116 = vld [vmem:[%s763 + $0x240] sm:$0xf]
        %v1117 = vld [vmem:[%s763 + $0x244] sm:$0xf]
        %v1118 = vld [vmem:[%s763 + $0x248] sm:$0xf]
        %v1119 = vld [vmem:[%s763 + $0x24c] sm:$0xf]
        %v1120 = vld [vmem:[%s763 + $0x250] sm:$0xf]
        %v1121 = vld [vmem:[%s763 + $0x254] sm:$0xf]
        %v1122 = vld [vmem:[%s763 + $0x258] sm:$0xf]
        %v1123 = vld [vmem:[%s763 + $0x25c] sm:$0xf]
        %v1124 = vld [vmem:[%s763 + $0x260] sm:$0xf]
        %v1125 = vld [vmem:[%s763 + $0x264] sm:$0xf]
        %v1126 = vld [vmem:[%s763 + $0x268] sm:$0xf]
        %v1127 = vld [vmem:[%s763 + $0x26c] sm:$0xf]
        %v1128 = vld [vmem:[%s763 + $0x270] sm:$0xf]
        %v1129 = vld [vmem:[%s763 + $0x274] sm:$0xf]
        %v1130 = vld [vmem:[%s763 + $0x278] sm:$0xf]
        %v1131 = vld [vmem:[%s763 + $0x27c] sm:$0xf]
        %v1132 = vld [vmem:[%s763 + $0x280] sm:$0xf]
        %v1133 = vld [vmem:[%s763 + $0x284] sm:$0xf]
        %v1134 = vld [vmem:[%s763 + $0x288] sm:$0xf]
        %v1135 = vld [vmem:[%s763 + $0x28c] sm:$0xf]
        %v1136 = vld [vmem:[%s763 + $0x290] sm:$0xf]
        %v1137 = vld [vmem:[%s763 + $0x294] sm:$0xf]
        %v1138 = vld [vmem:[%s763 + $0x298] sm:$0xf]
        %v1139 = vld [vmem:[%s763 + $0x29c] sm:$0xf]
        %v1140 = vld [vmem:[%s763 + $0x2a0] sm:$0xf]
        %v1141 = vld [vmem:[%s763 + $0x2a4] sm:$0xf]
        %v1142 = vld [vmem:[%s763 + $0x2a8] sm:$0xf]
        %v1143 = vld [vmem:[%s763 + $0x2ac] sm:$0xf]
        %v1144 = vld [vmem:[%s763 + $0x2b0] sm:$0xf]
        %v1145 = vld [vmem:[%s763 + $0x2b4] sm:$0xf]
        %v1146 = vld [vmem:[%s763 + $0x2b8] sm:$0xf]
        %v1147 = vld [vmem:[%s763 + $0x2bc] sm:$0xf]
        %v1148 = vld [vmem:[%s763 + $0x2c0] sm:$0xf]
        %v1149 = vld [vmem:[%s763 + $0x2c4] sm:$0xf]
        %v1150 = vld [vmem:[%s763 + $0x2c8] sm:$0xf]
        %v1151 = vld [vmem:[%s763 + $0x2cc] sm:$0xf]
        %v1152 = vld [vmem:[%s763 + $0x2d0] sm:$0xf]
        %v1153 = vld [vmem:[%s763 + $0x2d4] sm:$0xf]
        %v1154 = vld [vmem:[%s763 + $0x2d8] sm:$0xf]
        %v1155 = vld [vmem:[%s763 + $0x2dc] sm:$0xf]
        %v1156 = vld [vmem:[%s763 + $0x2e0] sm:$0xf]
        %v1157 = vld [vmem:[%s763 + $0x2e4] sm:$0xf]
        %v1158 = vld [vmem:[%s763 + $0x2e8] sm:$0xf]
        %v1159 = vld [vmem:[%s763 + $0x2ec] sm:$0xf]
        %v1160 = vld [vmem:[%s763 + $0x2f0] sm:$0xf]
        %v1161 = vld [vmem:[%s763 + $0x2f4] sm:$0xf]
        %v1162 = vld [vmem:[%s763 + $0x2f8] sm:$0xf]
        %v1163 = vld [vmem:[%s763 + $0x2fc] sm:$0xf]
        %v1164 = vld [vmem:[%s763 + $0x300] sm:$0xf]
        %v1165 = vld [vmem:[%s763 + $0x304] sm:$0xf]
        %v1166 = vld [vmem:[%s763 + $0x308] sm:$0xf]
        %v1167 = vld [vmem:[%s763 + $0x30c] sm:$0xf]
        %v1168 = vld [vmem:[%s763 + $0x310] sm:$0xf]
        %v1169 = vld [vmem:[%s763 + $0x314] sm:$0xf]
        %v1170 = vld [vmem:[%s763 + $0x318] sm:$0xf]
        %v1171 = vld [vmem:[%s763 + $0x31c] sm:$0xf]
        %v1172 = vld [vmem:[%s763 + $0x320] sm:$0xf]
        %v1173 = vld [vmem:[%s763 + $0x324] sm:$0xf]
        %v1174 = vld [vmem:[%s763 + $0x328] sm:$0xf]
        %v1175 = vld [vmem:[%s763 + $0x32c] sm:$0xf]
        %v1176 = vld [vmem:[%s763 + $0x330] sm:$0xf]
        %v1177 = vld [vmem:[%s763 + $0x334] sm:$0xf]
        %v1178 = vld [vmem:[%s763 + $0x338] sm:$0xf]
        %v1179 = vld [vmem:[%s763 + $0x33c] sm:$0xf]
        %v1180 = vld [vmem:[%s763 + $0x340] sm:$0xf]
        %v1181 = vld [vmem:[%s763 + $0x344] sm:$0xf]
        %v1182 = vld [vmem:[%s763 + $0x348] sm:$0xf]
        %v1183 = vld [vmem:[%s763 + $0x34c] sm:$0xf]
        %v1184 = vld [vmem:[%s763 + $0x350] sm:$0xf]
        %v1185 = vld [vmem:[%s763 + $0x354] sm:$0xf]
        %v1186 = vld [vmem:[%s763 + $0x358] sm:$0xf]
        %v1187 = vld [vmem:[%s763 + $0x35c] sm:$0xf]
        %v1188 = vld [vmem:[%s763 + $0x360] sm:$0xf]
        %v1189 = vld [vmem:[%s763 + $0x364] sm:$0xf]
        %v1190 = vld [vmem:[%s763 + $0x368] sm:$0xf]
        %v1191 = vld [vmem:[%s763 + $0x36c] sm:$0xf]
        %v1192 = vld [vmem:[%s763 + $0x370] sm:$0xf]
        %v1193 = vld [vmem:[%s763 + $0x374] sm:$0xf]
        %v1194 = vld [vmem:[%s763 + $0x378] sm:$0xf]
        %v1195 = vld [vmem:[%s763 + $0x37c] sm:$0xf]
        %v1196 = vld [vmem:[%s763 + $0x380] sm:$0xf]
        %v1197 = vld [vmem:[%s763 + $0x384] sm:$0xf]
        %v1198 = vld [vmem:[%s763 + $0x388] sm:$0xf]
        %v1199 = vld [vmem:[%s763 + $0x38c] sm:$0xf]
        %v1200 = vld [vmem:[%s763 + $0x390] sm:$0xf]
        %v1201 = vld [vmem:[%s763 + $0x394] sm:$0xf]
        %v1202 = vld [vmem:[%s763 + $0x398] sm:$0xf]
        %v1203 = vld [vmem:[%s763 + $0x39c] sm:$0xf]
        %v1204 = vld [vmem:[%s763 + $0x3a0] sm:$0xf]
        %v1205 = vld [vmem:[%s763 + $0x3a4] sm:$0xf]
        %v1206 = vld [vmem:[%s763 + $0x3a8] sm:$0xf]
        %v1207 = vld [vmem:[%s763 + $0x3ac] sm:$0xf]
        %v1208 = vld [vmem:[%s763 + $0x3b0] sm:$0xf]
        %v1209 = vld [vmem:[%s763 + $0x3b4] sm:$0xf]
        %v1210 = vld [vmem:[%s763 + $0x3b8] sm:$0xf]
        %v1211 = vld [vmem:[%s763 + $0x3bc] sm:$0xf]
        %v1212 = vld [vmem:[%s763 + $0x3c0] sm:$0xf]
        %v1213 = vld [vmem:[%s763 + $0x3c4] sm:$0xf]
        %v1214 = vld [vmem:[%s763 + $0x3c8] sm:$0xf]
        %v1215 = vld [vmem:[%s763 + $0x3cc] sm:$0xf]
        %v1216 = vld [vmem:[%s763 + $0x3d0] sm:$0xf]
        %v1217 = vld [vmem:[%s763 + $0x3d4] sm:$0xf]
        %v1218 = vld [vmem:[%s763 + $0x3d8] sm:$0xf]
        %v1219 = vld [vmem:[%s763 + $0x3dc] sm:$0xf]
        %v1220 = vld [vmem:[%s763 + $0x3e0] sm:$0xf]
        %v1221 = vld [vmem:[%s763 + $0x3e4] sm:$0xf]
        %v1222 = vld [vmem:[%s763 + $0x3e8] sm:$0xf]
        %v1223 = vld [vmem:[%s763 + $0x3ec] sm:$0xf]
        %v1224 = vld [vmem:[%s763 + $0x3f0] sm:$0xf]
        %v1225 = vld [vmem:[%s763 + $0x3f4] sm:$0xf]
        %v1226 = vld [vmem:[%s763 + $0x3f8] sm:$0xf]
        %v1227 = vld [vmem:[%s763 + $0x3fc] sm:$0xf]
        %v1228 = vld [vmem:[%s771] sm:$0x1]
        %v1229 = vpack.c.bf16 %v887, %v886
        %v1231 = vlaneseq
        %v1232 = vshrl.u32 %v1231, 7
        %v1233 = vsub.s32 0, %v1232
        %v1234 = vrot.slane %v896, %v1233
        %v1235 = vlaneseq
        %v1236 = vshrl.u32 %v1235, 7
        %v1237 = vsub.s32 1, %v1236
        %v1238 = vrot.slane %v896, %v1237
        %v1249 = vunpack.c.l.b16 %v888
        %v1250 = vunpack.c.h.b16 %v888
        %v1251 = vunpack.c.l.b16 %v889
        %v1252 = vunpack.c.h.b16 %v889
        %v1253 = vunpack.c.l.b16 %v890
        %v1254 = vunpack.c.h.b16 %v890
        %v1255 = vunpack.c.l.b16 %v891
        %v1256 = vunpack.c.h.b16 %v891
        %v1257 = vunpack.c.l.b16 %v892
        %v1258 = vunpack.c.h.b16 %v892
        %v1259 = vunpack.c.l.b16 %v893
        %v1260 = vunpack.c.h.b16 %v893
        %v1261 = vunpack.c.l.b16 %v894
        %v1262 = vunpack.c.h.b16 %v894
        %v1263 = vunpack.c.l.b16 %v895
        %v1264 = vunpack.c.h.b16 %v895
        %v1265 = vpack.c.b16 %v1251, %v1249
        %v1266 = vpack.c.b16 %v1252, %v1250
        %v1267 = vpack.c.b16 %v1255, %v1253
        %v1268 = vpack.c.b16 %v1256, %v1254
        %v1269 = vpack.c.b16 %v1259, %v1257
        %v1270 = vpack.c.b16 %v1260, %v1258
        %v1271 = vpack.c.b16 %v1263, %v1261
        %v1272 = vpack.c.b16 %v1264, %v1262
        %vm1281 = vcmask 523264
        %v1283 = vsel %vm1281, %v1229, 0
        %1285 = vmatprep.subr.bf16.mxu0 %v1266
        %1286 = vmatpush1.bf16.msra.mxu0 %v1265
        %1287 = vmatprep.subr.bf16.mxu0 %v1268
        %1288 = vmatpush1.bf16.msra.mxu0 %v1267
        %1289 = vmatprep.subr.bf16.mxu0 %v1270
        %1290 = vmatpush1.bf16.msra.mxu0 %v1269
        %1291 = vmatprep.subr.bf16.mxu0 %v1272
        %1292 = vmatpush1.bf16.msra.mxu0 %v1271
        %1293 = vmatprep.subr.bf16.mxu0 0
        %1294 = vmatpush1.bf16.msra.mxu0 0
        %1295 = vmatprep.subr.bf16.mxu0 0
        %1296 = vmatpush1.bf16.msra.mxu0 0
        %1297 = vmatprep.subr.bf16.mxu0 0
        %1298 = vmatpush1.bf16.msra.mxu0 0
        %1299 = vmatprep.subr.bf16.mxu0 0
        %1300 = vmatpush1.bf16.msra.mxu0 0
        %1301 = vmatprep.subr.bf16.mxu0 0
        %1302 = vmatpush1.bf16.msra.mxu0 0
        %1303 = vmatprep.subr.bf16.mxu0 0
        %1304 = vmatpush1.bf16.msra.mxu0 0
        %1305 = vmatprep.subr.bf16.mxu0 0
        %1306 = vmatpush1.bf16.msra.mxu0 0
        %1307 = vmatprep.subr.bf16.mxu0 0
        %1308 = vmatpush1.bf16.msra.mxu0 0
        %1309 = vmatprep.subr.bf16.mxu0 0
        %1310 = vmatpush1.bf16.msra.mxu0 0
        %1311 = vmatprep.subr.bf16.mxu0 0
        %1312 = vmatpush1.bf16.msra.mxu0 0
        %1313 = vmatprep.subr.bf16.mxu0 0
        %1314 = vmatpush1.bf16.msra.mxu0 0
        %1315 = vmatprep.subr.bf16.mxu0 0
        %1316 = vmatpush1.bf16.msra.mxu0 0
        %1317 = vmatprep.mubr.bf16.mxu0 0
        %1318 = vmatmul.mubr.bf16.gmra.mrb[0].mxu0 %v1283
        %v1319 = vpop.f32.mrb[0].mxu0
        %v1320 = vadd.f32 %v1234, %v1319
        %v1321 = vpop.f32.mrb[0].mxu0
        %v1322 = vadd.f32 %v1238, %v1321
        %v1323 = vpop.f32.mrb[0].mxu0
        %v1324 = vadd.f32 %v1234, %v1323
        %v1325 = vpop.f32.mrb[0].mxu0
        %v1326 = vadd.f32 %v1238, %v1325
        %1327 = vdwg.mxu0
        %v1328 = vlaneseq
        %v1329 = vand.u32 %v1328, 127
        %v1330 = vlaneseq
        %v1331 = vshrl.u32 %v1330, 7
        %s1332 = smul.u32 %s53, 2
        %s1333 = sld [smem:[#allocation4 + %s1332]]
        %v1334 = vstv %s1333
        %s1335 = sadd.s32 %s1332, 1
        %s1336 = sld [smem:[#allocation4 + %s1335]]
        %v1337 = vstv %s1336
        %vm1338 = vcmp.lt.s32.totalorder %v1329, %v1334
        %vm1339 = vcmp.lt.s32.totalorder %v1329, %v1337
        %vm1340 = vcmp.le.s32.totalorder %v1329, %v1331
        %vm1341 = vmand %vm1338, %vm1340
        %vm1342 = vmand %vm1339, %vm1340
        %v1343 = vsel %vm1341, 0.0, -1e+09
        %v1344 = vsel %vm1342, 0.0, -1e+09
        %v1345 = vpack.c.bf16 %v1320, %v1320
        %v1346 = vpack.c.bf16 %v1324, %v1324
        %v1347 = vpack.c.bf16 %v1322, %v1322
        %v1348 = vpack.c.bf16 %v1326, %v1326
        %1350 = vrot.lane.b32.xlu0 %v1345, 64
        %v1351 = vpop.permute.xlu0 %1350
        %vm1352 = vcmask 130048
        %v1354 = vsel %vm1352, %v1345, 0
        %v1357 = vsel %vm1352, %v1351, 0
        %1359 = vmatprep.subr.bf16.mxu0 0
        %1360 = vmatpush1.bf16.xpose.msra.mxu0 %v1357
        %1361 = vmatprep.subr.bf16.mxu0 0
        %1362 = vmatpush1.bf16.xpose.msra.mxu0 0
        %1363 = vmatprep.subr.bf16.mxu0 0
        %1364 = vmatpush1.bf16.xpose.msra.mxu0 0
        %1365 = vmatprep.subr.bf16.mxu0 0
        %1366 = vmatpush1.bf16.xpose.msra.mxu0 0
        %1367 = vmatprep.subr.bf16.mxu0 0
        %1368 = vmatpush1.bf16.xpose.msra.mxu0 0
        %1369 = vmatprep.subr.bf16.mxu0 0
        %1370 = vmatpush1.bf16.xpose.msra.mxu0 0
        %1371 = vmatprep.subr.bf16.mxu0 0
        %1372 = vmatpush1.bf16.xpose.msra.mxu0 0
        %1373 = vmatprep.subr.bf16.mxu0 0
        %1374 = vmatpush1.bf16.xpose.msra.mxu0 0
        %1375 = vmatprep.subr.bf16.mxu0 0
        %1376 = vmatpush1.bf16.xpose.msra.mxu0 0
        %1377 = vmatprep.subr.bf16.mxu0 0
        %1378 = vmatpush1.bf16.xpose.msra.mxu0 0
        %1379 = vmatprep.subr.bf16.mxu0 0
        %1380 = vmatpush1.bf16.xpose.msra.mxu0 0
        %1381 = vmatprep.subr.bf16.mxu0 0
        %1382 = vmatpush1.bf16.xpose.msra.mxu0 0
        %1383 = vmatprep.subr.bf16.mxu0 0
        %1384 = vmatpush1.bf16.xpose.msra.mxu0 0
        %1385 = vmatprep.subr.bf16.mxu0 0
        %1386 = vmatpush1.bf16.xpose.msra.mxu0 0
        %1387 = vmatprep.subr.bf16.mxu0 0
        %1388 = vmatpush1.bf16.xpose.msra.mxu0 0
        %1389 = vmatprep.subr.bf16.mxu0 0
        %1390 = vmatpush1.bf16.xpose.msra.mxu0 0
        %1391 = vmatprep.mubr.bf16.mxu0 0
        %1392 = vmatmul.mubr.bf16.gmra.mrb[0].mxu0 %v1354
        %v1393 = vpop.f32.mrb[0].mxu0
        %v1394 = vadd.f32 %v1343, %v1393
        %v1395 = vpop.f32.mrb[0].mxu0
        %v1396 = vpop.f32.mrb[0].mxu0
        %v1397 = vpop.f32.mrb[0].mxu0
        %1398 = vdwg.mxu0
        %1400 = vrot.lane.b32.xlu0 %v1346, 64
        %v1401 = vpop.permute.xlu0 %1400
        %v1403 = vsel %vm1352, %v1346, 0
        %v1406 = vsel %vm1352, %v1401, 0
        %1408 = vmatprep.subr.bf16.mxu0 0
        %1409 = vmatpush1.bf16.xpose.msra.mxu0 %v1406
        %1410 = vmatprep.subr.bf16.mxu0 0
        %1411 = vmatpush1.bf16.xpose.msra.mxu0 0
        %1412 = vmatprep.subr.bf16.mxu0 0
        %1413 = vmatpush1.bf16.xpose.msra.mxu0 0
        %1414 = vmatprep.subr.bf16.mxu0 0
        %1415 = vmatpush1.bf16.xpose.msra.mxu0 0
        %1416 = vmatprep.subr.bf16.mxu0 0
        %1417 = vmatpush1.bf16.xpose.msra.mxu0 0
        %1418 = vmatprep.subr.bf16.mxu0 0
        %1419 = vmatpush1.bf16.xpose.msra.mxu0 0
        %1420 = vmatprep.subr.bf16.mxu0 0
        %1421 = vmatpush1.bf16.xpose.msra.mxu0 0
        %1422 = vmatprep.subr.bf16.mxu0 0
        %1423 = vmatpush1.bf16.xpose.msra.mxu0 0
        %1424 = vmatprep.subr.bf16.mxu0 0
        %1425 = vmatpush1.bf16.xpose.msra.mxu0 0
        %1426 = vmatprep.subr.bf16.mxu0 0
        %1427 = vmatpush1.bf16.xpose.msra.mxu0 0
        %1428 = vmatprep.subr.bf16.mxu0 0
        %1429 = vmatpush1.bf16.xpose.msra.mxu0 0
        %1430 = vmatprep.subr.bf16.mxu0 0
        %1431 = vmatpush1.bf16.xpose.msra.mxu0 0
        %1432 = vmatprep.subr.bf16.mxu0 0
        %1433 = vmatpush1.bf16.xpose.msra.mxu0 0
        %1434 = vmatprep.subr.bf16.mxu0 0
        %1435 = vmatpush1.bf16.xpose.msra.mxu0 0
        %1436 = vmatprep.subr.bf16.mxu0 0
        %1437 = vmatpush1.bf16.xpose.msra.mxu0 0
        %1438 = vmatprep.subr.bf16.mxu0 0
        %1439 = vmatpush1.bf16.xpose.msra.mxu0 0
        %1440 = vmatprep.mubr.bf16.mxu0 0
        %1441 = vmatmul.mubr.bf16.gmra.mrb[0].mxu0 %v1403
        %v1442 = vpop.f32.mrb[0].mxu0
        %v1443 = vadd.f32 %v1344, %v1442
        %v1444 = vpop.f32.mrb[0].mxu0
        %v1445 = vpop.f32.mrb[0].mxu0
        %v1446 = vpop.f32.mrb[0].mxu0
        %1447 = vdwg.mxu0
        %vm1448 = vcmask 64512
        %v1449 = vsel %vm1448, %v1394, -inf
        %1450 = vmax.xlane.f32.xlu0 %v1449
        %v1451 = vpop.xlane.xlu0 %1450
        %v1452 = vsel %vm1448, %v1443, -inf
        %1453 = vmax.xlane.f32.xlu0 %v1452
        %v1454 = vpop.xlane.xlu0 %1453
        %v1455 = vsub.f32 %v1394, %v1451
        %v1456 = vsub.f32 %v1443, %v1454
        %v1457 = vmul.f32 %v1455, 1.442695
        %v1458 = vpow.pop %v1457
        %v1459 = vmul.f32 %v1456, 1.442695
        %v1460 = vpow.pop %v1459
        %v1461 = vsel %vm1448, %v1458, 0.0
        %1462 = vadd.xlane.f32.xlu0 %v1461
        %v1463 = vpop.xlane.xlu0 %1462
        %v1464 = vsel %vm1448, %v1460, 0.0
        %1465 = vadd.xlane.f32.xlu0 %v1464
        %v1466 = vpop.xlane.xlu0 %1465
        %v1467 = vpack.c.bf16 %v1458, %v1458
        %v1468 = vpack.c.bf16 %v1460, %v1460
        %v1470 = vsel %vm1448, %v1467, 0
        %vm1472 = vcmask 1043456
        %v1474 = vsel %vm1472, %v1347, 0
        %1476 = vmatprep.subr.bf16.mxu0 0
        %1477 = vmatpush1.bf16.msra.mxu0 %v1474
        %1478 = vmatprep.subr.bf16.mxu0 0
        %1479 = vmatpush1.bf16.msra.mxu0 0
        %1480 = vmatprep.subr.bf16.mxu0 0
        %1481 = vmatpush1.bf16.msra.mxu0 0
        %1482 = vmatprep.subr.bf16.mxu0 0
        %1483 = vmatpush1.bf16.msra.mxu0 0
        %1484 = vmatprep.subr.bf16.mxu0 0
        %1485 = vmatpush1.bf16.msra.mxu0 0
        %1486 = vmatprep.subr.bf16.mxu0 0
        %1487 = vmatpush1.bf16.msra.mxu0 0
        %1488 = vmatprep.subr.bf16.mxu0 0
        %1489 = vmatpush1.bf16.msra.mxu0 0
        %1490 = vmatprep.subr.bf16.mxu0 0
        %1491 = vmatpush1.bf16.msra.mxu0 0
        %1492 = vmatprep.subr.bf16.mxu0 0
        %1493 = vmatpush1.bf16.msra.mxu0 0
        %1494 = vmatprep.subr.bf16.mxu0 0
        %1495 = vmatpush1.bf16.msra.mxu0 0
        %1496 = vmatprep.subr.bf16.mxu0 0
        %1497 = vmatpush1.bf16.msra.mxu0 0
        %1498 = vmatprep.subr.bf16.mxu0 0
        %1499 = vmatpush1.bf16.msra.mxu0 0
        %1500 = vmatprep.subr.bf16.mxu0 0
        %1501 = vmatpush1.bf16.msra.mxu0 0
        %1502 = vmatprep.subr.bf16.mxu0 0
        %1503 = vmatpush1.bf16.msra.mxu0 0
        %1504 = vmatprep.subr.bf16.mxu0 0
        %1505 = vmatpush1.bf16.msra.mxu0 0
        %1506 = vmatprep.subr.bf16.mxu0 0
        %1507 = vmatpush1.bf16.msra.mxu0 0
        %1508 = vmatprep.mubr.bf16.mxu0 0
        %1509 = vmatmul.mubr.bf16.gmra.mrb[0].mxu0 %v1470
        %v1510 = vpop.f32.mrb[0].mxu0
        %v1511 = vadd.f32 0.0, %v1510
        %v1512 = vpop.f32.mrb[0].mxu0
        %v1513 = vpop.f32.mrb[0].mxu0
        %v1514 = vpop.f32.mrb[0].mxu0
        %1515 = vdwg.mxu0
        %v1517 = vsel %vm1448, %v1468, 0
        %v1520 = vsel %vm1472, %v1348, 0
        %1522 = vmatprep.subr.bf16.mxu0 0
        %1523 = vmatpush1.bf16.msra.mxu0 %v1520
        %1524 = vmatprep.subr.bf16.mxu0 0
        %1525 = vmatpush1.bf16.msra.mxu0 0
        %1526 = vmatprep.subr.bf16.mxu0 0
        %1527 = vmatpush1.bf16.msra.mxu0 0
        %1528 = vmatprep.subr.bf16.mxu0 0
        %1529 = vmatpush1.bf16.msra.mxu0 0
        %1530 = vmatprep.subr.bf16.mxu0 0
        %1531 = vmatpush1.bf16.msra.mxu0 0
        %1532 = vmatprep.subr.bf16.mxu0 0
        %1533 = vmatpush1.bf16.msra.mxu0 0
        %1534 = vmatprep.subr.bf16.mxu0 0
        %1535 = vmatpush1.bf16.msra.mxu0 0
        %1536 = vmatprep.subr.bf16.mxu0 0
        %1537 = vmatpush1.bf16.msra.mxu0 0
        %1538 = vmatprep.subr.bf16.mxu0 0
        %1539 = vmatpush1.bf16.msra.mxu0 0
        %1540 = vmatprep.subr.bf16.mxu0 0
        %1541 = vmatpush1.bf16.msra.mxu0 0
        %1542 = vmatprep.subr.bf16.mxu0 0
        %1543 = vmatpush1.bf16.msra.mxu0 0
        %1544 = vmatprep.subr.bf16.mxu0 0
        %1545 = vmatpush1.bf16.msra.mxu0 0
        %1546 = vmatprep.subr.bf16.mxu0 0
        %1547 = vmatpush1.bf16.msra.mxu0 0
        %1548 = vmatprep.subr.bf16.mxu0 0
        %1549 = vmatpush1.bf16.msra.mxu0 0
        %1550 = vmatprep.subr.bf16.mxu0 0
        %1551 = vmatpush1.bf16.msra.mxu0 0
        %1552 = vmatprep.subr.bf16.mxu0 0
        %1553 = vmatpush1.bf16.msra.mxu0 0
        %1554 = vmatprep.mubr.bf16.mxu0 0
        %1555 = vmatmul.mubr.bf16.gmra.mrb[0].mxu0 %v1517
        %v1556 = vpop.f32.mrb[0].mxu0
        %v1557 = vadd.f32 0.0, %v1556
        %v1558 = vpop.f32.mrb[0].mxu0
        %v1559 = vpop.f32.mrb[0].mxu0
        %v1560 = vpop.f32.mrb[0].mxu0
        %1561 = vdwg.mxu0
        %v1562 = vrcp.pop %v1463
        %v1563 = vrcp.pop %v1466
        %v1564 = vmul.f32 %v1511, %v1562
        %v1565 = vmul.f32 %v1557, %v1563
        %v1566 = vpack.c.bf16 %v1565, %v1564
        %1567 = vrot.lane.b32.xlu0 %v1345, 112
        %v1568 = vpop.permute.xlu0 %1567
        %1569 = vrot.lane.b32.xlu0 %v1345, 48
        %v1570 = vpop.permute.xlu0 %1569
        %v1572 = vsel %vm1352, %v1568, 0
        %v1575 = vsel %vm1352, %v1570, 0
        %1577 = vmatprep.subr.bf16.mxu0 0
        %1578 = vmatpush1.bf16.xpose.msra.mxu0 %v1575
        %1579 = vmatprep.subr.bf16.mxu0 0
        %1580 = vmatpush1.bf16.xpose.msra.mxu0 0
        %1581 = vmatprep.subr.bf16.mxu0 0
        %1582 = vmatpush1.bf16.xpose.msra.mxu0 0
        %1583 = vmatprep.subr.bf16.mxu0 0
        %1584 = vmatpush1.bf16.xpose.msra.mxu0 0
        %1585 = vmatprep.subr.bf16.mxu0 0
        %1586 = vmatpush1.bf16.xpose.msra.mxu0 0
        %1587 = vmatprep.subr.bf16.mxu0 0
        %1588 = vmatpush1.bf16.xpose.msra.mxu0 0
        %1589 = vmatprep.subr.bf16.mxu0 0
        %1590 = vmatpush1.bf16.xpose.msra.mxu0 0
        %1591 = vmatprep.subr.bf16.mxu0 0
        %1592 = vmatpush1.bf16.xpose.msra.mxu0 0
        %1593 = vmatprep.subr.bf16.mxu0 0
        %1594 = vmatpush1.bf16.xpose.msra.mxu0 0
        %1595 = vmatprep.subr.bf16.mxu0 0
        %1596 = vmatpush1.bf16.xpose.msra.mxu0 0
        %1597 = vmatprep.subr.bf16.mxu0 0
        %1598 = vmatpush1.bf16.xpose.msra.mxu0 0
        %1599 = vmatprep.subr.bf16.mxu0 0
        %1600 = vmatpush1.bf16.xpose.msra.mxu0 0
        %1601 = vmatprep.subr.bf16.mxu0 0
        %1602 = vmatpush1.bf16.xpose.msra.mxu0 0
        %1603 = vmatprep.subr.bf16.mxu0 0
        %1604 = vmatpush1.bf16.xpose.msra.mxu0 0
        %1605 = vmatprep.subr.bf16.mxu0 0
        %1606 = vmatpush1.bf16.xpose.msra.mxu0 0
        %1607 = vmatprep.subr.bf16.mxu0 0
        %1608 = vmatpush1.bf16.xpose.msra.mxu0 0
        %1609 = vmatprep.mubr.bf16.mxu0 0
        %1610 = vmatmul.mubr.bf16.gmra.mrb[0].mxu0 %v1572
        %v1611 = vpop.f32.mrb[0].mxu0
        %v1612 = vadd.f32 %v1343, %v1611
        %v1613 = vpop.f32.mrb[0].mxu0
        %v1614 = vpop.f32.mrb[0].mxu0
        %v1615 = vpop.f32.mrb[0].mxu0
        %1616 = vdwg.mxu0
        %1617 = vrot.lane.b32.xlu0 %v1346, 112
        %v1618 = vpop.permute.xlu0 %1617
        %1619 = vrot.lane.b32.xlu0 %v1346, 48
        %v1620 = vpop.permute.xlu0 %1619
        %v1622 = vsel %vm1352, %v1618, 0
        %v1625 = vsel %vm1352, %v1620, 0
        %1627 = vmatprep.subr.bf16.mxu0 0
        %1628 = vmatpush1.bf16.xpose.msra.mxu0 %v1625
        %1629 = vmatprep.subr.bf16.mxu0 0
        %1630 = vmatpush1.bf16.xpose.msra.mxu0 0
        %1631 = vmatprep.subr.bf16.mxu0 0
        %1632 = vmatpush1.bf16.xpose.msra.mxu0 0
        %1633 = vmatprep.subr.bf16.mxu0 0
        %1634 = vmatpush1.bf16.xpose.msra.mxu0 0
        %1635 = vmatprep.subr.bf16.mxu0 0
        %1636 = vmatpush1.bf16.xpose.msra.mxu0 0
        %1637 = vmatprep.subr.bf16.mxu0 0
        %1638 = vmatpush1.bf16.xpose.msra.mxu0 0
        %1639 = vmatprep.subr.bf16.mxu0 0
        %1640 = vmatpush1.bf16.xpose.msra.mxu0 0
        %1641 = vmatprep.subr.bf16.mxu0 0
        %1642 = vmatpush1.bf16.xpose.msra.mxu0 0
        %1643 = vmatprep.subr.bf16.mxu0 0
        %1644 = vmatpush1.bf16.xpose.msra.mxu0 0
        %1645 = vmatprep.subr.bf16.mxu0 0
        %1646 = vmatpush1.bf16.xpose.msra.mxu0 0
        %1647 = vmatprep.subr.bf16.mxu0 0
        %1648 = vmatpush1.bf16.xpose.msra.mxu0 0
        %1649 = vmatprep.subr.bf16.mxu0 0
        %1650 = vmatpush1.bf16.xpose.msra.mxu0 0
        %1651 = vmatprep.subr.bf16.mxu0 0
        %1652 = vmatpush1.bf16.xpose.msra.mxu0 0
        %1653 = vmatprep.subr.bf16.mxu0 0
        %1654 = vmatpush1.bf16.xpose.msra.mxu0 0
        %1655 = vmatprep.subr.bf16.mxu0 0
        %1656 = vmatpush1.bf16.xpose.msra.mxu0 0
        %1657 = vmatprep.subr.bf16.mxu0 0
        %1658 = vmatpush1.bf16.xpose.msra.mxu0 0
        %1659 = vmatprep.mubr.bf16.mxu0 0
        %1660 = vmatmul.mubr.bf16.gmra.mrb[0].mxu0 %v1622
        %v1661 = vpop.f32.mrb[0].mxu0
        %v1662 = vadd.f32 %v1344, %v1661
        %v1663 = vpop.f32.mrb[0].mxu0
        %v1664 = vpop.f32.mrb[0].mxu0
        %v1665 = vpop.f32.mrb[0].mxu0
        %1666 = vdwg.mxu0
        %v1667 = vsel %vm1448, %v1612, -inf
        %1668 = vmax.xlane.f32.xlu0 %v1667
        %v1669 = vpop.xlane.xlu0 %1668
        %v1670 = vsel %vm1448, %v1662, -inf
        %1671 = vmax.xlane.f32.xlu0 %v1670
        %v1672 = vpop.xlane.xlu0 %1671
        %v1673 = vsub.f32 %v1612, %v1669
        %v1674 = vsub.f32 %v1662, %v1672
        %v1675 = vmul.f32 %v1673, 1.442695
        %v1676 = vpow.pop %v1675
        %v1677 = vmul.f32 %v1674, 1.442695
        %v1678 = vpow.pop %v1677
        %v1679 = vsel %vm1448, %v1676, 0.0
        %1680 = vadd.xlane.f32.xlu0 %v1679
        %v1681 = vpop.xlane.xlu0 %1680
        %v1682 = vsel %vm1448, %v1678, 0.0
        %1683 = vadd.xlane.f32.xlu0 %v1682
        %v1684 = vpop.xlane.xlu0 %1683
        %v1685 = vpack.c.bf16 %v1676, %v1676
        %v1686 = vpack.c.bf16 %v1678, %v1678
        %1688 = vrot.lane.b32.xlu0 %v1347, 112
        %v1689 = vpop.permute.xlu0 %1688
        %v1691 = vsel %vm1448, %v1685, 0
        %v1694 = vsel %vm1472, %v1689, 0
        %1696 = vmatprep.subr.bf16.mxu0 0
        %1697 = vmatpush1.bf16.msra.mxu0 %v1694
        %1698 = vmatprep.subr.bf16.mxu0 0
        %1699 = vmatpush1.bf16.msra.mxu0 0
        %1700 = vmatprep.subr.bf16.mxu0 0
        %1701 = vmatpush1.bf16.msra.mxu0 0
        %1702 = vmatprep.subr.bf16.mxu0 0
        %1703 = vmatpush1.bf16.msra.mxu0 0
        %1704 = vmatprep.subr.bf16.mxu0 0
        %1705 = vmatpush1.bf16.msra.mxu0 0
        %1706 = vmatprep.subr.bf16.mxu0 0
        %1707 = vmatpush1.bf16.msra.mxu0 0
        %1708 = vmatprep.subr.bf16.mxu0 0
        %1709 = vmatpush1.bf16.msra.mxu0 0
        %1710 = vmatprep.subr.bf16.mxu0 0
        %1711 = vmatpush1.bf16.msra.mxu0 0
        %1712 = vmatprep.subr.bf16.mxu0 0
        %1713 = vmatpush1.bf16.msra.mxu0 0
        %1714 = vmatprep.subr.bf16.mxu0 0
        %1715 = vmatpush1.bf16.msra.mxu0 0
        %1716 = vmatprep.subr.bf16.mxu0 0
        %1717 = vmatpush1.bf16.msra.mxu0 0
        %1718 = vmatprep.subr.bf16.mxu0 0
        %1719 = vmatpush1.bf16.msra.mxu0 0
        %1720 = vmatprep.subr.bf16.mxu0 0
        %1721 = vmatpush1.bf16.msra.mxu0 0
        %1722 = vmatprep.subr.bf16.mxu0 0
        %1723 = vmatpush1.bf16.msra.mxu0 0
        %1724 = vmatprep.subr.bf16.mxu0 0
        %1725 = vmatpush1.bf16.msra.mxu0 0
        %1726 = vmatprep.subr.bf16.mxu0 0
        %1727 = vmatpush1.bf16.msra.mxu0 0
        %1728 = vmatprep.mubr.bf16.mxu0 0
        %1729 = vmatmul.mubr.bf16.gmra.mrb[0].mxu0 %v1691
        %v1730 = vpop.f32.mrb[0].mxu0
        %v1731 = vadd.f32 0.0, %v1730
        %v1732 = vpop.f32.mrb[0].mxu0
        %v1733 = vpop.f32.mrb[0].mxu0
        %v1734 = vpop.f32.mrb[0].mxu0
        %1735 = vdwg.mxu0
        %1737 = vrot.lane.b32.xlu0 %v1348, 112
        %v1738 = vpop.permute.xlu0 %1737
        %v1740 = vsel %vm1448, %v1686, 0
        %v1743 = vsel %vm1472, %v1738, 0
        %1745 = vmatprep.subr.bf16.mxu0 0
        %1746 = vmatpush1.bf16.msra.mxu0 %v1743
        %1747 = vmatprep.subr.bf16.mxu0 0
        %1748 = vmatpush1.bf16.msra.mxu0 0
        %1749 = vmatprep.subr.bf16.mxu0 0
        %1750 = vmatpush1.bf16.msra.mxu0 0
        %1751 = vmatprep.subr.bf16.mxu0 0
        %1752 = vmatpush1.bf16.msra.mxu0 0
        %1753 = vmatprep.subr.bf16.mxu0 0
        %1754 = vmatpush1.bf16.msra.mxu0 0
        %1755 = vmatprep.subr.bf16.mxu0 0
        %1756 = vmatpush1.bf16.msra.mxu0 0
        %1757 = vmatprep.subr.bf16.mxu0 0
        %1758 = vmatpush1.bf16.msra.mxu0 0
        %1759 = vmatprep.subr.bf16.mxu0 0
        %1760 = vmatpush1.bf16.msra.mxu0 0
        %1761 = vmatprep.subr.bf16.mxu0 0
        %1762 = vmatpush1.bf16.msra.mxu0 0
        %1763 = vmatprep.subr.bf16.mxu0 0
        %1764 = vmatpush1.bf16.msra.mxu0 0
        %1765 = vmatprep.subr.bf16.mxu0 0
        %1766 = vmatpush1.bf16.msra.mxu0 0
        %1767 = vmatprep.subr.bf16.mxu0 0
        %1768 = vmatpush1.bf16.msra.mxu0 0
        %1769 = vmatprep.subr.bf16.mxu0 0
        %1770 = vmatpush1.bf16.msra.mxu0 0
        %1771 = vmatprep.subr.bf16.mxu0 0
        %1772 = vmatpush1.bf16.msra.mxu0 0
        %1773 = vmatprep.subr.bf16.mxu0 0
        %1774 = vmatpush1.bf16.msra.mxu0 0
        %1775 = vmatprep.subr.bf16.mxu0 0
        %1776 = vmatpush1.bf16.msra.mxu0 0
        %1777 = vmatprep.mubr.bf16.mxu0 0
        %1778 = vmatmul.mubr.bf16.gmra.mrb[0].mxu0 %v1740
        %v1779 = vpop.f32.mrb[0].mxu0
        %v1780 = vadd.f32 0.0, %v1779
        %v1781 = vpop.f32.mrb[0].mxu0
        %v1782 = vpop.f32.mrb[0].mxu0
        %v1783 = vpop.f32.mrb[0].mxu0
        %1784 = vdwg.mxu0
        %v1785 = vrcp.pop %v1681
        %v1786 = vrcp.pop %v1684
        %v1787 = vmul.f32 %v1731, %v1785
        %v1788 = vmul.f32 %v1780, %v1786
        %v1789 = vpack.c.bf16 %v1788, %v1787
        %v1792 = vunpack.c.l.b16 %v899
        %v1793 = vunpack.c.l.b16 %v900
        %v1794 = vpack.c.b16 %v1793, %v1792
        %v1797 = vsel %vm1352, %v1789, 0
        %1799 = vmatprep.subr.bf16.mxu0 0
        %1800 = vmatpush1.bf16.msra.mxu0 %v1794
        %1801 = vmatprep.subr.bf16.mxu0 0
        %1802 = vmatpush1.bf16.msra.mxu0 0
        %1803 = vmatprep.subr.bf16.mxu0 0
        %1804 = vmatpush1.bf16.msra.mxu0 0
        %1805 = vmatprep.subr.bf16.mxu0 0
        %1806 = vmatpush1.bf16.msra.mxu0 0
        %1807 = vmatprep.subr.bf16.mxu0 0
        %1808 = vmatpush1.bf16.msra.mxu0 0
        %1809 = vmatprep.subr.bf16.mxu0 0
        %1810 = vmatpush1.bf16.msra.mxu0 0
        %1811 = vmatprep.subr.bf16.mxu0 0
        %1812 = vmatpush1.bf16.msra.mxu0 0
        %1813 = vmatprep.subr.bf16.mxu0 0
        %1814 = vmatpush1.bf16.msra.mxu0 0
        %1815 = vmatprep.subr.bf16.mxu0 0
        %1816 = vmatpush1.bf16.msra.mxu0 0
        %1817 = vmatprep.subr.bf16.mxu0 0
        %1818 = vmatpush1.bf16.msra.mxu0 0
        %1819 = vmatprep.subr.bf16.mxu0 0
        %1820 = vmatpush1.bf16.msra.mxu0 0
        %1821 = vmatprep.subr.bf16.mxu0 0
        %1822 = vmatpush1.bf16.msra.mxu0 0
        %1823 = vmatprep.subr.bf16.mxu0 0
        %1824 = vmatpush1.bf16.msra.mxu0 0
        %1825 = vmatprep.subr.bf16.mxu0 0
        %1826 = vmatpush1.bf16.msra.mxu0 0
        %1827 = vmatprep.subr.bf16.mxu0 0
        %1828 = vmatpush1.bf16.msra.mxu0 0
        %1829 = vmatprep.subr.bf16.mxu0 0
        %1830 = vmatpush1.bf16.msra.mxu0 0
        %1831 = vmatprep.mubr.bf16.mxu0 0
        %1832 = vmatmul.mubr.bf16.gmra.mrb[0].mxu0 %v1797
        %v1833 = vpop.f32.mrb[0].mxu0
        %v1834 = vadd.f32 0.0, %v1833
        %v1835 = vpop.f32.mrb[0].mxu0
        %v1836 = vpop.f32.mrb[0].mxu0
        %v1837 = vadd.f32 0.0, %v1836
        %v1838 = vpop.f32.mrb[0].mxu0
        %1839 = vdwg.mxu0
        %v1842 = vunpack.c.l.b16 %v897
        %v1843 = vunpack.c.l.b16 %v898
        %v1844 = vpack.c.b16 %v1843, %v1842
        %v1847 = vsel %vm1352, %v1566, 0
        %1849 = vmatprep.subr.bf16.mxu0 0
        %1850 = vmatpush1.bf16.msra.mxu0 %v1844
        %1851 = vmatprep.subr.bf16.mxu0 0
        %1852 = vmatpush1.bf16.msra.mxu0 0
        %1853 = vmatprep.subr.bf16.mxu0 0
        %1854 = vmatpush1.bf16.msra.mxu0 0
        %1855 = vmatprep.subr.bf16.mxu0 0
        %1856 = vmatpush1.bf16.msra.mxu0 0
        %1857 = vmatprep.subr.bf16.mxu0 0
        %1858 = vmatpush1.bf16.msra.mxu0 0
        %1859 = vmatprep.subr.bf16.mxu0 0
        %1860 = vmatpush1.bf16.msra.mxu0 0
        %1861 = vmatprep.subr.bf16.mxu0 0
        %1862 = vmatpush1.bf16.msra.mxu0 0
        %1863 = vmatprep.subr.bf16.mxu0 0
        %1864 = vmatpush1.bf16.msra.mxu0 0
        %1865 = vmatprep.subr.bf16.mxu0 0
        %1866 = vmatpush1.bf16.msra.mxu0 0
        %1867 = vmatprep.subr.bf16.mxu0 0
        %1868 = vmatpush1.bf16.msra.mxu0 0
        %1869 = vmatprep.subr.bf16.mxu0 0
        %1870 = vmatpush1.bf16.msra.mxu0 0
        %1871 = vmatprep.subr.bf16.mxu0 0
        %1872 = vmatpush1.bf16.msra.mxu0 0
        %1873 = vmatprep.subr.bf16.mxu0 0
        %1874 = vmatpush1.bf16.msra.mxu0 0
        %1875 = vmatprep.subr.bf16.mxu0 0
        %1876 = vmatpush1.bf16.msra.mxu0 0
        %1877 = vmatprep.subr.bf16.mxu0 0
        %1878 = vmatpush1.bf16.msra.mxu0 0
        %1879 = vmatprep.subr.bf16.mxu0 0
        %1880 = vmatpush1.bf16.msra.mxu0 0
        %1881 = vmatprep.mubr.bf16.mxu0 0
        %1882 = vmatmul.mubr.bf16.gmra.mrb[0].mxu0 %v1847
        %v1883 = vpop.f32.mrb[0].mxu0
        %v1884 = vadd.f32 %v1834, %v1883
        %v1885 = vpop.f32.mrb[0].mxu0
        %v1886 = vpop.f32.mrb[0].mxu0
        %v1887 = vadd.f32 %v1837, %v1886
        %v1888 = vpop.f32.mrb[0].mxu0
        %1889 = vdwg.mxu0
        %1890 = vrot.lane.b32.xlu0 %v1345, 96
        %v1891 = vpop.permute.xlu0 %1890
        %1892 = vrot.lane.b32.xlu0 %v1345, 32
        %v1893 = vpop.permute.xlu0 %1892
        %v1895 = vsel %vm1352, %v1891, 0
        %v1898 = vsel %vm1352, %v1893, 0
        %1900 = vmatprep.subr.bf16.mxu0 0
        %1901 = vmatpush1.bf16.xpose.msra.mxu0 %v1898
        %1902 = vmatprep.subr.bf16.mxu0 0
        %1903 = vmatpush1.bf16.xpose.msra.mxu0 0
        %1904 = vmatprep.subr.bf16.mxu0 0
        %1905 = vmatpush1.bf16.xpose.msra.mxu0 0
        %1906 = vmatprep.subr.bf16.mxu0 0
        %1907 = vmatpush1.bf16.xpose.msra.mxu0 0
        %1908 = vmatprep.subr.bf16.mxu0 0
        %1909 = vmatpush1.bf16.xpose.msra.mxu0 0
        %1910 = vmatprep.subr.bf16.mxu0 0
        %1911 = vmatpush1.bf16.xpose.msra.mxu0 0
        %1912 = vmatprep.subr.bf16.mxu0 0
        %1913 = vmatpush1.bf16.xpose.msra.mxu0 0
        %1914 = vmatprep.subr.bf16.mxu0 0
        %1915 = vmatpush1.bf16.xpose.msra.mxu0 0
        %1916 = vmatprep.subr.bf16.mxu0 0
        %1917 = vmatpush1.bf16.xpose.msra.mxu0 0
        %1918 = vmatprep.subr.bf16.mxu0 0
        %1919 = vmatpush1.bf16.xpose.msra.mxu0 0
        %1920 = vmatprep.subr.bf16.mxu0 0
        %1921 = vmatpush1.bf16.xpose.msra.mxu0 0
        %1922 = vmatprep.subr.bf16.mxu0 0
        %1923 = vmatpush1.bf16.xpose.msra.mxu0 0
        %1924 = vmatprep.subr.bf16.mxu0 0
        %1925 = vmatpush1.bf16.xpose.msra.mxu0 0
        %1926 = vmatprep.subr.bf16.mxu0 0
        %1927 = vmatpush1.bf16.xpose.msra.mxu0 0
        %1928 = vmatprep.subr.bf16.mxu0 0
        %1929 = vmatpush1.bf16.xpose.msra.mxu0 0
        %1930 = vmatprep.subr.bf16.mxu0 0
        %1931 = vmatpush1.bf16.xpose.msra.mxu0 0
        %1932 = vmatprep.mubr.bf16.mxu0 0
        %1933 = vmatmul.mubr.bf16.gmra.mrb[0].mxu0 %v1895
        %v1934 = vpop.f32.mrb[0].mxu0
        %v1935 = vadd.f32 %v1343, %v1934
        %v1936 = vpop.f32.mrb[0].mxu0
        %v1937 = vpop.f32.mrb[0].mxu0
        %v1938 = vpop.f32.mrb[0].mxu0
        %1939 = vdwg.mxu0
        %1940 = vrot.lane.b32.xlu0 %v1346, 96
        %v1941 = vpop.permute.xlu0 %1940
        %1942 = vrot.lane.b32.xlu0 %v1346, 32
        %v1943 = vpop.permute.xlu0 %1942
        %v1945 = vsel %vm1352, %v1941, 0
        %v1948 = vsel %vm1352, %v1943, 0
        %1950 = vmatprep.subr.bf16.mxu0 0
        %1951 = vmatpush1.bf16.xpose.msra.mxu0 %v1948
        %1952 = vmatprep.subr.bf16.mxu0 0
        %1953 = vmatpush1.bf16.xpose.msra.mxu0 0
        %1954 = vmatprep.subr.bf16.mxu0 0
        %1955 = vmatpush1.bf16.xpose.msra.mxu0 0
        %1956 = vmatprep.subr.bf16.mxu0 0
        %1957 = vmatpush1.bf16.xpose.msra.mxu0 0
        %1958 = vmatprep.subr.bf16.mxu0 0
        %1959 = vmatpush1.bf16.xpose.msra.mxu0 0
        %1960 = vmatprep.subr.bf16.mxu0 0
        %1961 = vmatpush1.bf16.xpose.msra.mxu0 0
        %1962 = vmatprep.subr.bf16.mxu0 0
        %1963 = vmatpush1.bf16.xpose.msra.mxu0 0
        %1964 = vmatprep.subr.bf16.mxu0 0
        %1965 = vmatpush1.bf16.xpose.msra.mxu0 0
        %1966 = vmatprep.subr.bf16.mxu0 0
        %1967 = vmatpush1.bf16.xpose.msra.mxu0 0
        %1968 = vmatprep.subr.bf16.mxu0 0
        %1969 = vmatpush1.bf16.xpose.msra.mxu0 0
        %1970 = vmatprep.subr.bf16.mxu0 0
        %1971 = vmatpush1.bf16.xpose.msra.mxu0 0
        %1972 = vmatprep.subr.bf16.mxu0 0
        %1973 = vmatpush1.bf16.xpose.msra.mxu0 0
        %1974 = vmatprep.subr.bf16.mxu0 0
        %1975 = vmatpush1.bf16.xpose.msra.mxu0 0
        %1976 = vmatprep.subr.bf16.mxu0 0
        %1977 = vmatpush1.bf16.xpose.msra.mxu0 0
        %1978 = vmatprep.subr.bf16.mxu0 0
        %1979 = vmatpush1.bf16.xpose.msra.mxu0 0
        %1980 = vmatprep.subr.bf16.mxu0 0
        %1981 = vmatpush1.bf16.xpose.msra.mxu0 0
        %1982 = vmatprep.mubr.bf16.mxu0 0
        %1983 = vmatmul.mubr.bf16.gmra.mrb[0].mxu0 %v1945
        %v1984 = vpop.f32.mrb[0].mxu0
        %v1985 = vadd.f32 %v1344, %v1984
        %v1986 = vpop.f32.mrb[0].mxu0
        %v1987 = vpop.f32.mrb[0].mxu0
        %v1988 = vpop.f32.mrb[0].mxu0
        %1989 = vdwg.mxu0
        %v1990 = vsel %vm1448, %v1935, -inf
        %1991 = vmax.xlane.f32.xlu0 %v1990
        %v1992 = vpop.xlane.xlu0 %1991
        %v1993 = vsel %vm1448, %v1985, -inf
        %1994 = vmax.xlane.f32.xlu0 %v1993
        %v1995 = vpop.xlane.xlu0 %1994
        %v1996 = vsub.f32 %v1935, %v1992
        %v1997 = vsub.f32 %v1985, %v1995
        %v1998 = vmul.f32 %v1996, 1.442695
        %v1999 = vpow.pop %v1998
        %v2000 = vmul.f32 %v1997, 1.442695
        %v2001 = vpow.pop %v2000
        %v2002 = vsel %vm1448, %v1999, 0.0
        %2003 = vadd.xlane.f32.xlu0 %v2002
        %v2004 = vpop.xlane.xlu0 %2003
        %v2005 = vsel %vm1448, %v2001, 0.0
        %2006 = vadd.xlane.f32.xlu0 %v2005
        %v2007 = vpop.xlane.xlu0 %2006
        %v2008 = vpack.c.bf16 %v1999, %v1999
        %v2009 = vpack.c.bf16 %v2001, %v2001
        %2010 = vrot.lane.b32.xlu0 %v1347, 96
        %v2011 = vpop.permute.xlu0 %2010
        %v2013 = vsel %vm1448, %v2008, 0
        %v2016 = vsel %vm1472, %v2011, 0
        %2018 = vmatprep.subr.bf16.mxu0 0
        %2019 = vmatpush1.bf16.msra.mxu0 %v2016
        %2020 = vmatprep.subr.bf16.mxu0 0
        %2021 = vmatpush1.bf16.msra.mxu0 0
        %2022 = vmatprep.subr.bf16.mxu0 0
        %2023 = vmatpush1.bf16.msra.mxu0 0
        %2024 = vmatprep.subr.bf16.mxu0 0
        %2025 = vmatpush1.bf16.msra.mxu0 0
        %2026 = vmatprep.subr.bf16.mxu0 0
        %2027 = vmatpush1.bf16.msra.mxu0 0
        %2028 = vmatprep.subr.bf16.mxu0 0
        %2029 = vmatpush1.bf16.msra.mxu0 0
        %2030 = vmatprep.subr.bf16.mxu0 0
        %2031 = vmatpush1.bf16.msra.mxu0 0
        %2032 = vmatprep.subr.bf16.mxu0 0
        %2033 = vmatpush1.bf16.msra.mxu0 0
        %2034 = vmatprep.subr.bf16.mxu0 0
        %2035 = vmatpush1.bf16.msra.mxu0 0
        %2036 = vmatprep.subr.bf16.mxu0 0
        %2037 = vmatpush1.bf16.msra.mxu0 0
        %2038 = vmatprep.subr.bf16.mxu0 0
        %2039 = vmatpush1.bf16.msra.mxu0 0
        %2040 = vmatprep.subr.bf16.mxu0 0
        %2041 = vmatpush1.bf16.msra.mxu0 0
        %2042 = vmatprep.subr.bf16.mxu0 0
        %2043 = vmatpush1.bf16.msra.mxu0 0
        %2044 = vmatprep.subr.bf16.mxu0 0
        %2045 = vmatpush1.bf16.msra.mxu0 0
        %2046 = vmatprep.subr.bf16.mxu0 0
        %2047 = vmatpush1.bf16.msra.mxu0 0
        %2048 = vmatprep.subr.bf16.mxu0 0
        %2049 = vmatpush1.bf16.msra.mxu0 0
        %2050 = vmatprep.mubr.bf16.mxu0 0
        %2051 = vmatmul.mubr.bf16.gmra.mrb[0].mxu0 %v2013
        %v2052 = vpop.f32.mrb[0].mxu0
        %v2053 = vadd.f32 0.0, %v2052
        %v2054 = vpop.f32.mrb[0].mxu0
        %v2055 = vpop.f32.mrb[0].mxu0
        %v2056 = vpop.f32.mrb[0].mxu0
        %2057 = vdwg.mxu0
        %2058 = vrot.lane.b32.xlu0 %v1348, 96
        %v2059 = vpop.permute.xlu0 %2058
        %v2061 = vsel %vm1448, %v2009, 0
        %v2064 = vsel %vm1472, %v2059, 0
        %2066 = vmatprep.subr.bf16.mxu0 0
        %2067 = vmatpush1.bf16.msra.mxu0 %v2064
        %2068 = vmatprep.subr.bf16.mxu0 0
        %2069 = vmatpush1.bf16.msra.mxu0 0
        %2070 = vmatprep.subr.bf16.mxu0 0
        %2071 = vmatpush1.bf16.msra.mxu0 0
        %2072 = vmatprep.subr.bf16.mxu0 0
        %2073 = vmatpush1.bf16.msra.mxu0 0
        %2074 = vmatprep.subr.bf16.mxu0 0
        %2075 = vmatpush1.bf16.msra.mxu0 0
        %2076 = vmatprep.subr.bf16.mxu0 0
        %2077 = vmatpush1.bf16.msra.mxu0 0
        %2078 = vmatprep.subr.bf16.mxu0 0
        %2079 = vmatpush1.bf16.msra.mxu0 0
        %2080 = vmatprep.subr.bf16.mxu0 0
        %2081 = vmatpush1.bf16.msra.mxu0 0
        %2082 = vmatprep.subr.bf16.mxu0 0
        %2083 = vmatpush1.bf16.msra.mxu0 0
        %2084 = vmatprep.subr.bf16.mxu0 0
        %2085 = vmatpush1.bf16.msra.mxu0 0
        %2086 = vmatprep.subr.bf16.mxu0 0
        %2087 = vmatpush1.bf16.msra.mxu0 0
        %2088 = vmatprep.subr.bf16.mxu0 0
        %2089 = vmatpush1.bf16.msra.mxu0 0
        %2090 = vmatprep.subr.bf16.mxu0 0
        %2091 = vmatpush1.bf16.msra.mxu0 0
        %2092 = vmatprep.subr.bf16.mxu0 0
        %2093 = vmatpush1.bf16.msra.mxu0 0
        %2094 = vmatprep.subr.bf16.mxu0 0
        %2095 = vmatpush1.bf16.msra.mxu0 0
        %2096 = vmatprep.subr.bf16.mxu0 0
        %2097 = vmatpush1.bf16.msra.mxu0 0
        %2098 = vmatprep.mubr.bf16.mxu0 0
        %2099 = vmatmul.mubr.bf16.gmra.mrb[0].mxu0 %v2061
        %v2100 = vpop.f32.mrb[0].mxu0
        %v2101 = vadd.f32 0.0, %v2100
        %v2102 = vpop.f32.mrb[0].mxu0
        %v2103 = vpop.f32.mrb[0].mxu0
        %v2104 = vpop.f32.mrb[0].mxu0
        %2105 = vdwg.mxu0
        %v2106 = vrcp.pop %v2004
        %v2107 = vrcp.pop %v2007
        %v2108 = vmul.f32 %v2053, %v2106
        %v2109 = vmul.f32 %v2101, %v2107
        %v2110 = vpack.c.bf16 %v2109, %v2108
        %v2113 = vunpack.c.l.b16 %v901
        %v2114 = vunpack.c.l.b16 %v902
        %v2115 = vpack.c.b16 %v2114, %v2113
        %v2118 = vsel %vm1352, %v2110, 0
        %2120 = vmatprep.subr.bf16.mxu0 0
        %2121 = vmatpush1.bf16.msra.mxu0 %v2115
        %2122 = vmatprep.subr.bf16.mxu0 0
        %2123 = vmatpush1.bf16.msra.mxu0 0
        %2124 = vmatprep.subr.bf16.mxu0 0
        %2125 = vmatpush1.bf16.msra.mxu0 0
        %2126 = vmatprep.subr.bf16.mxu0 0
        %2127 = vmatpush1.bf16.msra.mxu0 0
        %2128 = vmatprep.subr.bf16.mxu0 0
        %2129 = vmatpush1.bf16.msra.mxu0 0
        %2130 = vmatprep.subr.bf16.mxu0 0
        %2131 = vmatpush1.bf16.msra.mxu0 0
        %2132 = vmatprep.subr.bf16.mxu0 0
        %2133 = vmatpush1.bf16.msra.mxu0 0
        %2134 = vmatprep.subr.bf16.mxu0 0
        %2135 = vmatpush1.bf16.msra.mxu0 0
        %2136 = vmatprep.subr.bf16.mxu0 0
        %2137 = vmatpush1.bf16.msra.mxu0 0
        %2138 = vmatprep.subr.bf16.mxu0 0
        %2139 = vmatpush1.bf16.msra.mxu0 0
        %2140 = vmatprep.subr.bf16.mxu0 0
        %2141 = vmatpush1.bf16.msra.mxu0 0
        %2142 = vmatprep.subr.bf16.mxu0 0
        %2143 = vmatpush1.bf16.msra.mxu0 0
        %2144 = vmatprep.subr.bf16.mxu0 0
        %2145 = vmatpush1.bf16.msra.mxu0 0
        %2146 = vmatprep.subr.bf16.mxu0 0
        %2147 = vmatpush1.bf16.msra.mxu0 0
        %2148 = vmatprep.subr.bf16.mxu0 0
        %2149 = vmatpush1.bf16.msra.mxu0 0
        %2150 = vmatprep.subr.bf16.mxu0 0
        %2151 = vmatpush1.bf16.msra.mxu0 0
        %2152 = vmatprep.mubr.bf16.mxu0 0
        %2153 = vmatmul.mubr.bf16.gmra.mrb[0].mxu0 %v2118
        %v2154 = vpop.f32.mrb[0].mxu0
        %v2155 = vadd.f32 0.0, %v2154
        %v2156 = vpop.f32.mrb[0].mxu0
        %v2157 = vpop.f32.mrb[0].mxu0
        %v2158 = vadd.f32 0.0, %v2157
        %v2159 = vpop.f32.mrb[0].mxu0
        %2160 = vdwg.mxu0
        %v2161 = vadd.f32 %v1884, %v2155
        %v2162 = vadd.f32 %v1887, %v2158
        %2163 = vrot.lane.b32.xlu0 %v1345, 80
        %v2164 = vpop.permute.xlu0 %2163
        %2165 = vrot.lane.b32.xlu0 %v1345, 16
        %v2166 = vpop.permute.xlu0 %2165
        %v2168 = vsel %vm1352, %v2164, 0
        %v2171 = vsel %vm1352, %v2166, 0
        %2173 = vmatprep.subr.bf16.mxu0 0
        %2174 = vmatpush1.bf16.xpose.msra.mxu0 %v2171
        %2175 = vmatprep.subr.bf16.mxu0 0
        %2176 = vmatpush1.bf16.xpose.msra.mxu0 0
        %2177 = vmatprep.subr.bf16.mxu0 0
        %2178 = vmatpush1.bf16.xpose.msra.mxu0 0
        %2179 = vmatprep.subr.bf16.mxu0 0
        %2180 = vmatpush1.bf16.xpose.msra.mxu0 0
        %2181 = vmatprep.subr.bf16.mxu0 0
        %2182 = vmatpush1.bf16.xpose.msra.mxu0 0
        %2183 = vmatprep.subr.bf16.mxu0 0
        %2184 = vmatpush1.bf16.xpose.msra.mxu0 0
        %2185 = vmatprep.subr.bf16.mxu0 0
        %2186 = vmatpush1.bf16.xpose.msra.mxu0 0
        %2187 = vmatprep.subr.bf16.mxu0 0
        %2188 = vmatpush1.bf16.xpose.msra.mxu0 0
        %2189 = vmatprep.subr.bf16.mxu0 0
        %2190 = vmatpush1.bf16.xpose.msra.mxu0 0
        %2191 = vmatprep.subr.bf16.mxu0 0
        %2192 = vmatpush1.bf16.xpose.msra.mxu0 0
        %2193 = vmatprep.subr.bf16.mxu0 0
        %2194 = vmatpush1.bf16.xpose.msra.mxu0 0
        %2195 = vmatprep.subr.bf16.mxu0 0
        %2196 = vmatpush1.bf16.xpose.msra.mxu0 0
        %2197 = vmatprep.subr.bf16.mxu0 0
        %2198 = vmatpush1.bf16.xpose.msra.mxu0 0
        %2199 = vmatprep.subr.bf16.mxu0 0
        %2200 = vmatpush1.bf16.xpose.msra.mxu0 0
        %2201 = vmatprep.subr.bf16.mxu0 0
        %2202 = vmatpush1.bf16.xpose.msra.mxu0 0
        %2203 = vmatprep.subr.bf16.mxu0 0
        %2204 = vmatpush1.bf16.xpose.msra.mxu0 0
        %2205 = vmatprep.mubr.bf16.mxu0 0
        %2206 = vmatmul.mubr.bf16.gmra.mrb[0].mxu0 %v2168
        %v2207 = vpop.f32.mrb[0].mxu0
        %v2208 = vadd.f32 %v1343, %v2207
        %v2209 = vpop.f32.mrb[0].mxu0
        %v2210 = vpop.f32.mrb[0].mxu0
        %v2211 = vpop.f32.mrb[0].mxu0
        %2212 = vdwg.mxu0
        %2213 = vrot.lane.b32.xlu0 %v1346, 80
        %v2214 = vpop.permute.xlu0 %2213
        %2215 = vrot.lane.b32.xlu0 %v1346, 16
        %v2216 = vpop.permute.xlu0 %2215
        %v2218 = vsel %vm1352, %v2214, 0
        %v2221 = vsel %vm1352, %v2216, 0
        %2223 = vmatprep.subr.bf16.mxu0 0
        %2224 = vmatpush1.bf16.xpose.msra.mxu0 %v2221
        %2225 = vmatprep.subr.bf16.mxu0 0
        %2226 = vmatpush1.bf16.xpose.msra.mxu0 0
        %2227 = vmatprep.subr.bf16.mxu0 0
        %2228 = vmatpush1.bf16.xpose.msra.mxu0 0
        %2229 = vmatprep.subr.bf16.mxu0 0
        %2230 = vmatpush1.bf16.xpose.msra.mxu0 0
        %2231 = vmatprep.subr.bf16.mxu0 0
        %2232 = vmatpush1.bf16.xpose.msra.mxu0 0
        %2233 = vmatprep.subr.bf16.mxu0 0
        %2234 = vmatpush1.bf16.xpose.msra.mxu0 0
        %2235 = vmatprep.subr.bf16.mxu0 0
        %2236 = vmatpush1.bf16.xpose.msra.mxu0 0
        %2237 = vmatprep.subr.bf16.mxu0 0
        %2238 = vmatpush1.bf16.xpose.msra.mxu0 0
        %2239 = vmatprep.subr.bf16.mxu0 0
        %2240 = vmatpush1.bf16.xpose.msra.mxu0 0
        %2241 = vmatprep.subr.bf16.mxu0 0
        %2242 = vmatpush1.bf16.xpose.msra.mxu0 0
        %2243 = vmatprep.subr.bf16.mxu0 0
        %2244 = vmatpush1.bf16.xpose.msra.mxu0 0
        %2245 = vmatprep.subr.bf16.mxu0 0
        %2246 = vmatpush1.bf16.xpose.msra.mxu0 0
        %2247 = vmatprep.subr.bf16.mxu0 0
        %2248 = vmatpush1.bf16.xpose.msra.mxu0 0
        %2249 = vmatprep.subr.bf16.mxu0 0
        %2250 = vmatpush1.bf16.xpose.msra.mxu0 0
        %2251 = vmatprep.subr.bf16.mxu0 0
        %2252 = vmatpush1.bf16.xpose.msra.mxu0 0
        %2253 = vmatprep.subr.bf16.mxu0 0
        %2254 = vmatpush1.bf16.xpose.msra.mxu0 0
        %2255 = vmatprep.mubr.bf16.mxu0 0
        %2256 = vmatmul.mubr.bf16.gmra.mrb[0].mxu0 %v2218
        %v2257 = vpop.f32.mrb[0].mxu0
        %v2258 = vadd.f32 %v1344, %v2257
        %v2259 = vpop.f32.mrb[0].mxu0
        %v2260 = vpop.f32.mrb[0].mxu0
        %v2261 = vpop.f32.mrb[0].mxu0
        %2262 = vdwg.mxu0
        %v2263 = vsel %vm1448, %v2208, -inf
        %2264 = vmax.xlane.f32.xlu0 %v2263
        %v2265 = vpop.xlane.xlu0 %2264
        %v2266 = vsel %vm1448, %v2258, -inf
        %2267 = vmax.xlane.f32.xlu0 %v2266
        %v2268 = vpop.xlane.xlu0 %2267
        %v2269 = vsub.f32 %v2208, %v2265
        %v2270 = vsub.f32 %v2258, %v2268
        %v2271 = vmul.f32 %v2269, 1.442695
        %v2272 = vpow.pop %v2271
        %v2273 = vmul.f32 %v2270, 1.442695
        %v2274 = vpow.pop %v2273
        %v2275 = vsel %vm1448, %v2272, 0.0
        %2276 = vadd.xlane.f32.xlu0 %v2275
        %v2277 = vpop.xlane.xlu0 %2276
        %v2278 = vsel %vm1448, %v2274, 0.0
        %2279 = vadd.xlane.f32.xlu0 %v2278
        %v2280 = vpop.xlane.xlu0 %2279
        %v2281 = vpack.c.bf16 %v2272, %v2272
        %v2282 = vpack.c.bf16 %v2274, %v2274
        %2283 = vrot.lane.b32.xlu0 %v1347, 80
        %v2284 = vpop.permute.xlu0 %2283
        %v2286 = vsel %vm1448, %v2281, 0
        %v2289 = vsel %vm1472, %v2284, 0
        %2291 = vmatprep.subr.bf16.mxu0 0
        %2292 = vmatpush1.bf16.msra.mxu0 %v2289
        %2293 = vmatprep.subr.bf16.mxu0 0
        %2294 = vmatpush1.bf16.msra.mxu0 0
        %2295 = vmatprep.subr.bf16.mxu0 0
        %2296 = vmatpush1.bf16.msra.mxu0 0
        %2297 = vmatprep.subr.bf16.mxu0 0
        %2298 = vmatpush1.bf16.msra.mxu0 0
        %2299 = vmatprep.subr.bf16.mxu0 0
        %2300 = vmatpush1.bf16.msra.mxu0 0
        %2301 = vmatprep.subr.bf16.mxu0 0
        %2302 = vmatpush1.bf16.msra.mxu0 0
        %2303 = vmatprep.subr.bf16.mxu0 0
        %2304 = vmatpush1.bf16.msra.mxu0 0
        %2305 = vmatprep.subr.bf16.mxu0 0
        %2306 = vmatpush1.bf16.msra.mxu0 0
        %2307 = vmatprep.subr.bf16.mxu0 0
        %2308 = vmatpush1.bf16.msra.mxu0 0
        %2309 = vmatprep.subr.bf16.mxu0 0
        %2310 = vmatpush1.bf16.msra.mxu0 0
        %2311 = vmatprep.subr.bf16.mxu0 0
        %2312 = vmatpush1.bf16.msra.mxu0 0
        %2313 = vmatprep.subr.bf16.mxu0 0
        %2314 = vmatpush1.bf16.msra.mxu0 0
        %2315 = vmatprep.subr.bf16.mxu0 0
        %2316 = vmatpush1.bf16.msra.mxu0 0
        %2317 = vmatprep.subr.bf16.mxu0 0
        %2318 = vmatpush1.bf16.msra.mxu0 0
        %2319 = vmatprep.subr.bf16.mxu0 0
        %2320 = vmatpush1.bf16.msra.mxu0 0
        %2321 = vmatprep.subr.bf16.mxu0 0
        %2322 = vmatpush1.bf16.msra.mxu0 0
        %2323 = vmatprep.mubr.bf16.mxu0 0
        %2324 = vmatmul.mubr.bf16.gmra.mrb[0].mxu0 %v2286
        %v2325 = vpop.f32.mrb[0].mxu0
        %v2326 = vadd.f32 0.0, %v2325
        %v2327 = vpop.f32.mrb[0].mxu0
        %v2328 = vpop.f32.mrb[0].mxu0
        %v2329 = vpop.f32.mrb[0].mxu0
        %2330 = vdwg.mxu0
        %2331 = vrot.lane.b32.xlu0 %v1348, 80
        %v2332 = vpop.permute.xlu0 %2331
        %v2334 = vsel %vm1448, %v2282, 0
        %v2337 = vsel %vm1472, %v2332, 0
        %2339 = vmatprep.subr.bf16.mxu0 0
        %2340 = vmatpush1.bf16.msra.mxu0 %v2337
        %2341 = vmatprep.subr.bf16.mxu0 0
        %2342 = vmatpush1.bf16.msra.mxu0 0
        %2343 = vmatprep.subr.bf16.mxu0 0
        %2344 = vmatpush1.bf16.msra.mxu0 0
        %2345 = vmatprep.subr.bf16.mxu0 0
        %2346 = vmatpush1.bf16.msra.mxu0 0
        %2347 = vmatprep.subr.bf16.mxu0 0
        %2348 = vmatpush1.bf16.msra.mxu0 0
        %2349 = vmatprep.subr.bf16.mxu0 0
        %2350 = vmatpush1.bf16.msra.mxu0 0
        %2351 = vmatprep.subr.bf16.mxu0 0
        %2352 = vmatpush1.bf16.msra.mxu0 0
        %2353 = vmatprep.subr.bf16.mxu0 0
        %2354 = vmatpush1.bf16.msra.mxu0 0
        %2355 = vmatprep.subr.bf16.mxu0 0
        %2356 = vmatpush1.bf16.msra.mxu0 0
        %2357 = vmatprep.subr.bf16.mxu0 0
        %2358 = vmatpush1.bf16.msra.mxu0 0
        %2359 = vmatprep.subr.bf16.mxu0 0
        %2360 = vmatpush1.bf16.msra.mxu0 0
        %2361 = vmatprep.subr.bf16.mxu0 0
        %2362 = vmatpush1.bf16.msra.mxu0 0
        %2363 = vmatprep.subr.bf16.mxu0 0
        %2364 = vmatpush1.bf16.msra.mxu0 0
        %2365 = vmatprep.subr.bf16.mxu0 0
        %2366 = vmatpush1.bf16.msra.mxu0 0
        %2367 = vmatprep.subr.bf16.mxu0 0
        %2368 = vmatpush1.bf16.msra.mxu0 0
        %2369 = vmatprep.subr.bf16.mxu0 0
        %2370 = vmatpush1.bf16.msra.mxu0 0
        %2371 = vmatprep.mubr.bf16.mxu0 0
        %2372 = vmatmul.mubr.bf16.gmra.mrb[0].mxu0 %v2334
        %v2373 = vpop.f32.mrb[0].mxu0
        %v2374 = vadd.f32 0.0, %v2373
        %v2375 = vpop.f32.mrb[0].mxu0
        %v2376 = vpop.f32.mrb[0].mxu0
        %v2377 = vpop.f32.mrb[0].mxu0
        %2378 = vdwg.mxu0
        %v2379 = vrcp.pop %v2277
        %v2380 = vrcp.pop %v2280
        %v2381 = vmul.f32 %v2326, %v2379
        %v2382 = vmul.f32 %v2374, %v2380
        %v2383 = vpack.c.bf16 %v2382, %v2381
        %v2386 = vunpack.c.l.b16 %v903
        %v2387 = vunpack.c.l.b16 %v904
        %v2388 = vpack.c.b16 %v2387, %v2386
        %v2391 = vsel %vm1352, %v2383, 0
        %2393 = vmatprep.subr.bf16.mxu0 0
        %2394 = vmatpush1.bf16.msra.mxu0 %v2388
        %2395 = vmatprep.subr.bf16.mxu0 0
        %2396 = vmatpush1.bf16.msra.mxu0 0
        %2397 = vmatprep.subr.bf16.mxu0 0
        %2398 = vmatpush1.bf16.msra.mxu0 0
        %2399 = vmatprep.subr.bf16.mxu0 0
        %2400 = vmatpush1.bf16.msra.mxu0 0
        %2401 = vmatprep.subr.bf16.mxu0 0
        %2402 = vmatpush1.bf16.msra.mxu0 0
        %2403 = vmatprep.subr.bf16.mxu0 0
        %2404 = vmatpush1.bf16.msra.mxu0 0
        %2405 = vmatprep.subr.bf16.mxu0 0
        %2406 = vmatpush1.bf16.msra.mxu0 0
        %2407 = vmatprep.subr.bf16.mxu0 0
        %2408 = vmatpush1.bf16.msra.mxu0 0
        %2409 = vmatprep.subr.bf16.mxu0 0
        %2410 = vmatpush1.bf16.msra.mxu0 0
        %2411 = vmatprep.subr.bf16.mxu0 0
        %2412 = vmatpush1.bf16.msra.mxu0 0
        %2413 = vmatprep.subr.bf16.mxu0 0
        %2414 = vmatpush1.bf16.msra.mxu0 0
        %2415 = vmatprep.subr.bf16.mxu0 0
        %2416 = vmatpush1.bf16.msra.mxu0 0
        %2417 = vmatprep.subr.bf16.mxu0 0
        %2418 = vmatpush1.bf16.msra.mxu0 0
        %2419 = vmatprep.subr.bf16.mxu0 0
        %2420 = vmatpush1.bf16.msra.mxu0 0
        %2421 = vmatprep.subr.bf16.mxu0 0
        %2422 = vmatpush1.bf16.msra.mxu0 0
        %2423 = vmatprep.subr.bf16.mxu0 0
        %2424 = vmatpush1.bf16.msra.mxu0 0
        %2425 = vmatprep.mubr.bf16.mxu0 0
        %2426 = vmatmul.mubr.bf16.gmra.mrb[0].mxu0 %v2391
        %v2427 = vpop.f32.mrb[0].mxu0
        %v2428 = vadd.f32 0.0, %v2427
        %v2429 = vpop.f32.mrb[0].mxu0
        %v2430 = vpop.f32.mrb[0].mxu0
        %v2431 = vadd.f32 0.0, %v2430
        %v2432 = vpop.f32.mrb[0].mxu0
        %2433 = vdwg.mxu0
        %v2434 = vadd.f32 %v2161, %v2428
        %v2435 = vadd.f32 %v2162, %v2431
        %v2437 = vlaneseq
        %v2438 = vshrl.u32 %v2437, 7
        %v2439 = vsub.s32 0, %v2438
        %v2440 = vrot.slane %v905, %v2439
        %v2442 = vadd.f32 %v2434, %v2440
        %v2443 = vadd.f32 %v2435, %v2440
        %v2444 = vadd.f32 %v886, %v2442
        %v2445 = vadd.f32 %v887, %v2443
        %v2446 = vsel %vm1281, %v2444, 0.0
        %2447 = vadd.xlane.f32.xlu0 %v2446
        %v2448 = vpop.xlane.xlu0 %2447
        %v2449 = vsel %vm1281, %v2445, 0.0
        %2450 = vadd.xlane.f32.xlu0 %v2449
        %v2451 = vpop.xlane.xlu0 %2450
        %v2452 = vrcp.pop 64.0
        %v2453 = vmul.f32 %v2448, %v2452
        %v2454 = vmul.f32 %v2451, %v2452
        %v2455 = vsub.f32 %v2444, %v2453
        %v2456 = vsub.f32 %v2445, %v2454
        %v2457 = vmul.f32 %v2455, %v2455
        %v2458 = vmul.f32 %v2456, %v2456
        %v2459 = vsel %vm1281, %v2457, 0.0
        %2460 = vadd.xlane.f32.xlu0 %v2459
        %v2461 = vpop.xlane.xlu0 %2460
        %v2462 = vsel %vm1281, %v2458, 0.0
        %2463 = vadd.xlane.f32.xlu0 %v2462
        %v2464 = vpop.xlane.xlu0 %2463
        %v2465 = vmul.f32 %v2461, %v2452
        %v2466 = vmul.f32 %v2464, %v2452
        %v2467 = vadd.f32 %v2465, 1e-05
        %v2468 = vadd.f32 %v2466, 1e-05
        %v2469 = vrsqrt.pop %v2467
        %v2470 = vrsqrt.pop %v2468
        %v2471 = vmul.f32 %v2455, %v2469
        %v2472 = vmul.f32 %v2456, %v2470
        %v2473 = vld [vmem:[%s728] sm:$0x1]
        %v2475 = vlaneseq
        %v2476 = vshrl.u32 %v2475, 7
        %v2477 = vsub.s32 0, %v2476
        %v2478 = vrot.slane %v2473, %v2477
        %v2480 = vmul.f32 %v2471, %v2478
        %v2481 = vmul.f32 %v2472, %v2478
        %v2482 = vld [vmem:[%s736] sm:$0x1]
        %v2484 = vlaneseq
        %v2485 = vshrl.u32 %v2484, 7
        %v2486 = vsub.s32 0, %v2485
        %v2487 = vrot.slane %v2482, %v2486
        %v2489 = vadd.f32 %v2480, %v2487
        %v2490 = vadd.f32 %v2481, %v2487
        %v2491 = vpack.c.bf16 %v2490, %v2489
        %v2494 = vlaneseq
        %v2495 = vshrl.u32 %v2494, 7
        %v2496 = vsub.s32 0, %v2495
        %v2497 = vrot.slane %v970, %v2496
        %v2498 = vlaneseq
        %v2499 = vshrl.u32 %v2498, 7
        %v2500 = vsub.s32 1, %v2499
        %v2501 = vrot.slane %v970, %v2500
        %v2502 = vlaneseq
        %v2503 = vshrl.u32 %v2502, 7
        %v2504 = vsub.s32 2, %v2503
        %v2505 = vrot.slane %v970, %v2504
        %v2506 = vlaneseq
        %v2507 = vshrl.u32 %v2506, 7
        %v2508 = vsub.s32 3, %v2507
        %v2509 = vrot.slane %v970, %v2508
        %v2510 = vlaneseq
        %v2511 = vshrl.u32 %v2510, 7
        %v2512 = vsub.s32 4, %v2511
        %v2513 = vrot.slane %v970, %v2512
        %v2514 = vlaneseq
        %v2515 = vshrl.u32 %v2514, 7
        %v2516 = vsub.s32 5, %v2515
        %v2517 = vrot.slane %v970, %v2516
        %v2518 = vlaneseq
        %v2519 = vshrl.u32 %v2518, 7
        %v2520 = vsub.s32 6, %v2519
        %v2521 = vrot.slane %v970, %v2520
        %v2522 = vlaneseq
        %v2523 = vshrl.u32 %v2522, 7
        %v2524 = vsub.s32 7, %v2523
        %v2525 = vrot.slane %v970, %v2524
        %v2526 = vlaneseq
        %v2527 = vshrl.u32 %v2526, 7
        %v2528 = vsub.s32 0, %v2527
        %v2529 = vrot.slane %v971, %v2528
        %v2530 = vlaneseq
        %v2531 = vshrl.u32 %v2530, 7
        %v2532 = vsub.s32 1, %v2531
        %v2533 = vrot.slane %v971, %v2532
        %v2534 = vlaneseq
        %v2535 = vshrl.u32 %v2534, 7
        %v2536 = vsub.s32 2, %v2535
        %v2537 = vrot.slane %v971, %v2536
        %v2538 = vlaneseq
        %v2539 = vshrl.u32 %v2538, 7
        %v2540 = vsub.s32 3, %v2539
        %v2541 = vrot.slane %v971, %v2540
        %v2542 = vlaneseq
        %v2543 = vshrl.u32 %v2542, 7
        %v2544 = vsub.s32 4, %v2543
        %v2545 = vrot.slane %v971, %v2544
        %v2546 = vlaneseq
        %v2547 = vshrl.u32 %v2546, 7
        %v2548 = vsub.s32 5, %v2547
        %v2549 = vrot.slane %v971, %v2548
        %v2550 = vlaneseq
        %v2551 = vshrl.u32 %v2550, 7
        %v2552 = vsub.s32 6, %v2551
        %v2553 = vrot.slane %v971, %v2552
        %v2554 = vlaneseq
        %v2555 = vshrl.u32 %v2554, 7
        %v2556 = vsub.s32 7, %v2555
        %v2557 = vrot.slane %v971, %v2556
        %v2638 = vunpack.c.l.b16 %v906
        %v2639 = vunpack.c.h.b16 %v906
        %v2640 = vunpack.c.l.b16 %v907
        %v2641 = vunpack.c.h.b16 %v907
        %v2642 = vunpack.c.l.b16 %v908
        %v2643 = vunpack.c.h.b16 %v908
        %v2644 = vunpack.c.l.b16 %v909
        %v2645 = vunpack.c.h.b16 %v909
        %v2646 = vunpack.c.l.b16 %v910
        %v2647 = vunpack.c.h.b16 %v910
        %v2648 = vunpack.c.l.b16 %v911
        %v2649 = vunpack.c.h.b16 %v911
        %v2650 = vunpack.c.l.b16 %v912
        %v2651 = vunpack.c.h.b16 %v912
        %v2652 = vunpack.c.l.b16 %v913
        %v2653 = vunpack.c.h.b16 %v913
        %v2654 = vunpack.c.l.b16 %v914
        %v2655 = vunpack.c.h.b16 %v914
        %v2656 = vunpack.c.l.b16 %v915
        %v2657 = vunpack.c.h.b16 %v915
        %v2658 = vunpack.c.l.b16 %v916
        %v2659 = vunpack.c.h.b16 %v916
        %v2660 = vunpack.c.l.b16 %v917
        %v2661 = vunpack.c.h.b16 %v917
        %v2662 = vunpack.c.l.b16 %v918
        %v2663 = vunpack.c.h.b16 %v918
        %v2664 = vunpack.c.l.b16 %v919
        %v2665 = vunpack.c.h.b16 %v919
        %v2666 = vunpack.c.l.b16 %v920
        %v2667 = vunpack.c.h.b16 %v920
        %v2668 = vunpack.c.l.b16 %v921
        %v2669 = vunpack.c.h.b16 %v921
        %v2670 = vunpack.c.l.b16 %v922
        %v2671 = vunpack.c.h.b16 %v922
        %v2672 = vunpack.c.l.b16 %v923
        %v2673 = vunpack.c.h.b16 %v923
        %v2674 = vunpack.c.l.b16 %v924
        %v2675 = vunpack.c.h.b16 %v924
        %v2676 = vunpack.c.l.b16 %v925
        %v2677 = vunpack.c.h.b16 %v925
        %v2678 = vunpack.c.l.b16 %v926
        %v2679 = vunpack.c.h.b16 %v926
        %v2680 = vunpack.c.l.b16 %v927
        %v2681 = vunpack.c.h.b16 %v927
        %v2682 = vunpack.c.l.b16 %v928
        %v2683 = vunpack.c.h.b16 %v928
        %v2684 = vunpack.c.l.b16 %v929
        %v2685 = vunpack.c.h.b16 %v929
        %v2686 = vunpack.c.l.b16 %v930
        %v2687 = vunpack.c.h.b16 %v930
        %v2688 = vunpack.c.l.b16 %v931
        %v2689 = vunpack.c.h.b16 %v931
        %v2690 = vunpack.c.l.b16 %v932
        %v2691 = vunpack.c.h.b16 %v932
        %v2692 = vunpack.c.l.b16 %v933
        %v2693 = vunpack.c.h.b16 %v933
        %v2694 = vunpack.c.l.b16 %v934
        %v2695 = vunpack.c.h.b16 %v934
        %v2696 = vunpack.c.l.b16 %v935
        %v2697 = vunpack.c.h.b16 %v935
        %v2698 = vunpack.c.l.b16 %v936
        %v2699 = vunpack.c.h.b16 %v936
        %v2700 = vunpack.c.l.b16 %v937
        %v2701 = vunpack.c.h.b16 %v937
        %v2702 = vunpack.c.l.b16 %v938
        %v2703 = vunpack.c.h.b16 %v938
        %v2704 = vunpack.c.l.b16 %v939
        %v2705 = vunpack.c.h.b16 %v939
        %v2706 = vunpack.c.l.b16 %v940
        %v2707 = vunpack.c.h.b16 %v940
        %v2708 = vunpack.c.l.b16 %v941
        %v2709 = vunpack.c.h.b16 %v941
        %v2710 = vunpack.c.l.b16 %v942
        %v2711 = vunpack.c.h.b16 %v942
        %v2712 = vunpack.c.l.b16 %v943
        %v2713 = vunpack.c.h.b16 %v943
        %v2714 = vunpack.c.l.b16 %v944
        %v2715 = vunpack.c.h.b16 %v944
        %v2716 = vunpack.c.l.b16 %v945
        %v2717 = vunpack.c.h.b16 %v945
        %v2718 = vunpack.c.l.b16 %v946
        %v2719 = vunpack.c.h.b16 %v946
        %v2720 = vunpack.c.l.b16 %v947
        %v2721 = vunpack.c.h.b16 %v947
        %v2722 = vunpack.c.l.b16 %v948
        %v2723 = vunpack.c.h.b16 %v948
        %v2724 = vunpack.c.l.b16 %v949
        %v2725 = vunpack.c.h.b16 %v949
        %v2726 = vunpack.c.l.b16 %v950
        %v2727 = vunpack.c.h.b16 %v950
        %v2728 = vunpack.c.l.b16 %v951
        %v2729 = vunpack.c.h.b16 %v951
        %v2730 = vunpack.c.l.b16 %v952
        %v2731 = vunpack.c.h.b16 %v952
        %v2732 = vunpack.c.l.b16 %v953
        %v2733 = vunpack.c.h.b16 %v953
        %v2734 = vunpack.c.l.b16 %v954
        %v2735 = vunpack.c.h.b16 %v954
        %v2736 = vunpack.c.l.b16 %v955
        %v2737 = vunpack.c.h.b16 %v955
        %v2738 = vunpack.c.l.b16 %v956
        %v2739 = vunpack.c.h.b16 %v956
        %v2740 = vunpack.c.l.b16 %v957
        %v2741 = vunpack.c.h.b16 %v957
        %v2742 = vunpack.c.l.b16 %v958
        %v2743 = vunpack.c.h.b16 %v958
        %v2744 = vunpack.c.l.b16 %v959
        %v2745 = vunpack.c.h.b16 %v959
        %v2746 = vunpack.c.l.b16 %v960
        %v2747 = vunpack.c.h.b16 %v960
        %v2748 = vunpack.c.l.b16 %v961
        %v2749 = vunpack.c.h.b16 %v961
        %v2750 = vunpack.c.l.b16 %v962
        %v2751 = vunpack.c.h.b16 %v962
        %v2752 = vunpack.c.l.b16 %v963
        %v2753 = vunpack.c.h.b16 %v963
        %v2754 = vunpack.c.l.b16 %v964
        %v2755 = vunpack.c.h.b16 %v964
        %v2756 = vunpack.c.l.b16 %v965
        %v2757 = vunpack.c.h.b16 %v965
        %v2758 = vunpack.c.l.b16 %v966
        %v2759 = vunpack.c.h.b16 %v966
        %v2760 = vunpack.c.l.b16 %v967
        %v2761 = vunpack.c.h.b16 %v967
        %v2762 = vunpack.c.l.b16 %v968
        %v2763 = vunpack.c.h.b16 %v968
        %v2764 = vunpack.c.l.b16 %v969
        %v2765 = vunpack.c.h.b16 %v969
        %v2766 = vpack.c.b16 %v2654, %v2638
        %v2767 = vpack.c.b16 %v2655, %v2639
        %v2768 = vpack.c.b16 %v2656, %v2640
        %v2769 = vpack.c.b16 %v2657, %v2641
        %v2770 = vpack.c.b16 %v2658, %v2642
        %v2771 = vpack.c.b16 %v2659, %v2643
        %v2772 = vpack.c.b16 %v2660, %v2644
        %v2773 = vpack.c.b16 %v2661, %v2645
        %v2774 = vpack.c.b16 %v2662, %v2646
        %v2775 = vpack.c.b16 %v2663, %v2647
        %v2776 = vpack.c.b16 %v2664, %v2648
        %v2777 = vpack.c.b16 %v2665, %v2649
        %v2778 = vpack.c.b16 %v2666, %v2650
        %v2779 = vpack.c.b16 %v2667, %v2651
        %v2780 = vpack.c.b16 %v2668, %v2652
        %v2781 = vpack.c.b16 %v2669, %v2653
        %v2782 = vpack.c.b16 %v2686, %v2670
        %v2783 = vpack.c.b16 %v2687, %v2671
        %v2784 = vpack.c.b16 %v2688, %v2672
        %v2785 = vpack.c.b16 %v2689, %v2673
        %v2786 = vpack.c.b16 %v2690, %v2674
        %v2787 = vpack.c.b16 %v2691, %v2675
        %v2788 = vpack.c.b16 %v2692, %v2676
        %v2789 = vpack.c.b16 %v2693, %v2677
        %v2790 = vpack.c.b16 %v2694, %v2678
        %v2791 = vpack.c.b16 %v2695, %v2679
        %v2792 = vpack.c.b16 %v2696, %v2680
        %v2793 = vpack.c.b16 %v2697, %v2681
        %v2794 = vpack.c.b16 %v2698, %v2682
        %v2795 = vpack.c.b16 %v2699, %v2683
        %v2796 = vpack.c.b16 %v2700, %v2684
        %v2797 = vpack.c.b16 %v2701, %v2685
        %v2798 = vpack.c.b16 %v2718, %v2702
        %v2799 = vpack.c.b16 %v2719, %v2703
        %v2800 = vpack.c.b16 %v2720, %v2704
        %v2801 = vpack.c.b16 %v2721, %v2705
        %v2802 = vpack.c.b16 %v2722, %v2706
        %v2803 = vpack.c.b16 %v2723, %v2707
        %v2804 = vpack.c.b16 %v2724, %v2708
        %v2805 = vpack.c.b16 %v2725, %v2709
        %v2806 = vpack.c.b16 %v2726, %v2710
        %v2807 = vpack.c.b16 %v2727, %v2711
        %v2808 = vpack.c.b16 %v2728, %v2712
        %v2809 = vpack.c.b16 %v2729, %v2713
        %v2810 = vpack.c.b16 %v2730, %v2714
        %v2811 = vpack.c.b16 %v2731, %v2715
        %v2812 = vpack.c.b16 %v2732, %v2716
        %v2813 = vpack.c.b16 %v2733, %v2717
        %v2814 = vpack.c.b16 %v2750, %v2734
        %v2815 = vpack.c.b16 %v2751, %v2735
        %v2816 = vpack.c.b16 %v2752, %v2736
        %v2817 = vpack.c.b16 %v2753, %v2737
        %v2818 = vpack.c.b16 %v2754, %v2738
        %v2819 = vpack.c.b16 %v2755, %v2739
        %v2820 = vpack.c.b16 %v2756, %v2740
        %v2821 = vpack.c.b16 %v2757, %v2741
        %v2822 = vpack.c.b16 %v2758, %v2742
        %v2823 = vpack.c.b16 %v2759, %v2743
        %v2824 = vpack.c.b16 %v2760, %v2744
        %v2825 = vpack.c.b16 %v2761, %v2745
        %v2826 = vpack.c.b16 %v2762, %v2746
        %v2827 = vpack.c.b16 %v2763, %v2747
        %v2828 = vpack.c.b16 %v2764, %v2748
        %v2829 = vpack.c.b16 %v2765, %v2749
        %v2895 = vsel %vm1281, %v2491, 0
        %2897 = vmatprep.subr.bf16.mxu0 %v2767
        %2898 = vmatpush1.bf16.msra.mxu0 %v2766
        %2899 = vmatprep.subr.bf16.mxu0 %v2783
        %2900 = vmatpush1.bf16.msra.mxu0 %v2782
        %2901 = vmatprep.subr.bf16.mxu0 %v2799
        %2902 = vmatpush1.bf16.msra.mxu0 %v2798
        %2903 = vmatprep.subr.bf16.mxu0 %v2815
        %2904 = vmatpush1.bf16.msra.mxu0 %v2814
        %2905 = vmatprep.subr.bf16.mxu0 0
        %2906 = vmatpush1.bf16.msra.mxu0 0
        %2907 = vmatprep.subr.bf16.mxu0 0
        %2908 = vmatpush1.bf16.msra.mxu0 0
        %2909 = vmatprep.subr.bf16.mxu0 0
        %2910 = vmatpush1.bf16.msra.mxu0 0
        %2911 = vmatprep.subr.bf16.mxu0 0
        %2912 = vmatpush1.bf16.msra.mxu0 0
        %2913 = vmatprep.subr.bf16.mxu0 0
        %2914 = vmatpush1.bf16.msra.mxu0 0
        %2915 = vmatprep.subr.bf16.mxu0 0
        %2916 = vmatpush1.bf16.msra.mxu0 0
        %2917 = vmatprep.subr.bf16.mxu0 0
        %2918 = vmatpush1.bf16.msra.mxu0 0
        %2919 = vmatprep.subr.bf16.mxu0 0
        %2920 = vmatpush1.bf16.msra.mxu0 0
        %2921 = vmatprep.subr.bf16.mxu0 0
        %2922 = vmatpush1.bf16.msra.mxu0 0
        %2923 = vmatprep.subr.bf16.mxu0 0
        %2924 = vmatpush1.bf16.msra.mxu0 0
        %2925 = vmatprep.subr.bf16.mxu0 0
        %2926 = vmatpush1.bf16.msra.mxu0 0
        %2927 = vmatprep.subr.bf16.mxu0 0
        %2928 = vmatpush1.bf16.msra.mxu0 0
        %2929 = vmatprep.mubr.bf16.mxu0 0
        %2930 = vmatmul.mubr.bf16.gmra.mrb[0].mxu0 %v2895
        %v2931 = vpop.f32.mrb[0].mxu0
        %v2932 = vadd.f32 %v2497, %v2931
        %v2933 = vpop.f32.mrb[0].mxu0
        %v2934 = vadd.f32 %v2501, %v2933
        %v2935 = vpop.f32.mrb[0].mxu0
        %v2936 = vadd.f32 %v2497, %v2935
        %v2937 = vpop.f32.mrb[0].mxu0
        %v2938 = vadd.f32 %v2501, %v2937
        %2939 = vdwg.mxu0
        %2940 = vmatprep.subr.bf16.mxu0 %v2769
        %2941 = vmatpush1.bf16.msra.mxu0 %v2768
        %2942 = vmatprep.subr.bf16.mxu0 %v2785
        %2943 = vmatpush1.bf16.msra.mxu0 %v2784
        %2944 = vmatprep.subr.bf16.mxu0 %v2801
        %2945 = vmatpush1.bf16.msra.mxu0 %v2800
        %2946 = vmatprep.subr.bf16.mxu0 %v2817
        %2947 = vmatpush1.bf16.msra.mxu0 %v2816
        %2948 = vmatprep.subr.bf16.mxu0 0
        %2949 = vmatpush1.bf16.msra.mxu0 0
        %2950 = vmatprep.subr.bf16.mxu0 0
        %2951 = vmatpush1.bf16.msra.mxu0 0
        %2952 = vmatprep.subr.bf16.mxu0 0
        %2953 = vmatpush1.bf16.msra.mxu0 0
        %2954 = vmatprep.subr.bf16.mxu0 0
        %2955 = vmatpush1.bf16.msra.mxu0 0
        %2956 = vmatprep.subr.bf16.mxu0 0
        %2957 = vmatpush1.bf16.msra.mxu0 0
        %2958 = vmatprep.subr.bf16.mxu0 0
        %2959 = vmatpush1.bf16.msra.mxu0 0
        %2960 = vmatprep.subr.bf16.mxu0 0
        %2961 = vmatpush1.bf16.msra.mxu0 0
        %2962 = vmatprep.subr.bf16.mxu0 0
        %2963 = vmatpush1.bf16.msra.mxu0 0
        %2964 = vmatprep.subr.bf16.mxu0 0
        %2965 = vmatpush1.bf16.msra.mxu0 0
        %2966 = vmatprep.subr.bf16.mxu0 0
        %2967 = vmatpush1.bf16.msra.mxu0 0
        %2968 = vmatprep.subr.bf16.mxu0 0
        %2969 = vmatpush1.bf16.msra.mxu0 0
        %2970 = vmatprep.subr.bf16.mxu0 0
        %2971 = vmatpush1.bf16.msra.mxu0 0
        %2972 = vmatprep.mubr.bf16.mxu0 0
        %2973 = vmatmul.mubr.bf16.gmra.mrb[0].mxu0 %v2895
        %v2974 = vpop.f32.mrb[0].mxu0
        %v2975 = vadd.f32 %v2505, %v2974
        %v2976 = vpop.f32.mrb[0].mxu0
        %v2977 = vadd.f32 %v2509, %v2976
        %v2978 = vpop.f32.mrb[0].mxu0
        %v2979 = vadd.f32 %v2505, %v2978
        %v2980 = vpop.f32.mrb[0].mxu0
        %v2981 = vadd.f32 %v2509, %v2980
        %2982 = vdwg.mxu0
        %2983 = vmatprep.subr.bf16.mxu0 %v2771
        %2984 = vmatpush1.bf16.msra.mxu0 %v2770
        %2985 = vmatprep.subr.bf16.mxu0 %v2787
        %2986 = vmatpush1.bf16.msra.mxu0 %v2786
        %2987 = vmatprep.subr.bf16.mxu0 %v2803
        %2988 = vmatpush1.bf16.msra.mxu0 %v2802
        %2989 = vmatprep.subr.bf16.mxu0 %v2819
        %2990 = vmatpush1.bf16.msra.mxu0 %v2818
        %2991 = vmatprep.subr.bf16.mxu0 0
        %2992 = vmatpush1.bf16.msra.mxu0 0
        %2993 = vmatprep.subr.bf16.mxu0 0
        %2994 = vmatpush1.bf16.msra.mxu0 0
        %2995 = vmatprep.subr.bf16.mxu0 0
        %2996 = vmatpush1.bf16.msra.mxu0 0
        %2997 = vmatprep.subr.bf16.mxu0 0
        %2998 = vmatpush1.bf16.msra.mxu0 0
        %2999 = vmatprep.subr.bf16.mxu0 0
        %3000 = vmatpush1.bf16.msra.mxu0 0
        %3001 = vmatprep.subr.bf16.mxu0 0
        %3002 = vmatpush1.bf16.msra.mxu0 0
        %3003 = vmatprep.subr.bf16.mxu0 0
        %3004 = vmatpush1.bf16.msra.mxu0 0
        %3005 = vmatprep.subr.bf16.mxu0 0
        %3006 = vmatpush1.bf16.msra.mxu0 0
        %3007 = vmatprep.subr.bf16.mxu0 0
        %3008 = vmatpush1.bf16.msra.mxu0 0
        %3009 = vmatprep.subr.bf16.mxu0 0
        %3010 = vmatpush1.bf16.msra.mxu0 0
        %3011 = vmatprep.subr.bf16.mxu0 0
        %3012 = vmatpush1.bf16.msra.mxu0 0
        %3013 = vmatprep.subr.bf16.mxu0 0
        %3014 = vmatpush1.bf16.msra.mxu0 0
        %3015 = vmatprep.mubr.bf16.mxu0 0
        %3016 = vmatmul.mubr.bf16.gmra.mrb[0].mxu0 %v2895
        %v3017 = vpop.f32.mrb[0].mxu0
        %v3018 = vadd.f32 %v2513, %v3017
        %v3019 = vpop.f32.mrb[0].mxu0
        %v3020 = vadd.f32 %v2517, %v3019
        %v3021 = vpop.f32.mrb[0].mxu0
        %v3022 = vadd.f32 %v2513, %v3021
        %v3023 = vpop.f32.mrb[0].mxu0
        %v3024 = vadd.f32 %v2517, %v3023
        %3025 = vdwg.mxu0
        %3026 = vmatprep.subr.bf16.mxu0 %v2773
        %3027 = vmatpush1.bf16.msra.mxu0 %v2772
        %3028 = vmatprep.subr.bf16.mxu0 %v2789
        %3029 = vmatpush1.bf16.msra.mxu0 %v2788
        %3030 = vmatprep.subr.bf16.mxu0 %v2805
        %3031 = vmatpush1.bf16.msra.mxu0 %v2804
        %3032 = vmatprep.subr.bf16.mxu0 %v2821
        %3033 = vmatpush1.bf16.msra.mxu0 %v2820
        %3034 = vmatprep.subr.bf16.mxu0 0
        %3035 = vmatpush1.bf16.msra.mxu0 0
        %3036 = vmatprep.subr.bf16.mxu0 0
        %3037 = vmatpush1.bf16.msra.mxu0 0
        %3038 = vmatprep.subr.bf16.mxu0 0
        %3039 = vmatpush1.bf16.msra.mxu0 0
        %3040 = vmatprep.subr.bf16.mxu0 0
        %3041 = vmatpush1.bf16.msra.mxu0 0
        %3042 = vmatprep.subr.bf16.mxu0 0
        %3043 = vmatpush1.bf16.msra.mxu0 0
        %3044 = vmatprep.subr.bf16.mxu0 0
        %3045 = vmatpush1.bf16.msra.mxu0 0
        %3046 = vmatprep.subr.bf16.mxu0 0
        %3047 = vmatpush1.bf16.msra.mxu0 0
        %3048 = vmatprep.subr.bf16.mxu0 0
        %3049 = vmatpush1.bf16.msra.mxu0 0
        %3050 = vmatprep.subr.bf16.mxu0 0
        %3051 = vmatpush1.bf16.msra.mxu0 0
        %3052 = vmatprep.subr.bf16.mxu0 0
        %3053 = vmatpush1.bf16.msra.mxu0 0
        %3054 = vmatprep.subr.bf16.mxu0 0
        %3055 = vmatpush1.bf16.msra.mxu0 0
        %3056 = vmatprep.subr.bf16.mxu0 0
        %3057 = vmatpush1.bf16.msra.mxu0 0
        %3058 = vmatprep.mubr.bf16.mxu0 0
        %3059 = vmatmul.mubr.bf16.gmra.mrb[0].mxu0 %v2895
        %v3060 = vpop.f32.mrb[0].mxu0
        %v3061 = vadd.f32 %v2521, %v3060
        %v3062 = vpop.f32.mrb[0].mxu0
        %v3063 = vadd.f32 %v2525, %v3062
        %v3064 = vpop.f32.mrb[0].mxu0
        %v3065 = vadd.f32 %v2521, %v3064
        %v3066 = vpop.f32.mrb[0].mxu0
        %v3067 = vadd.f32 %v2525, %v3066
        %3068 = vdwg.mxu0
        %3069 = vmatprep.subr.bf16.mxu0 %v2775
        %3070 = vmatpush1.bf16.msra.mxu0 %v2774
        %3071 = vmatprep.subr.bf16.mxu0 %v2791
        %3072 = vmatpush1.bf16.msra.mxu0 %v2790
        %3073 = vmatprep.subr.bf16.mxu0 %v2807
        %3074 = vmatpush1.bf16.msra.mxu0 %v2806
        %3075 = vmatprep.subr.bf16.mxu0 %v2823
        %3076 = vmatpush1.bf16.msra.mxu0 %v2822
        %3077 = vmatprep.subr.bf16.mxu0 0
        %3078 = vmatpush1.bf16.msra.mxu0 0
        %3079 = vmatprep.subr.bf16.mxu0 0
        %3080 = vmatpush1.bf16.msra.mxu0 0
        %3081 = vmatprep.subr.bf16.mxu0 0
        %3082 = vmatpush1.bf16.msra.mxu0 0
        %3083 = vmatprep.subr.bf16.mxu0 0
        %3084 = vmatpush1.bf16.msra.mxu0 0
        %3085 = vmatprep.subr.bf16.mxu0 0
        %3086 = vmatpush1.bf16.msra.mxu0 0
        %3087 = vmatprep.subr.bf16.mxu0 0
        %3088 = vmatpush1.bf16.msra.mxu0 0
        %3089 = vmatprep.subr.bf16.mxu0 0
        %3090 = vmatpush1.bf16.msra.mxu0 0
        %3091 = vmatprep.subr.bf16.mxu0 0
        %3092 = vmatpush1.bf16.msra.mxu0 0
        %3093 = vmatprep.subr.bf16.mxu0 0
        %3094 = vmatpush1.bf16.msra.mxu0 0
        %3095 = vmatprep.subr.bf16.mxu0 0
        %3096 = vmatpush1.bf16.msra.mxu0 0
        %3097 = vmatprep.subr.bf16.mxu0 0
        %3098 = vmatpush1.bf16.msra.mxu0 0
        %3099 = vmatprep.subr.bf16.mxu0 0
        %3100 = vmatpush1.bf16.msra.mxu0 0
        %3101 = vmatprep.mubr.bf16.mxu0 0
        %3102 = vmatmul.mubr.bf16.gmra.mrb[0].mxu0 %v2895
        %v3103 = vpop.f32.mrb[0].mxu0
        %v3104 = vadd.f32 %v2529, %v3103
        %v3105 = vpop.f32.mrb[0].mxu0
        %v3106 = vadd.f32 %v2533, %v3105
        %v3107 = vpop.f32.mrb[0].mxu0
        %v3108 = vadd.f32 %v2529, %v3107
        %v3109 = vpop.f32.mrb[0].mxu0
        %v3110 = vadd.f32 %v2533, %v3109
        %3111 = vdwg.mxu0
        %3112 = vmatprep.subr.bf16.mxu0 %v2777
        %3113 = vmatpush1.bf16.msra.mxu0 %v2776
        %3114 = vmatprep.subr.bf16.mxu0 %v2793
        %3115 = vmatpush1.bf16.msra.mxu0 %v2792
        %3116 = vmatprep.subr.bf16.mxu0 %v2809
        %3117 = vmatpush1.bf16.msra.mxu0 %v2808
        %3118 = vmatprep.subr.bf16.mxu0 %v2825
        %3119 = vmatpush1.bf16.msra.mxu0 %v2824
        %3120 = vmatprep.subr.bf16.mxu0 0
        %3121 = vmatpush1.bf16.msra.mxu0 0
        %3122 = vmatprep.subr.bf16.mxu0 0
        %3123 = vmatpush1.bf16.msra.mxu0 0
        %3124 = vmatprep.subr.bf16.mxu0 0
        %3125 = vmatpush1.bf16.msra.mxu0 0
        %3126 = vmatprep.subr.bf16.mxu0 0
        %3127 = vmatpush1.bf16.msra.mxu0 0
        %3128 = vmatprep.subr.bf16.mxu0 0
        %3129 = vmatpush1.bf16.msra.mxu0 0
        %3130 = vmatprep.subr.bf16.mxu0 0
        %3131 = vmatpush1.bf16.msra.mxu0 0
        %3132 = vmatprep.subr.bf16.mxu0 0
        %3133 = vmatpush1.bf16.msra.mxu0 0
        %3134 = vmatprep.subr.bf16.mxu0 0
        %3135 = vmatpush1.bf16.msra.mxu0 0
        %3136 = vmatprep.subr.bf16.mxu0 0
        %3137 = vmatpush1.bf16.msra.mxu0 0
        %3138 = vmatprep.subr.bf16.mxu0 0
        %3139 = vmatpush1.bf16.msra.mxu0 0
        %3140 = vmatprep.subr.bf16.mxu0 0
        %3141 = vmatpush1.bf16.msra.mxu0 0
        %3142 = vmatprep.subr.bf16.mxu0 0
        %3143 = vmatpush1.bf16.msra.mxu0 0
        %3144 = vmatprep.mubr.bf16.mxu0 0
        %3145 = vmatmul.mubr.bf16.gmra.mrb[0].mxu0 %v2895
        %v3146 = vpop.f32.mrb[0].mxu0
        %v3147 = vadd.f32 %v2537, %v3146
        %v3148 = vpop.f32.mrb[0].mxu0
        %v3149 = vadd.f32 %v2541, %v3148
        %v3150 = vpop.f32.mrb[0].mxu0
        %v3151 = vadd.f32 %v2537, %v3150
        %v3152 = vpop.f32.mrb[0].mxu0
        %v3153 = vadd.f32 %v2541, %v3152
        %3154 = vdwg.mxu0
        %3155 = vmatprep.subr.bf16.mxu0 %v2779
        %3156 = vmatpush1.bf16.msra.mxu0 %v2778
        %3157 = vmatprep.subr.bf16.mxu0 %v2795
        %3158 = vmatpush1.bf16.msra.mxu0 %v2794
        %3159 = vmatprep.subr.bf16.mxu0 %v2811
        %3160 = vmatpush1.bf16.msra.mxu0 %v2810
        %3161 = vmatprep.subr.bf16.mxu0 %v2827
        %3162 = vmatpush1.bf16.msra.mxu0 %v2826
        %3163 = vmatprep.subr.bf16.mxu0 0
        %3164 = vmatpush1.bf16.msra.mxu0 0
        %3165 = vmatprep.subr.bf16.mxu0 0
        %3166 = vmatpush1.bf16.msra.mxu0 0
        %3167 = vmatprep.subr.bf16.mxu0 0
        %3168 = vmatpush1.bf16.msra.mxu0 0
        %3169 = vmatprep.subr.bf16.mxu0 0
        %3170 = vmatpush1.bf16.msra.mxu0 0
        %3171 = vmatprep.subr.bf16.mxu0 0
        %3172 = vmatpush1.bf16.msra.mxu0 0
        %3173 = vmatprep.subr.bf16.mxu0 0
        %3174 = vmatpush1.bf16.msra.mxu0 0
        %3175 = vmatprep.subr.bf16.mxu0 0
        %3176 = vmatpush1.bf16.msra.mxu0 0
        %3177 = vmatprep.subr.bf16.mxu0 0
        %3178 = vmatpush1.bf16.msra.mxu0 0
        %3179 = vmatprep.subr.bf16.mxu0 0
        %3180 = vmatpush1.bf16.msra.mxu0 0
        %3181 = vmatprep.subr.bf16.mxu0 0
        %3182 = vmatpush1.bf16.msra.mxu0 0
        %3183 = vmatprep.subr.bf16.mxu0 0
        %3184 = vmatpush1.bf16.msra.mxu0 0
        %3185 = vmatprep.subr.bf16.mxu0 0
        %3186 = vmatpush1.bf16.msra.mxu0 0
        %3187 = vmatprep.mubr.bf16.mxu0 0
        %3188 = vmatmul.mubr.bf16.gmra.mrb[0].mxu0 %v2895
        %v3189 = vpop.f32.mrb[0].mxu0
        %v3190 = vadd.f32 %v2545, %v3189
        %v3191 = vpop.f32.mrb[0].mxu0
        %v3192 = vadd.f32 %v2549, %v3191
        %v3193 = vpop.f32.mrb[0].mxu0
        %v3194 = vadd.f32 %v2545, %v3193
        %v3195 = vpop.f32.mrb[0].mxu0
        %v3196 = vadd.f32 %v2549, %v3195
        %3197 = vdwg.mxu0
        %3198 = vmatprep.subr.bf16.mxu0 %v2781
        %3199 = vmatpush1.bf16.msra.mxu0 %v2780
        %3200 = vmatprep.subr.bf16.mxu0 %v2797
        %3201 = vmatpush1.bf16.msra.mxu0 %v2796
        %3202 = vmatprep.subr.bf16.mxu0 %v2813
        %3203 = vmatpush1.bf16.msra.mxu0 %v2812
        %3204 = vmatprep.subr.bf16.mxu0 %v2829
        %3205 = vmatpush1.bf16.msra.mxu0 %v2828
        %3206 = vmatprep.subr.bf16.mxu0 0
        %3207 = vmatpush1.bf16.msra.mxu0 0
        %3208 = vmatprep.subr.bf16.mxu0 0
        %3209 = vmatpush1.bf16.msra.mxu0 0
        %3210 = vmatprep.subr.bf16.mxu0 0
        %3211 = vmatpush1.bf16.msra.mxu0 0
        %3212 = vmatprep.subr.bf16.mxu0 0
        %3213 = vmatpush1.bf16.msra.mxu0 0
        %3214 = vmatprep.subr.bf16.mxu0 0
        %3215 = vmatpush1.bf16.msra.mxu0 0
        %3216 = vmatprep.subr.bf16.mxu0 0
        %3217 = vmatpush1.bf16.msra.mxu0 0
        %3218 = vmatprep.subr.bf16.mxu0 0
        %3219 = vmatpush1.bf16.msra.mxu0 0
        %3220 = vmatprep.subr.bf16.mxu0 0
        %3221 = vmatpush1.bf16.msra.mxu0 0
        %3222 = vmatprep.subr.bf16.mxu0 0
        %3223 = vmatpush1.bf16.msra.mxu0 0
        %3224 = vmatprep.subr.bf16.mxu0 0
        %3225 = vmatpush1.bf16.msra.mxu0 0
        %3226 = vmatprep.subr.bf16.mxu0 0
        %3227 = vmatpush1.bf16.msra.mxu0 0
        %3228 = vmatprep.subr.bf16.mxu0 0
        %3229 = vmatpush1.bf16.msra.mxu0 0
        %3230 = vmatprep.mubr.bf16.mxu0 0
        %3231 = vmatmul.mubr.bf16.gmra.mrb[0].mxu0 %v2895
        %v3232 = vpop.f32.mrb[0].mxu0
        %v3233 = vadd.f32 %v2553, %v3232
        %v3234 = vpop.f32.mrb[0].mxu0
        %v3235 = vadd.f32 %v2557, %v3234
        %v3236 = vpop.f32.mrb[0].mxu0
        %v3237 = vadd.f32 %v2553, %v3236
        %v3238 = vpop.f32.mrb[0].mxu0
        %v3239 = vadd.f32 %v2557, %v3238
        %3240 = vdwg.mxu0
        %v3241 = vmax.f32 %v2932, 0.0
        %v3242 = vmax.f32 %v2934, 0.0
        %v3243 = vmax.f32 %v2975, 0.0
        %v3244 = vmax.f32 %v2977, 0.0
        %v3245 = vmax.f32 %v3018, 0.0
        %v3246 = vmax.f32 %v3020, 0.0
        %v3247 = vmax.f32 %v3061, 0.0
        %v3248 = vmax.f32 %v3063, 0.0
        %v3249 = vmax.f32 %v3104, 0.0
        %v3250 = vmax.f32 %v3106, 0.0
        %v3251 = vmax.f32 %v3147, 0.0
        %v3252 = vmax.f32 %v3149, 0.0
        %v3253 = vmax.f32 %v3190, 0.0
        %v3254 = vmax.f32 %v3192, 0.0
        %v3255 = vmax.f32 %v3233, 0.0
        %v3256 = vmax.f32 %v3235, 0.0
        %v3257 = vmax.f32 %v2936, 0.0
        %v3258 = vmax.f32 %v2938, 0.0
        %v3259 = vmax.f32 %v2979, 0.0
        %v3260 = vmax.f32 %v2981, 0.0
        %v3261 = vmax.f32 %v3022, 0.0
        %v3262 = vmax.f32 %v3024, 0.0
        %v3263 = vmax.f32 %v3065, 0.0
        %v3264 = vmax.f32 %v3067, 0.0
        %v3265 = vmax.f32 %v3108, 0.0
        %v3266 = vmax.f32 %v3110, 0.0
        %v3267 = vmax.f32 %v3151, 0.0
        %v3268 = vmax.f32 %v3153, 0.0
        %v3269 = vmax.f32 %v3194, 0.0
        %v3270 = vmax.f32 %v3196, 0.0
        %v3271 = vmax.f32 %v3237, 0.0
        %v3272 = vmax.f32 %v3239, 0.0
        %v3273 = vpack.c.bf16 %v3257, %v3241
        %v3274 = vpack.c.bf16 %v3258, %v3242
        %v3275 = vpack.c.bf16 %v3259, %v3243
        %v3276 = vpack.c.bf16 %v3260, %v3244
        %v3277 = vpack.c.bf16 %v3261, %v3245
        %v3278 = vpack.c.bf16 %v3262, %v3246
        %v3279 = vpack.c.bf16 %v3263, %v3247
        %v3280 = vpack.c.bf16 %v3264, %v3248
        %v3281 = vpack.c.bf16 %v3265, %v3249
        %v3282 = vpack.c.bf16 %v3266, %v3250
        %v3283 = vpack.c.bf16 %v3267, %v3251
        %v3284 = vpack.c.bf16 %v3268, %v3252
        %v3285 = vpack.c.bf16 %v3269, %v3253
        %v3286 = vpack.c.bf16 %v3270, %v3254
        %v3287 = vpack.c.bf16 %v3271, %v3255
        %v3288 = vpack.c.bf16 %v3272, %v3256
        %v3290 = vlaneseq
        %v3291 = vshrl.u32 %v3290, 7
        %v3292 = vsub.s32 0, %v3291
        %v3293 = vrot.slane %v1228, %v3292
        %v3551 = vunpack.c.l.b16 %v972
        %v3552 = vunpack.c.l.b16 %v973
        %v3553 = vunpack.c.l.b16 %v974
        %v3554 = vunpack.c.l.b16 %v975
        %v3555 = vunpack.c.l.b16 %v976
        %v3556 = vunpack.c.l.b16 %v977
        %v3557 = vunpack.c.l.b16 %v978
        %v3558 = vunpack.c.l.b16 %v979
        %v3559 = vunpack.c.l.b16 %v980
        %v3560 = vunpack.c.l.b16 %v981
        %v3561 = vunpack.c.l.b16 %v982
        %v3562 = vunpack.c.l.b16 %v983
        %v3563 = vunpack.c.l.b16 %v984
        %v3564 = vunpack.c.l.b16 %v985
        %v3565 = vunpack.c.l.b16 %v986
        %v3566 = vunpack.c.l.b16 %v987
        %v3567 = vunpack.c.l.b16 %v988
        %v3568 = vunpack.c.l.b16 %v989
        %v3569 = vunpack.c.l.b16 %v990
        %v3570 = vunpack.c.l.b16 %v991
        %v3571 = vunpack.c.l.b16 %v992
        %v3572 = vunpack.c.l.b16 %v993
        %v3573 = vunpack.c.l.b16 %v994
        %v3574 = vunpack.c.l.b16 %v995
        %v3575 = vunpack.c.l.b16 %v996
        %v3576 = vunpack.c.l.b16 %v997
        %v3577 = vunpack.c.l.b16 %v998
        %v3578 = vunpack.c.l.b16 %v999
        %v3579 = vunpack.c.l.b16 %v1000
        %v3580 = vunpack.c.l.b16 %v1001
        %v3581 = vunpack.c.l.b16 %v1002
        %v3582 = vunpack.c.l.b16 %v1003
        %v3583 = vunpack.c.l.b16 %v1004
        %v3584 = vunpack.c.l.b16 %v1005
        %v3585 = vunpack.c.l.b16 %v1006
        %v3586 = vunpack.c.l.b16 %v1007
        %v3587 = vunpack.c.l.b16 %v1008
        %v3588 = vunpack.c.l.b16 %v1009
        %v3589 = vunpack.c.l.b16 %v1010
        %v3590 = vunpack.c.l.b16 %v1011
        %v3591 = vunpack.c.l.b16 %v1012
        %v3592 = vunpack.c.l.b16 %v1013
        %v3593 = vunpack.c.l.b16 %v1014
        %v3594 = vunpack.c.l.b16 %v1015
        %v3595 = vunpack.c.l.b16 %v1016
        %v3596 = vunpack.c.l.b16 %v1017
        %v3597 = vunpack.c.l.b16 %v1018
        %v3598 = vunpack.c.l.b16 %v1019
        %v3599 = vunpack.c.l.b16 %v1020
        %v3600 = vunpack.c.l.b16 %v1021
        %v3601 = vunpack.c.l.b16 %v1022
        %v3602 = vunpack.c.l.b16 %v1023
        %v3603 = vunpack.c.l.b16 %v1024
        %v3604 = vunpack.c.l.b16 %v1025
        %v3605 = vunpack.c.l.b16 %v1026
        %v3606 = vunpack.c.l.b16 %v1027
        %v3607 = vunpack.c.l.b16 %v1028
        %v3608 = vunpack.c.l.b16 %v1029
        %v3609 = vunpack.c.l.b16 %v1030
        %v3610 = vunpack.c.l.b16 %v1031
        %v3611 = vunpack.c.l.b16 %v1032
        %v3612 = vunpack.c.l.b16 %v1033
        %v3613 = vunpack.c.l.b16 %v1034
        %v3614 = vunpack.c.l.b16 %v1035
        %v3615 = vunpack.c.l.b16 %v1036
        %v3616 = vunpack.c.l.b16 %v1037
        %v3617 = vunpack.c.l.b16 %v1038
        %v3618 = vunpack.c.l.b16 %v1039
        %v3619 = vunpack.c.l.b16 %v1040
        %v3620 = vunpack.c.l.b16 %v1041
        %v3621 = vunpack.c.l.b16 %v1042
        %v3622 = vunpack.c.l.b16 %v1043
        %v3623 = vunpack.c.l.b16 %v1044
        %v3624 = vunpack.c.l.b16 %v1045
        %v3625 = vunpack.c.l.b16 %v1046
        %v3626 = vunpack.c.l.b16 %v1047
        %v3627 = vunpack.c.l.b16 %v1048
        %v3628 = vunpack.c.l.b16 %v1049
        %v3629 = vunpack.c.l.b16 %v1050
        %v3630 = vunpack.c.l.b16 %v1051
        %v3631 = vunpack.c.l.b16 %v1052
        %v3632 = vunpack.c.l.b16 %v1053
        %v3633 = vunpack.c.l.b16 %v1054
        %v3634 = vunpack.c.l.b16 %v1055
        %v3635 = vunpack.c.l.b16 %v1056
        %v3636 = vunpack.c.l.b16 %v1057
        %v3637 = vunpack.c.l.b16 %v1058
        %v3638 = vunpack.c.l.b16 %v1059
        %v3639 = vunpack.c.l.b16 %v1060
        %v3640 = vunpack.c.l.b16 %v1061
        %v3641 = vunpack.c.l.b16 %v1062
        %v3642 = vunpack.c.l.b16 %v1063
        %v3643 = vunpack.c.l.b16 %v1064
        %v3644 = vunpack.c.l.b16 %v1065
        %v3645 = vunpack.c.l.b16 %v1066
        %v3646 = vunpack.c.l.b16 %v1067
        %v3647 = vunpack.c.l.b16 %v1068
        %v3648 = vunpack.c.l.b16 %v1069
        %v3649 = vunpack.c.l.b16 %v1070
        %v3650 = vunpack.c.l.b16 %v1071
        %v3651 = vunpack.c.l.b16 %v1072
        %v3652 = vunpack.c.l.b16 %v1073
        %v3653 = vunpack.c.l.b16 %v1074
        %v3654 = vunpack.c.l.b16 %v1075
        %v3655 = vunpack.c.l.b16 %v1076
        %v3656 = vunpack.c.l.b16 %v1077
        %v3657 = vunpack.c.l.b16 %v1078
        %v3658 = vunpack.c.l.b16 %v1079
        %v3659 = vunpack.c.l.b16 %v1080
        %v3660 = vunpack.c.l.b16 %v1081
        %v3661 = vunpack.c.l.b16 %v1082
        %v3662 = vunpack.c.l.b16 %v1083
        %v3663 = vunpack.c.l.b16 %v1084
        %v3664 = vunpack.c.l.b16 %v1085
        %v3665 = vunpack.c.l.b16 %v1086
        %v3666 = vunpack.c.l.b16 %v1087
        %v3667 = vunpack.c.l.b16 %v1088
        %v3668 = vunpack.c.l.b16 %v1089
        %v3669 = vunpack.c.l.b16 %v1090
        %v3670 = vunpack.c.l.b16 %v1091
        %v3671 = vunpack.c.l.b16 %v1092
        %v3672 = vunpack.c.l.b16 %v1093
        %v3673 = vunpack.c.l.b16 %v1094
        %v3674 = vunpack.c.l.b16 %v1095
        %v3675 = vunpack.c.l.b16 %v1096
        %v3676 = vunpack.c.l.b16 %v1097
        %v3677 = vunpack.c.l.b16 %v1098
        %v3678 = vunpack.c.l.b16 %v1099
        %v3679 = vunpack.c.l.b16 %v1100
        %v3680 = vunpack.c.l.b16 %v1101
        %v3681 = vunpack.c.l.b16 %v1102
        %v3682 = vunpack.c.l.b16 %v1103
        %v3683 = vunpack.c.l.b16 %v1104
        %v3684 = vunpack.c.l.b16 %v1105
        %v3685 = vunpack.c.l.b16 %v1106
        %v3686 = vunpack.c.l.b16 %v1107
        %v3687 = vunpack.c.l.b16 %v1108
        %v3688 = vunpack.c.l.b16 %v1109
        %v3689 = vunpack.c.l.b16 %v1110
        %v3690 = vunpack.c.l.b16 %v1111
        %v3691 = vunpack.c.l.b16 %v1112
        %v3692 = vunpack.c.l.b16 %v1113
        %v3693 = vunpack.c.l.b16 %v1114
        %v3694 = vunpack.c.l.b16 %v1115
        %v3695 = vunpack.c.l.b16 %v1116
        %v3696 = vunpack.c.l.b16 %v1117
        %v3697 = vunpack.c.l.b16 %v1118
        %v3698 = vunpack.c.l.b16 %v1119
        %v3699 = vunpack.c.l.b16 %v1120
        %v3700 = vunpack.c.l.b16 %v1121
        %v3701 = vunpack.c.l.b16 %v1122
        %v3702 = vunpack.c.l.b16 %v1123
        %v3703 = vunpack.c.l.b16 %v1124
        %v3704 = vunpack.c.l.b16 %v1125
        %v3705 = vunpack.c.l.b16 %v1126
        %v3706 = vunpack.c.l.b16 %v1127
        %v3707 = vunpack.c.l.b16 %v1128
        %v3708 = vunpack.c.l.b16 %v1129
        %v3709 = vunpack.c.l.b16 %v1130
        %v3710 = vunpack.c.l.b16 %v1131
        %v3711 = vunpack.c.l.b16 %v1132
        %v3712 = vunpack.c.l.b16 %v1133
        %v3713 = vunpack.c.l.b16 %v1134
        %v3714 = vunpack.c.l.b16 %v1135
        %v3715 = vunpack.c.l.b16 %v1136
        %v3716 = vunpack.c.l.b16 %v1137
        %v3717 = vunpack.c.l.b16 %v1138
        %v3718 = vunpack.c.l.b16 %v1139
        %v3719 = vunpack.c.l.b16 %v1140
        %v3720 = vunpack.c.l.b16 %v1141
        %v3721 = vunpack.c.l.b16 %v1142
        %v3722 = vunpack.c.l.b16 %v1143
        %v3723 = vunpack.c.l.b16 %v1144
        %v3724 = vunpack.c.l.b16 %v1145
        %v3725 = vunpack.c.l.b16 %v1146
        %v3726 = vunpack.c.l.b16 %v1147
        %v3727 = vunpack.c.l.b16 %v1148
        %v3728 = vunpack.c.l.b16 %v1149
        %v3729 = vunpack.c.l.b16 %v1150
        %v3730 = vunpack.c.l.b16 %v1151
        %v3731 = vunpack.c.l.b16 %v1152
        %v3732 = vunpack.c.l.b16 %v1153
        %v3733 = vunpack.c.l.b16 %v1154
        %v3734 = vunpack.c.l.b16 %v1155
        %v3735 = vunpack.c.l.b16 %v1156
        %v3736 = vunpack.c.l.b16 %v1157
        %v3737 = vunpack.c.l.b16 %v1158
        %v3738 = vunpack.c.l.b16 %v1159
        %v3739 = vunpack.c.l.b16 %v1160
        %v3740 = vunpack.c.l.b16 %v1161
        %v3741 = vunpack.c.l.b16 %v1162
        %v3742 = vunpack.c.l.b16 %v1163
        %v3743 = vunpack.c.l.b16 %v1164
        %v3744 = vunpack.c.l.b16 %v1165
        %v3745 = vunpack.c.l.b16 %v1166
        %v3746 = vunpack.c.l.b16 %v1167
        %v3747 = vunpack.c.l.b16 %v1168
        %v3748 = vunpack.c.l.b16 %v1169
        %v3749 = vunpack.c.l.b16 %v1170
        %v3750 = vunpack.c.l.b16 %v1171
        %v3751 = vunpack.c.l.b16 %v1172
        %v3752 = vunpack.c.l.b16 %v1173
        %v3753 = vunpack.c.l.b16 %v1174
        %v3754 = vunpack.c.l.b16 %v1175
        %v3755 = vunpack.c.l.b16 %v1176
        %v3756 = vunpack.c.l.b16 %v1177
        %v3757 = vunpack.c.l.b16 %v1178
        %v3758 = vunpack.c.l.b16 %v1179
        %v3759 = vunpack.c.l.b16 %v1180
        %v3760 = vunpack.c.l.b16 %v1181
        %v3761 = vunpack.c.l.b16 %v1182
        %v3762 = vunpack.c.l.b16 %v1183
        %v3763 = vunpack.c.l.b16 %v1184
        %v3764 = vunpack.c.l.b16 %v1185
        %v3765 = vunpack.c.l.b16 %v1186
        %v3766 = vunpack.c.l.b16 %v1187
        %v3767 = vunpack.c.l.b16 %v1188
        %v3768 = vunpack.c.l.b16 %v1189
        %v3769 = vunpack.c.l.b16 %v1190
        %v3770 = vunpack.c.l.b16 %v1191
        %v3771 = vunpack.c.l.b16 %v1192
        %v3772 = vunpack.c.l.b16 %v1193
        %v3773 = vunpack.c.l.b16 %v1194
        %v3774 = vunpack.c.l.b16 %v1195
        %v3775 = vunpack.c.l.b16 %v1196
        %v3776 = vunpack.c.l.b16 %v1197
        %v3777 = vunpack.c.l.b16 %v1198
        %v3778 = vunpack.c.l.b16 %v1199
        %v3779 = vunpack.c.l.b16 %v1200
        %v3780 = vunpack.c.l.b16 %v1201
        %v3781 = vunpack.c.l.b16 %v1202
        %v3782 = vunpack.c.l.b16 %v1203
        %v3783 = vunpack.c.l.b16 %v1204
        %v3784 = vunpack.c.l.b16 %v1205
        %v3785 = vunpack.c.l.b16 %v1206
        %v3786 = vunpack.c.l.b16 %v1207
        %v3787 = vunpack.c.l.b16 %v1208
        %v3788 = vunpack.c.l.b16 %v1209
        %v3789 = vunpack.c.l.b16 %v1210
        %v3790 = vunpack.c.l.b16 %v1211
        %v3791 = vunpack.c.l.b16 %v1212
        %v3792 = vunpack.c.l.b16 %v1213
        %v3793 = vunpack.c.l.b16 %v1214
        %v3794 = vunpack.c.l.b16 %v1215
        %v3795 = vunpack.c.l.b16 %v1216
        %v3796 = vunpack.c.l.b16 %v1217
        %v3797 = vunpack.c.l.b16 %v1218
        %v3798 = vunpack.c.l.b16 %v1219
        %v3799 = vunpack.c.l.b16 %v1220
        %v3800 = vunpack.c.l.b16 %v1221
        %v3801 = vunpack.c.l.b16 %v1222
        %v3802 = vunpack.c.l.b16 %v1223
        %v3803 = vunpack.c.l.b16 %v1224
        %v3804 = vunpack.c.l.b16 %v1225
        %v3805 = vunpack.c.l.b16 %v1226
        %v3806 = vunpack.c.l.b16 %v1227
        %v3807 = vpack.c.b16 %v3552, %v3551
        %v3808 = vpack.c.b16 %v3554, %v3553
        %v3809 = vpack.c.b16 %v3556, %v3555
        %v3810 = vpack.c.b16 %v3558, %v3557
        %v3811 = vpack.c.b16 %v3560, %v3559
        %v3812 = vpack.c.b16 %v3562, %v3561
        %v3813 = vpack.c.b16 %v3564, %v3563
        %v3814 = vpack.c.b16 %v3566, %v3565
        %v3815 = vpack.c.b16 %v3568, %v3567
        %v3816 = vpack.c.b16 %v3570, %v3569
        %v3817 = vpack.c.b16 %v3572, %v3571
        %v3818 = vpack.c.b16 %v3574, %v3573
        %v3819 = vpack.c.b16 %v3576, %v3575
        %v3820 = vpack.c.b16 %v3578, %v3577
        %v3821 = vpack.c.b16 %v3580, %v3579
        %v3822 = vpack.c.b16 %v3582, %v3581
        %v3823 = vpack.c.b16 %v3584, %v3583
        %v3824 = vpack.c.b16 %v3586, %v3585
        %v3825 = vpack.c.b16 %v3588, %v3587
        %v3826 = vpack.c.b16 %v3590, %v3589
        %v3827 = vpack.c.b16 %v3592, %v3591
        %v3828 = vpack.c.b16 %v3594, %v3593
        %v3829 = vpack.c.b16 %v3596, %v3595
        %v3830 = vpack.c.b16 %v3598, %v3597
        %v3831 = vpack.c.b16 %v3600, %v3599
        %v3832 = vpack.c.b16 %v3602, %v3601
        %v3833 = vpack.c.b16 %v3604, %v3603
        %v3834 = vpack.c.b16 %v3606, %v3605
        %v3835 = vpack.c.b16 %v3608, %v3607
        %v3836 = vpack.c.b16 %v3610, %v3609
        %v3837 = vpack.c.b16 %v3612, %v3611
        %v3838 = vpack.c.b16 %v3614, %v3613
        %v3839 = vpack.c.b16 %v3616, %v3615
        %v3840 = vpack.c.b16 %v3618, %v3617
        %v3841 = vpack.c.b16 %v3620, %v3619
        %v3842 = vpack.c.b16 %v3622, %v3621
        %v3843 = vpack.c.b16 %v3624, %v3623
        %v3844 = vpack.c.b16 %v3626, %v3625
        %v3845 = vpack.c.b16 %v3628, %v3627
        %v3846 = vpack.c.b16 %v3630, %v3629
        %v3847 = vpack.c.b16 %v3632, %v3631
        %v3848 = vpack.c.b16 %v3634, %v3633
        %v3849 = vpack.c.b16 %v3636, %v3635
        %v3850 = vpack.c.b16 %v3638, %v3637
        %v3851 = vpack.c.b16 %v3640, %v3639
        %v3852 = vpack.c.b16 %v3642, %v3641
        %v3853 = vpack.c.b16 %v3644, %v3643
        %v3854 = vpack.c.b16 %v3646, %v3645
        %v3855 = vpack.c.b16 %v3648, %v3647
        %v3856 = vpack.c.b16 %v3650, %v3649
        %v3857 = vpack.c.b16 %v3652, %v3651
        %v3858 = vpack.c.b16 %v3654, %v3653
        %v3859 = vpack.c.b16 %v3656, %v3655
        %v3860 = vpack.c.b16 %v3658, %v3657
        %v3861 = vpack.c.b16 %v3660, %v3659
        %v3862 = vpack.c.b16 %v3662, %v3661
        %v3863 = vpack.c.b16 %v3664, %v3663
        %v3864 = vpack.c.b16 %v3666, %v3665
        %v3865 = vpack.c.b16 %v3668, %v3667
        %v3866 = vpack.c.b16 %v3670, %v3669
        %v3867 = vpack.c.b16 %v3672, %v3671
        %v3868 = vpack.c.b16 %v3674, %v3673
        %v3869 = vpack.c.b16 %v3676, %v3675
        %v3870 = vpack.c.b16 %v3678, %v3677
        %v3871 = vpack.c.b16 %v3680, %v3679
        %v3872 = vpack.c.b16 %v3682, %v3681
        %v3873 = vpack.c.b16 %v3684, %v3683
        %v3874 = vpack.c.b16 %v3686, %v3685
        %v3875 = vpack.c.b16 %v3688, %v3687
        %v3876 = vpack.c.b16 %v3690, %v3689
        %v3877 = vpack.c.b16 %v3692, %v3691
        %v3878 = vpack.c.b16 %v3694, %v3693
        %v3879 = vpack.c.b16 %v3696, %v3695
        %v3880 = vpack.c.b16 %v3698, %v3697
        %v3881 = vpack.c.b16 %v3700, %v3699
        %v3882 = vpack.c.b16 %v3702, %v3701
        %v3883 = vpack.c.b16 %v3704, %v3703
        %v3884 = vpack.c.b16 %v3706, %v3705
        %v3885 = vpack.c.b16 %v3708, %v3707
        %v3886 = vpack.c.b16 %v3710, %v3709
        %v3887 = vpack.c.b16 %v3712, %v3711
        %v3888 = vpack.c.b16 %v3714, %v3713
        %v3889 = vpack.c.b16 %v3716, %v3715
        %v3890 = vpack.c.b16 %v3718, %v3717
        %v3891 = vpack.c.b16 %v3720, %v3719
        %v3892 = vpack.c.b16 %v3722, %v3721
        %v3893 = vpack.c.b16 %v3724, %v3723
        %v3894 = vpack.c.b16 %v3726, %v3725
        %v3895 = vpack.c.b16 %v3728, %v3727
        %v3896 = vpack.c.b16 %v3730, %v3729
        %v3897 = vpack.c.b16 %v3732, %v3731
        %v3898 = vpack.c.b16 %v3734, %v3733
        %v3899 = vpack.c.b16 %v3736, %v3735
        %v3900 = vpack.c.b16 %v3738, %v3737
        %v3901 = vpack.c.b16 %v3740, %v3739
        %v3902 = vpack.c.b16 %v3742, %v3741
        %v3903 = vpack.c.b16 %v3744, %v3743
        %v3904 = vpack.c.b16 %v3746, %v3745
        %v3905 = vpack.c.b16 %v3748, %v3747
        %v3906 = vpack.c.b16 %v3750, %v3749
        %v3907 = vpack.c.b16 %v3752, %v3751
        %v3908 = vpack.c.b16 %v3754, %v3753
        %v3909 = vpack.c.b16 %v3756, %v3755
        %v3910 = vpack.c.b16 %v3758, %v3757
        %v3911 = vpack.c.b16 %v3760, %v3759
        %v3912 = vpack.c.b16 %v3762, %v3761
        %v3913 = vpack.c.b16 %v3764, %v3763
        %v3914 = vpack.c.b16 %v3766, %v3765
        %v3915 = vpack.c.b16 %v3768, %v3767
        %v3916 = vpack.c.b16 %v3770, %v3769
        %v3917 = vpack.c.b16 %v3772, %v3771
        %v3918 = vpack.c.b16 %v3774, %v3773
        %v3919 = vpack.c.b16 %v3776, %v3775
        %v3920 = vpack.c.b16 %v3778, %v3777
        %v3921 = vpack.c.b16 %v3780, %v3779
        %v3922 = vpack.c.b16 %v3782, %v3781
        %v3923 = vpack.c.b16 %v3784, %v3783
        %v3924 = vpack.c.b16 %v3786, %v3785
        %v3925 = vpack.c.b16 %v3788, %v3787
        %v3926 = vpack.c.b16 %v3790, %v3789
        %v3927 = vpack.c.b16 %v3792, %v3791
        %v3928 = vpack.c.b16 %v3794, %v3793
        %v3929 = vpack.c.b16 %v3796, %v3795
        %v3930 = vpack.c.b16 %v3798, %v3797
        %v3931 = vpack.c.b16 %v3800, %v3799
        %v3932 = vpack.c.b16 %v3802, %v3801
        %v3933 = vpack.c.b16 %v3804, %v3803
        %v3934 = vpack.c.b16 %v3806, %v3805
        %4063 = vmatprep.subr.bf16.mxu0 0
        %4064 = vmatpush1.bf16.msra.mxu0 %v3807
        %4065 = vmatprep.subr.bf16.mxu0 0
        %4066 = vmatpush1.bf16.msra.mxu0 %v3808
        %4067 = vmatprep.subr.bf16.mxu0 0
        %4068 = vmatpush1.bf16.msra.mxu0 %v3809
        %4069 = vmatprep.subr.bf16.mxu0 0
        %4070 = vmatpush1.bf16.msra.mxu0 %v3810
        %4071 = vmatprep.subr.bf16.mxu0 0
        %4072 = vmatpush1.bf16.msra.mxu0 %v3811
        %4073 = vmatprep.subr.bf16.mxu0 0
        %4074 = vmatpush1.bf16.msra.mxu0 %v3812
        %4075 = vmatprep.subr.bf16.mxu0 0
        %4076 = vmatpush1.bf16.msra.mxu0 %v3813
        %4077 = vmatprep.subr.bf16.mxu0 0
        %4078 = vmatpush1.bf16.msra.mxu0 %v3814
        %4079 = vmatprep.subr.bf16.mxu0 0
        %4080 = vmatpush1.bf16.msra.mxu0 %v3815
        %4081 = vmatprep.subr.bf16.mxu0 0
        %4082 = vmatpush1.bf16.msra.mxu0 %v3816
        %4083 = vmatprep.subr.bf16.mxu0 0
        %4084 = vmatpush1.bf16.msra.mxu0 %v3817
        %4085 = vmatprep.subr.bf16.mxu0 0
        %4086 = vmatpush1.bf16.msra.mxu0 %v3818
        %4087 = vmatprep.subr.bf16.mxu0 0
        %4088 = vmatpush1.bf16.msra.mxu0 %v3819
        %4089 = vmatprep.subr.bf16.mxu0 0
        %4090 = vmatpush1.bf16.msra.mxu0 %v3820
        %4091 = vmatprep.subr.bf16.mxu0 0
        %4092 = vmatpush1.bf16.msra.mxu0 %v3821
        %4093 = vmatprep.subr.bf16.mxu0 0
        %4094 = vmatpush1.bf16.msra.mxu0 %v3822
        %4095 = vmatprep.mubr.bf16.mxu0 %v3274
        %4096 = vmatmul.mubr.bf16.gmra.mrb[0].mxu0 %v3273
        %v4097 = vpop.f32.mrb[0].mxu0
        %v4098 = vadd.f32 %v3293, %v4097
        %v4099 = vpop.f32.mrb[0].mxu0
        %v4100 = vpop.f32.mrb[0].mxu0
        %v4101 = vadd.f32 %v3293, %v4100
        %v4102 = vpop.f32.mrb[0].mxu0
        %4103 = vdwg.mxu0
        %4104 = vmatprep.subr.bf16.mxu0 0
        %4105 = vmatpush1.bf16.msra.mxu0 %v3823
        %4106 = vmatprep.subr.bf16.mxu0 0
        %4107 = vmatpush1.bf16.msra.mxu0 %v3824
        %4108 = vmatprep.subr.bf16.mxu0 0
        %4109 = vmatpush1.bf16.msra.mxu0 %v3825
        %4110 = vmatprep.subr.bf16.mxu0 0
        %4111 = vmatpush1.bf16.msra.mxu0 %v3826
        %4112 = vmatprep.subr.bf16.mxu0 0
        %4113 = vmatpush1.bf16.msra.mxu0 %v3827
        %4114 = vmatprep.subr.bf16.mxu0 0
        %4115 = vmatpush1.bf16.msra.mxu0 %v3828
        %4116 = vmatprep.subr.bf16.mxu0 0
        %4117 = vmatpush1.bf16.msra.mxu0 %v3829
        %4118 = vmatprep.subr.bf16.mxu0 0
        %4119 = vmatpush1.bf16.msra.mxu0 %v3830
        %4120 = vmatprep.subr.bf16.mxu0 0
        %4121 = vmatpush1.bf16.msra.mxu0 %v3831
        %4122 = vmatprep.subr.bf16.mxu0 0
        %4123 = vmatpush1.bf16.msra.mxu0 %v3832
        %4124 = vmatprep.subr.bf16.mxu0 0
        %4125 = vmatpush1.bf16.msra.mxu0 %v3833
        %4126 = vmatprep.subr.bf16.mxu0 0
        %4127 = vmatpush1.bf16.msra.mxu0 %v3834
        %4128 = vmatprep.subr.bf16.mxu0 0
        %4129 = vmatpush1.bf16.msra.mxu0 %v3835
        %4130 = vmatprep.subr.bf16.mxu0 0
        %4131 = vmatpush1.bf16.msra.mxu0 %v3836
        %4132 = vmatprep.subr.bf16.mxu0 0
        %4133 = vmatpush1.bf16.msra.mxu0 %v3837
        %4134 = vmatprep.subr.bf16.mxu0 0
        %4135 = vmatpush1.bf16.msra.mxu0 %v3838
        %4136 = vmatprep.mubr.bf16.mxu0 %v3276
        %4137 = vmatmul.mubr.bf16.gmra.mrb[0].mxu0 %v3275
        %v4138 = vpop.f32.mrb[0].mxu0
        %v4139 = vadd.f32 %v4098, %v4138
        %v4140 = vpop.f32.mrb[0].mxu0
        %v4141 = vpop.f32.mrb[0].mxu0
        %v4142 = vadd.f32 %v4101, %v4141
        %v4143 = vpop.f32.mrb[0].mxu0
        %4144 = vdwg.mxu0
        %4145 = vmatprep.subr.bf16.mxu0 0
        %4146 = vmatpush1.bf16.msra.mxu0 %v3839
        %4147 = vmatprep.subr.bf16.mxu0 0
        %4148 = vmatpush1.bf16.msra.mxu0 %v3840
        %4149 = vmatprep.subr.bf16.mxu0 0
        %4150 = vmatpush1.bf16.msra.mxu0 %v3841
        %4151 = vmatprep.subr.bf16.mxu0 0
        %4152 = vmatpush1.bf16.msra.mxu0 %v3842
        %4153 = vmatprep.subr.bf16.mxu0 0
        %4154 = vmatpush1.bf16.msra.mxu0 %v3843
        %4155 = vmatprep.subr.bf16.mxu0 0
        %4156 = vmatpush1.bf16.msra.mxu0 %v3844
        %4157 = vmatprep.subr.bf16.mxu0 0
        %4158 = vmatpush1.bf16.msra.mxu0 %v3845
        %4159 = vmatprep.subr.bf16.mxu0 0
        %4160 = vmatpush1.bf16.msra.mxu0 %v3846
        %4161 = vmatprep.subr.bf16.mxu0 0
        %4162 = vmatpush1.bf16.msra.mxu0 %v3847
        %4163 = vmatprep.subr.bf16.mxu0 0
        %4164 = vmatpush1.bf16.msra.mxu0 %v3848
        %4165 = vmatprep.subr.bf16.mxu0 0
        %4166 = vmatpush1.bf16.msra.mxu0 %v3849
        %4167 = vmatprep.subr.bf16.mxu0 0
        %4168 = vmatpush1.bf16.msra.mxu0 %v3850
        %4169 = vmatprep.subr.bf16.mxu0 0
        %4170 = vmatpush1.bf16.msra.mxu0 %v3851
        %4171 = vmatprep.subr.bf16.mxu0 0
        %4172 = vmatpush1.bf16.msra.mxu0 %v3852
        %4173 = vmatprep.subr.bf16.mxu0 0
        %4174 = vmatpush1.bf16.msra.mxu0 %v3853
        %4175 = vmatprep.subr.bf16.mxu0 0
        %4176 = vmatpush1.bf16.msra.mxu0 %v3854
        %4177 = vmatprep.mubr.bf16.mxu0 %v3278
        %4178 = vmatmul.mubr.bf16.gmra.mrb[0].mxu0 %v3277
        %v4179 = vpop.f32.mrb[0].mxu0
        %v4180 = vadd.f32 %v4139, %v4179
        %v4181 = vpop.f32.mrb[0].mxu0
        %v4182 = vpop.f32.mrb[0].mxu0
        %v4183 = vadd.f32 %v4142, %v4182
        %v4184 = vpop.f32.mrb[0].mxu0
        %4185 = vdwg.mxu0
        %4186 = vmatprep.subr.bf16.mxu0 0
        %4187 = vmatpush1.bf16.msra.mxu0 %v3855
        %4188 = vmatprep.subr.bf16.mxu0 0
        %4189 = vmatpush1.bf16.msra.mxu0 %v3856
        %4190 = vmatprep.subr.bf16.mxu0 0
        %4191 = vmatpush1.bf16.msra.mxu0 %v3857
        %4192 = vmatprep.subr.bf16.mxu0 0
        %4193 = vmatpush1.bf16.msra.mxu0 %v3858
        %4194 = vmatprep.subr.bf16.mxu0 0
        %4195 = vmatpush1.bf16.msra.mxu0 %v3859
        %4196 = vmatprep.subr.bf16.mxu0 0
        %4197 = vmatpush1.bf16.msra.mxu0 %v3860
        %4198 = vmatprep.subr.bf16.mxu0 0
        %4199 = vmatpush1.bf16.msra.mxu0 %v3861
        %4200 = vmatprep.subr.bf16.mxu0 0
        %4201 = vmatpush1.bf16.msra.mxu0 %v3862
        %4202 = vmatprep.subr.bf16.mxu0 0
        %4203 = vmatpush1.bf16.msra.mxu0 %v3863
        %4204 = vmatprep.subr.bf16.mxu0 0
        %4205 = vmatpush1.bf16.msra.mxu0 %v3864
        %4206 = vmatprep.subr.bf16.mxu0 0
        %4207 = vmatpush1.bf16.msra.mxu0 %v3865
        %4208 = vmatprep.subr.bf16.mxu0 0
        %4209 = vmatpush1.bf16.msra.mxu0 %v3866
        %4210 = vmatprep.subr.bf16.mxu0 0
        %4211 = vmatpush1.bf16.msra.mxu0 %v3867
        %4212 = vmatprep.subr.bf16.mxu0 0
        %4213 = vmatpush1.bf16.msra.mxu0 %v3868
        %4214 = vmatprep.subr.bf16.mxu0 0
        %4215 = vmatpush1.bf16.msra.mxu0 %v3869
        %4216 = vmatprep.subr.bf16.mxu0 0
        %4217 = vmatpush1.bf16.msra.mxu0 %v3870
        %4218 = vmatprep.mubr.bf16.mxu0 %v3280
        %4219 = vmatmul.mubr.bf16.gmra.mrb[0].mxu0 %v3279
        %v4220 = vpop.f32.mrb[0].mxu0
        %v4221 = vadd.f32 %v4180, %v4220
        %v4222 = vpop.f32.mrb[0].mxu0
        %v4223 = vpop.f32.mrb[0].mxu0
        %v4224 = vadd.f32 %v4183, %v4223
        %v4225 = vpop.f32.mrb[0].mxu0
        %4226 = vdwg.mxu0
        %4227 = vmatprep.subr.bf16.mxu0 0
        %4228 = vmatpush1.bf16.msra.mxu0 %v3871
        %4229 = vmatprep.subr.bf16.mxu0 0
        %4230 = vmatpush1.bf16.msra.mxu0 %v3872
        %4231 = vmatprep.subr.bf16.mxu0 0
        %4232 = vmatpush1.bf16.msra.mxu0 %v3873
        %4233 = vmatprep.subr.bf16.mxu0 0
        %4234 = vmatpush1.bf16.msra.mxu0 %v3874
        %4235 = vmatprep.subr.bf16.mxu0 0
        %4236 = vmatpush1.bf16.msra.mxu0 %v3875
        %4237 = vmatprep.subr.bf16.mxu0 0
        %4238 = vmatpush1.bf16.msra.mxu0 %v3876
        %4239 = vmatprep.subr.bf16.mxu0 0
        %4240 = vmatpush1.bf16.msra.mxu0 %v3877
        %4241 = vmatprep.subr.bf16.mxu0 0
        %4242 = vmatpush1.bf16.msra.mxu0 %v3878
        %4243 = vmatprep.subr.bf16.mxu0 0
        %4244 = vmatpush1.bf16.msra.mxu0 %v3879
        %4245 = vmatprep.subr.bf16.mxu0 0
        %4246 = vmatpush1.bf16.msra.mxu0 %v3880
        %4247 = vmatprep.subr.bf16.mxu0 0
        %4248 = vmatpush1.bf16.msra.mxu0 %v3881
        %4249 = vmatprep.subr.bf16.mxu0 0
        %4250 = vmatpush1.bf16.msra.mxu0 %v3882
        %4251 = vmatprep.subr.bf16.mxu0 0
        %4252 = vmatpush1.bf16.msra.mxu0 %v3883
        %4253 = vmatprep.subr.bf16.mxu0 0
        %4254 = vmatpush1.bf16.msra.mxu0 %v3884
        %4255 = vmatprep.subr.bf16.mxu0 0
        %4256 = vmatpush1.bf16.msra.mxu0 %v3885
        %4257 = vmatprep.subr.bf16.mxu0 0
        %4258 = vmatpush1.bf16.msra.mxu0 %v3886
        %4259 = vmatprep.mubr.bf16.mxu0 %v3282
        %4260 = vmatmul.mubr.bf16.gmra.mrb[0].mxu0 %v3281
        %v4261 = vpop.f32.mrb[0].mxu0
        %v4262 = vadd.f32 %v4221, %v4261
        %v4263 = vpop.f32.mrb[0].mxu0
        %v4264 = vpop.f32.mrb[0].mxu0
        %v4265 = vadd.f32 %v4224, %v4264
        %v4266 = vpop.f32.mrb[0].mxu0
        %4267 = vdwg.mxu0
        %4268 = vmatprep.subr.bf16.mxu0 0
        %4269 = vmatpush1.bf16.msra.mxu0 %v3887
        %4270 = vmatprep.subr.bf16.mxu0 0
        %4271 = vmatpush1.bf16.msra.mxu0 %v3888
        %4272 = vmatprep.subr.bf16.mxu0 0
        %4273 = vmatpush1.bf16.msra.mxu0 %v3889
        %4274 = vmatprep.subr.bf16.mxu0 0
        %4275 = vmatpush1.bf16.msra.mxu0 %v3890
        %4276 = vmatprep.subr.bf16.mxu0 0
        %4277 = vmatpush1.bf16.msra.mxu0 %v3891
        %4278 = vmatprep.subr.bf16.mxu0 0
        %4279 = vmatpush1.bf16.msra.mxu0 %v3892
        %4280 = vmatprep.subr.bf16.mxu0 0
        %4281 = vmatpush1.bf16.msra.mxu0 %v3893
        %4282 = vmatprep.subr.bf16.mxu0 0
        %4283 = vmatpush1.bf16.msra.mxu0 %v3894
        %4284 = vmatprep.subr.bf16.mxu0 0
        %4285 = vmatpush1.bf16.msra.mxu0 %v3895
        %4286 = vmatprep.subr.bf16.mxu0 0
        %4287 = vmatpush1.bf16.msra.mxu0 %v3896
        %4288 = vmatprep.subr.bf16.mxu0 0
        %4289 = vmatpush1.bf16.msra.mxu0 %v3897
        %4290 = vmatprep.subr.bf16.mxu0 0
        %4291 = vmatpush1.bf16.msra.mxu0 %v3898
        %4292 = vmatprep.subr.bf16.mxu0 0
        %4293 = vmatpush1.bf16.msra.mxu0 %v3899
        %4294 = vmatprep.subr.bf16.mxu0 0
        %4295 = vmatpush1.bf16.msra.mxu0 %v3900
        %4296 = vmatprep.subr.bf16.mxu0 0
        %4297 = vmatpush1.bf16.msra.mxu0 %v3901
        %4298 = vmatprep.subr.bf16.mxu0 0
        %4299 = vmatpush1.bf16.msra.mxu0 %v3902
        %4300 = vmatprep.mubr.bf16.mxu0 %v3284
        %4301 = vmatmul.mubr.bf16.gmra.mrb[0].mxu0 %v3283
        %v4302 = vpop.f32.mrb[0].mxu0
        %v4303 = vadd.f32 %v4262, %v4302
        %v4304 = vpop.f32.mrb[0].mxu0
        %v4305 = vpop.f32.mrb[0].mxu0
        %v4306 = vadd.f32 %v4265, %v4305
        %v4307 = vpop.f32.mrb[0].mxu0
        %4308 = vdwg.mxu0
        %4309 = vmatprep.subr.bf16.mxu0 0
        %4310 = vmatpush1.bf16.msra.mxu0 %v3903
        %4311 = vmatprep.subr.bf16.mxu0 0
        %4312 = vmatpush1.bf16.msra.mxu0 %v3904
        %4313 = vmatprep.subr.bf16.mxu0 0
        %4314 = vmatpush1.bf16.msra.mxu0 %v3905
        %4315 = vmatprep.subr.bf16.mxu0 0
        %4316 = vmatpush1.bf16.msra.mxu0 %v3906
        %4317 = vmatprep.subr.bf16.mxu0 0
        %4318 = vmatpush1.bf16.msra.mxu0 %v3907
        %4319 = vmatprep.subr.bf16.mxu0 0
        %4320 = vmatpush1.bf16.msra.mxu0 %v3908
        %4321 = vmatprep.subr.bf16.mxu0 0
        %4322 = vmatpush1.bf16.msra.mxu0 %v3909
        %4323 = vmatprep.subr.bf16.mxu0 0
        %4324 = vmatpush1.bf16.msra.mxu0 %v3910
        %4325 = vmatprep.subr.bf16.mxu0 0
        %4326 = vmatpush1.bf16.msra.mxu0 %v3911
        %4327 = vmatprep.subr.bf16.mxu0 0
        %4328 = vmatpush1.bf16.msra.mxu0 %v3912
        %4329 = vmatprep.subr.bf16.mxu0 0
        %4330 = vmatpush1.bf16.msra.mxu0 %v3913
        %4331 = vmatprep.subr.bf16.mxu0 0
        %4332 = vmatpush1.bf16.msra.mxu0 %v3914
        %4333 = vmatprep.subr.bf16.mxu0 0
        %4334 = vmatpush1.bf16.msra.mxu0 %v3915
        %4335 = vmatprep.subr.bf16.mxu0 0
        %4336 = vmatpush1.bf16.msra.mxu0 %v3916
        %4337 = vmatprep.subr.bf16.mxu0 0
        %4338 = vmatpush1.bf16.msra.mxu0 %v3917
        %4339 = vmatprep.subr.bf16.mxu0 0
        %4340 = vmatpush1.bf16.msra.mxu0 %v3918
        %4341 = vmatprep.mubr.bf16.mxu0 %v3286
        %4342 = vmatmul.mubr.bf16.gmra.mrb[0].mxu0 %v3285
        %v4343 = vpop.f32.mrb[0].mxu0
        %v4344 = vadd.f32 %v4303, %v4343
        %v4345 = vpop.f32.mrb[0].mxu0
        %v4346 = vpop.f32.mrb[0].mxu0
        %v4347 = vadd.f32 %v4306, %v4346
        %v4348 = vpop.f32.mrb[0].mxu0
        %4349 = vdwg.mxu0
        %4350 = vmatprep.subr.bf16.mxu0 0
        %4351 = vmatpush1.bf16.msra.mxu0 %v3919
        %4352 = vmatprep.subr.bf16.mxu0 0
        %4353 = vmatpush1.bf16.msra.mxu0 %v3920
        %4354 = vmatprep.subr.bf16.mxu0 0
        %4355 = vmatpush1.bf16.msra.mxu0 %v3921
        %4356 = vmatprep.subr.bf16.mxu0 0
        %4357 = vmatpush1.bf16.msra.mxu0 %v3922
        %4358 = vmatprep.subr.bf16.mxu0 0
        %4359 = vmatpush1.bf16.msra.mxu0 %v3923
        %4360 = vmatprep.subr.bf16.mxu0 0
        %4361 = vmatpush1.bf16.msra.mxu0 %v3924
        %4362 = vmatprep.subr.bf16.mxu0 0
        %4363 = vmatpush1.bf16.msra.mxu0 %v3925
        %4364 = vmatprep.subr.bf16.mxu0 0
        %4365 = vmatpush1.bf16.msra.mxu0 %v3926
        %4366 = vmatprep.subr.bf16.mxu0 0
        %4367 = vmatpush1.bf16.msra.mxu0 %v3927
        %4368 = vmatprep.subr.bf16.mxu0 0
        %4369 = vmatpush1.bf16.msra.mxu0 %v3928
        %4370 = vmatprep.subr.bf16.mxu0 0
        %4371 = vmatpush1.bf16.msra.mxu0 %v3929
        %4372 = vmatprep.subr.bf16.mxu0 0
        %4373 = vmatpush1.bf16.msra.mxu0 %v3930
        %4374 = vmatprep.subr.bf16.mxu0 0
        %4375 = vmatpush1.bf16.msra.mxu0 %v3931
        %4376 = vmatprep.subr.bf16.mxu0 0
        %4377 = vmatpush1.bf16.msra.mxu0 %v3932
        %4378 = vmatprep.subr.bf16.mxu0 0
        %4379 = vmatpush1.bf16.msra.mxu0 %v3933
        %4380 = vmatprep.subr.bf16.mxu0 0
        %4381 = vmatpush1.bf16.msra.mxu0 %v3934
        %4382 = vmatprep.mubr.bf16.mxu0 %v3288
        %4383 = vmatmul.mubr.bf16.gmra.mrb[0].mxu0 %v3287
        %v4384 = vpop.f32.mrb[0].mxu0
        %v4385 = vadd.f32 %v4344, %v4384
        %v4386 = vpop.f32.mrb[0].mxu0
        %v4387 = vpop.f32.mrb[0].mxu0
        %v4388 = vadd.f32 %v4347, %v4387
        %v4389 = vpop.f32.mrb[0].mxu0
        %4390 = vdwg.mxu0
        %v4391 = vadd.f32 %v2489, %v4385
        %v4392 = vadd.f32 %v2490, %v4388
        %v4393 = vsel %vm1281, %v4391, 0.0
        %4394 = vadd.xlane.f32.xlu0 %v4393
        %v4395 = vpop.xlane.xlu0 %4394
        %v4396 = vsel %vm1281, %v4392, 0.0
        %4397 = vadd.xlane.f32.xlu0 %v4396
        %v4398 = vpop.xlane.xlu0 %4397
        %v4399 = vmul.f32 %v4395, %v2452
        %v4400 = vmul.f32 %v4398, %v2452
        %v4401 = vsub.f32 %v4391, %v4399
        %v4402 = vsub.f32 %v4392, %v4400
        %v4403 = vmul.f32 %v4401, %v4401
        %v4404 = vmul.f32 %v4402, %v4402
        %v4405 = vsel %vm1281, %v4403, 0.0
        %4406 = vadd.xlane.f32.xlu0 %v4405
        %v4407 = vpop.xlane.xlu0 %4406
        %v4408 = vsel %vm1281, %v4404, 0.0
        %4409 = vadd.xlane.f32.xlu0 %v4408
        %v4410 = vpop.xlane.xlu0 %4409
        %v4411 = vmul.f32 %v4407, %v2452
        %v4412 = vmul.f32 %v4410, %v2452
        %v4413 = vadd.f32 %v4411, 1e-05
        %v4414 = vadd.f32 %v4412, 1e-05
        %v4415 = vrsqrt.pop %v4413
        %v4416 = vrsqrt.pop %v4414
        %v4417 = vmul.f32 %v4401, %v4415
        %v4418 = vmul.f32 %v4402, %v4416
        %v4419 = vld [vmem:[%s779] sm:$0x1]
        %v4421 = vlaneseq
        %v4422 = vshrl.u32 %v4421, 7
        %v4423 = vsub.s32 0, %v4422
        %v4424 = vrot.slane %v4419, %v4423
        %v4426 = vmul.f32 %v4417, %v4424
        %v4427 = vmul.f32 %v4418, %v4424
        %v4428 = vld [vmem:[%s787] sm:$0x1]
        %v4430 = vlaneseq
        %v4431 = vshrl.u32 %v4430, 7
        %v4432 = vsub.s32 0, %v4431
        %v4433 = vrot.slane %v4428, %v4432
        %v4435 = vadd.f32 %v4426, %v4433
        %v4436 = vadd.f32 %v4427, %v4433
        %4437 = vst.msk [vmem:[#allocation2] sm:$0xff] %vm1281, %v4435
        %4438 = vst.msk [vmem:[#allocation2 + $0x8] sm:$0xff] %vm1281, %v4436
        %p4439 = scmp.eq.s32.totalorder %s54, 1
        // Predicated region
        $region129: #{tpu_custom_call.1} parent=71 // pred_check
          %p4440 = pneg %p4439
        $region130: #{tpu_custom_call.1} parent=71 // pred_check_branch
          %4442 = sbr.rel (%p4440) target = $region132
        $region131: #{tpu_custom_call.1} parent=71 // pred_region
          %4443 = vst.msk [vmem:[#allocation26] sm:$0xff] %vm1281, %v4435
          %4444 = vst.msk [vmem:[#allocation26 + $0x8] sm:$0xff] %vm1281, %v4436
        $region132: #{tpu_custom_call.1} parent=71 // pred_fallthru
          _
        // Predicated region
        $region133: #{tpu_custom_call.1} parent=71 // pred_check
          %p4445 = pneg %p417
        $region134: #{tpu_custom_call.1} parent=71 // pred_check_branch
          %4447 = sbr.rel (%p4445) target = $region136
        $region135: #{tpu_custom_call.1} parent=71 // pred_region
          %s4448 = smul.u32 2, %s53
          %s4450 = ssub.s32 256, 256
          %4451 = vsyncadd [#allocation7], %s4450
          %s4452 = smul.addr %s4448, 128
          %s4453 = scalar_lea.hbm %s14, %s4452
          %s4454 = sshll.u32 [#allocation26], 4
          %s4455 = int_to_ptr.vmem [resolvable:$true] %s4454
          %4460 = dma.vmem_to_hbm [thread:$0]  %s4455, 256, %s4453, [#allocation7], 128, 128, 8
        $region136: #{tpu_custom_call.1} parent=71 // pred_fallthru
          _
        // Predicated region
        $region137: #{tpu_custom_call.1} parent=71 // pred_check
          %p4461 = pneg %p417
        $region138: #{tpu_custom_call.1} parent=71 // pred_check_branch
          %4463 = sbr.rel (%p4461) target = $region140
        $region139: #{tpu_custom_call.1} parent=71 // pred_region
          %4464 = dma.done [#allocation7], 256
        $region140: #{tpu_custom_call.1} parent=71 // pred_fallthru
          _
      $region72: #{tpu_custom_call.1} parent=5 // pred_fallthru
        _
      %p4465 = scmp.le.s32.totalorder 2, %s44
      // Predicated region
      $region141: #{tpu_custom_call.1} parent=5 // pred_check
        %p4466 = pneg %p4465
      $region142: #{tpu_custom_call.1} parent=5 // pred_check_branch
        %4468 = sbr.rel (%p4466) target = $region144
      $region143: #{tpu_custom_call.1} parent=5 // pred_region
        %s4469 = ssub.s32 %s44, 2
      $region144: #{tpu_custom_call.1} parent=5 // pred_fallthru
        _
    $region6: #{tpu_custom_call.1} parent=1 // loop_footer
      %s48 = sadd.s32 1, %s44
    $region7: #{tpu_custom_call.1} parent=1 // loop_footer_branch
      %43 = sbr.rel target = $region3
    $region8: #{tpu_custom_call.1} parent=1 // loop_exit
      _
    %4470 = vsyncpa [#allocation6], 1
    %s4471 = scalar_lea.sflag [#allocation6], 1
    %4472 = vsyncpa %s4471, 1
    %4473 = vsyncpa [#allocation9], 1
    %s4474 = scalar_lea.sflag [#allocation9], 1
    %4475 = vsyncpa %s4474, 1
    %4476 = vsyncpa [#allocation12], 1
    %s4477 = scalar_lea.sflag [#allocation12], 1
    %4478 = vsyncpa %s4477, 1
    %4479 = vsyncpa [#allocation15], 1
    %s4480 = scalar_lea.sflag [#allocation15], 1
    %4481 = vsyncpa %s4480, 1
    %4482 = vsyncpa [#allocation18], 1
    %s4483 = scalar_lea.sflag [#allocation18], 1
    %4484 = vsyncpa %s4483, 1
    %4485 = vsyncpa [#allocation21], 1
    %s4486 = scalar_lea.sflag [#allocation21], 1
    %4487 = vsyncpa %s4486, 1
    %4488 = vsyncpa [#allocation24], 1
    %s4489 = scalar_lea.sflag [#allocation24], 1
    %4490 = vsyncpa %s4489, 1
    %4491 = vsyncpa [#allocation7], 1
    %s4492 = scalar_lea.sflag [#allocation7], 1
    %4493 = vsyncpa %s4492, 1

</llo_original>
